<compile_context>
chip_gen: v7x
topology: tpu7x:2x2x1
jax: 0.10.0
libtpu: 0.0.40
codegen_flags: <defaults>
</compile_context>

<pallas_src>
import functools
from dataclasses import dataclass

import jax
import jax.numpy as jnp
from jax.experimental import pallas as pl
from jax.experimental.pallas import tpu as pltpu


@dataclass
class Parameters:
    """GAN parameters"""
    z_size: int = 100
    batch_size: int = 64
    n_classes: int = 10
    feature_map_size: int = 64
    epochs: int = 10
    lr: float = 0.0002
    beta1: float = 0.5


# conv1 output is 14x14 (28x28, k=4, s=2, p=1).  It is stored in a "parity
# slab" layout: slab s = 2a+c holds padded positions (2u+a, 2v+c), u,v in 0..8
# -> 81 rows per slab, padded to 96.  conv2 output rows are t = 9p+q; only
# rows 0..63 are carried (all valid p,q<7 outputs have t<=60), and the tap
# (dp,dq) of slab s reads slab row t + 9*dp + dq (max 63+10=73 < 81: in-bounds).
_SLAB_ROWS = 81
_SLAB_PAD = 96
_N_SLABS = 4
_ROWS1 = _N_SLABS * _SLAB_PAD          # 384 conv1 rows per sample (incl. padding)
_ACC_ROWS = 64                         # conv2 rows carried per sample (>= 61)
_TAP_OFFSETS = (0, 1, 9, 10)           # 9*dp + dq for tap k = 2*dp + dq


def _row_validity_mask(n_rows):
    """(n_rows, 1) f32 mask: per-sample row t (=row & 63) valid iff t=9p+q, p,q<7.

    Avoids vector integer div/mod (not guaranteed on the VPU) with a compare
    cascade; _ACC_ROWS is a power of two so `& 63` extracts the per-sample row.
    """
    r = jax.lax.broadcasted_iota(jnp.int32, (n_rows, 1), 0)
    t = jnp.bitwise_and(r, _ACC_ROWS - 1)
    p = jnp.zeros_like(t)
    for k in range(1, 8):
        p = p + (t >= 9 * k).astype(jnp.int32)
    q = t - 9 * p
    return jnp.logical_and(p < 7, q < 7).astype(jnp.float32)


# ---------------------------------------------------------------------------
# Fused Pallas kernel (grid over batch tiles of TB samples)
# ---------------------------------------------------------------------------
def _make_disc_kernel(TB, F, C2, B, n_steps):
    n_rows = TB * _ACC_ROWS

    def kernel(p1_ref, w1g_ref, w2_ref, w3_ref, g_ref, bt_ref, o_ref,
               y1_scr, y2_scr, s1_scr, s2_scr):
        step = pl.program_id(0)

        # ---- conv1 (label-gathered per-sample weights) + LeakyReLU(0.2) ------
        y1 = jnp.einsum("bri,bif->brf", p1_ref[...], w1g_ref[...],
                        preferred_element_type=jnp.float32)        # (TB, 384, F)
        y1 = jnp.where(y1 >= 0.0, y1, 0.2 * y1)
        y1_scr[...] = y1.astype(jnp.bfloat16)

        # ---- conv2: all 4 parity slabs x 4 taps fused along K (K = 16*F) -----
        wins = []
        for s in range(_N_SLABS):
            base = _SLAB_PAD * s
            for off in _TAP_OFFSETS:
                wins.append(y1_scr[:, base + off: base + off + _ACC_ROWS, :])
        lhs = jnp.concatenate(wins, axis=-1).reshape(n_rows, 16 * F)  # bf16
        y2 = jnp.dot(lhs, w2_ref[...],
                     preferred_element_type=jnp.float32)            # (n_rows, C2)
        y2_scr[step] = y2                                            # pre-BN output

        # ---- incremental BatchNorm statistics (masked to valid 7x7 rows) -----
        @pl.when(step == 0)
        def _():
            s1_scr[...] = jnp.zeros_like(s1_scr)
            s2_scr[...] = jnp.zeros_like(s2_scr)

        mask = _row_validity_mask(n_rows)                            # (n_rows, 1)
        y2m = y2 * mask
        s1_scr[...] += y2m.reshape(n_rows // 8, 8, C2).sum(axis=0)
        s2_scr[...] += (y2m * y2).reshape(n_rows // 8, 8, C2).sum(axis=0)

        # ---- final step: BN finalize + LeakyReLU + conv3 + sigmoid -----------
        @pl.when(step == n_steps - 1)
        def _():
            cnt = 49.0 * B                                           # B * 7 * 7
            s1 = jnp.sum(s1_scr[...], axis=0, keepdims=True)         # (1, C2)
            s2 = jnp.sum(s2_scr[...], axis=0, keepdims=True)
            mean = s1 / cnt
            var = s2 / cnt - mean * mean
            scale = jax.lax.rsqrt(var + 1e-5) * g_ref[...]           # (1, C2)
            shift = bt_ref[...] - mean * scale
            yall = y2_scr[...].reshape(B, _ACC_ROWS, C2)
            yn = yall * scale[None] + shift[None]
            yn = jnp.where(yn >= 0.0, yn, 0.2 * yn)
            # conv3 (7x7 valid, 1 output channel) as multiply + reduce on the
            # VPU; invalid rows carry zero weights so no masking is needed.
            red = jnp.sum(yn * w3_ref[...][None], axis=1)            # (B, C2)
            logits = jnp.sum(red, axis=1, keepdims=True)             # (B, 1)
            sig = 1.0 / (1.0 + jnp.exp(-logits))
            o_ref[...] = jnp.broadcast_to(sig, o_ref.shape)          # lane-dense

    return kernel


# ---------------------------------------------------------------------------
# Plain-JAX glue: tiny, image-sized preprocessing + weight re-layout
# ---------------------------------------------------------------------------
def _conv1_patches(images):
    """(B,1,28,28) -> (B, 384, 16) bf16 conv1 im2col rows in parity-slab order."""
    B = images.shape[0]
    img = images[:, 0]
    xp = jnp.pad(img, ((0, 0), (1, 1), (1, 1)))                       # (B,30,30)
    taps = [xp[:, i:i + 28:2, j:j + 28:2] for i in range(4) for j in range(4)]
    pat = jnp.stack(taps, axis=-1)                                    # (B,14,14,16)
    pat = jnp.pad(pat, ((0, 0), (1, 3), (1, 3), (0, 0)))              # (B,18,18,16)
    pat = pat.reshape(B, 9, 2, 9, 2, 16).transpose(0, 2, 4, 1, 3, 5)  # (B,2,2,9,9,16)
    pat = pat.reshape(B, _N_SLABS, _SLAB_ROWS, 16)
    pat = jnp.pad(pat, ((0, 0), (0, 0), (0, _SLAB_PAD - _SLAB_ROWS), (0, 0)))
    return pat.reshape(B, _ROWS1, 16).astype(jnp.bfloat16)


def _prep_weights(params, n_classes, fmap):
    F, C2 = fmap, 2 * fmap
    # conv1: (F, n_classes, 4, 4) -> per-class (16, F) matrices, tap-major (i, j)
    w1c = jnp.transpose(params["w1"], (1, 2, 3, 0)).reshape(n_classes, 16, F)
    w1c = w1c.astype(jnp.bfloat16)
    # conv2: (2F, F, 4, 4) -> [(a,c) slab, (dp,dq) tap, F, C2] with dr=2dp+a,
    # dc=2dq+c, then flattened to a single fused-K (16F, C2) matrix.
    w2t = jnp.transpose(params["w2"], (2, 3, 1, 0))                   # (dr,dc,F,C2)
    w2t = w2t.reshape(2, 2, 2, 2, F, C2)                              # (dp,a,dq,c,F,C2)
    w2s = jnp.transpose(w2t, (1, 3, 0, 2, 4, 5)).reshape(4, 4, F, C2)
    w2cat = w2s.reshape(16 * F, C2).astype(jnp.bfloat16)
    # conv3: (1, 2F, 7, 7) -> (64, C2) rows t = 9p+q, zeros at invalid rows
    w3t = jnp.transpose(params["w3"][0], (1, 2, 0))                   # (7,7,C2)
    w3p = jnp.pad(w3t, ((0, 2), (0, 2), (0, 0))).reshape(_SLAB_ROWS, C2)
    w3p = w3p[:_ACC_ROWS].astype(jnp.float32)
    gamma = params["gamma"].reshape(1, C2).astype(jnp.float32)
    beta = params["beta"].reshape(1, C2).astype(jnp.float32)
    return w1c, w2cat, w3p, gamma, beta


def init_params(key, cfg: Parameters):
    k1, k2, k3 = jax.random.split(key, 3)
    C, F = cfg.n_classes, cfg.feature_map_size
    w1 = 0.02 * jax.random.normal(k1, (F, C, 4, 4), jnp.float32)
    w2 = 0.02 * jax.random.normal(k2, (2 * F, F, 4, 4), jnp.float32)
    w3 = 0.02 * jax.random.normal(k3, (1, 2 * F, 7, 7), jnp.float32)
    gamma = jnp.ones((2 * F,), jnp.float32)     # BatchNorm2d affine init
    beta = jnp.zeros((2 * F,), jnp.float32)
    return dict(w1=w1, w2=w2, w3=w3, gamma=gamma, beta=beta)


@functools.partial(jax.jit, static_argnames=("n_classes", "fmap"))
def discriminator_forward(images, labels, params, *, n_classes, fmap):
    """images: (B,1,28,28) f32, labels: (B,1) int -> (B,1) f32."""
    B = images.shape[0]
    F, C2 = fmap, 2 * fmap
    lab = labels.reshape(B).astype(jnp.int32)
    p1 = _conv1_patches(images)                                       # (B,384,16) bf16
    w1c, w2cat, w3p, gamma, beta = _prep_weights(params, n_classes, fmap)
    w1g = jnp.take(w1c, lab, axis=0)                                  # (B,16,F) bf16

    # batch tile per grid step
    TB = 16 if B % 16 == 0 else (8 if B % 8 == 0 else B)
    n_steps = B // TB

    grid_spec = pltpu.PrefetchScalarGridSpec(
        num_scalar_prefetch=0,
        grid=(n_steps,),
        in_specs=[
            pl.BlockSpec((TB, _ROWS1, 16), lambda s: (s, 0, 0)),      # conv1 patches
            pl.BlockSpec((TB, 16, F), lambda s: (s, 0, 0)),           # per-sample W1
            pl.BlockSpec((16 * F, C2), lambda s: (0, 0)),             # fused conv2 W
            pl.BlockSpec((_ACC_ROWS, C2), lambda s: (0, 0)),          # conv3 W
            pl.BlockSpec((1, C2), lambda s: (0, 0)),                  # gamma
            pl.BlockSpec((1, C2), lambda s: (0, 0)),                  # beta
        ],
        # lane-dense output block, resident across all steps, written last step
        out_specs=pl.BlockSpec((B, 128), lambda s: (0, 0)),
        scratch_shapes=[
            pltpu.VMEM((TB, _ROWS1, F), jnp.bfloat16),                # y1 (slabs)
            pltpu.VMEM((n_steps, TB * _ACC_ROWS, C2), jnp.float32),   # pre-BN y2
            pltpu.VMEM((8, C2), jnp.float32),                         # BN sum
            pltpu.VMEM((8, C2), jnp.float32),                         # BN sum of sq
        ],
    )
    out = pl.pallas_call(
        _make_disc_kernel(TB, F, C2, B, n_steps),
        out_shape=jax.ShapeDtypeStruct((B, 128), jnp.float32),
        grid_spec=grid_spec,
        compiler_params=pltpu.CompilerParams(
            # batch axis must be 'arbitrary': BN stats / y2 scratch carry state
            # across steps and the output is only written in the final step.
            dimension_semantics=("arbitrary",),
            vmem_limit_bytes=32 * 1024 * 1024,
        ),
    )(p1, w1g, w2cat, w3p, gamma, beta)
    return out[:, :1]


# ---------------------------------------------------------------------------
# Pure-JAX reference (lax.conv based) for a numerical sanity check
# ---------------------------------------------------------------------------
def _ref_forward(images, labels, params, n_classes):
    lab = labels[:, 0]
    onehot = (lab[:, None] == jnp.arange(n_classes)).astype(jnp.float32)
    x = onehot[:, :, None, None] * images

    def conv(x, w, s, p):
        return jax.lax.conv_general_dilated(
            x, w, (s, s), [(p, p), (p, p)],
            dimension_numbers=("NCHW", "OIHW", "NCHW"))

    x = conv(x, params["w1"], 2, 1)
    x = jnp.where(x >= 0, x, 0.2 * x)
    x = conv(x, params["w2"], 2, 1)
    mean = x.mean(axis=(0, 2, 3), keepdims=True)
    var = ((x - mean) ** 2).mean(axis=(0, 2, 3), keepdims=True)
    x = (x - mean) / jnp.sqrt(var + 1e-5)
    x = x * params["gamma"].reshape(1, -1, 1, 1) + params["beta"].reshape(1, -1, 1, 1)
    x = jnp.where(x >= 0, x, 0.2 * x)
    x = conv(x, params["w3"], 1, 0)
    x = jax.nn.sigmoid(x)
    return x[..., 0, 0]


if __name__ == "__main__":
    # small test config; spatial size (28x28) is fixed by the network itself
    cfg = Parameters(n_classes=4, feature_map_size=8)
    B = 2

    key = jax.random.PRNGKey(0)
    k_img, k_lab, k_par = jax.random.split(key, 3)
    images = jax.random.normal(k_img, (B, 1, 28, 28), jnp.float32)
    labels = jax.random.randint(k_lab, (B, 1), 0, cfg.n_classes, jnp.int32)
    params = init_params(k_par, cfg)

    out = discriminator_forward(images, labels, params,
                                n_classes=cfg.n_classes, fmap=cfg.feature_map_size)
    out = jax.block_until_ready(out)
    assert out.shape == (B, 1), out.shape

    ref = _ref_forward(images, labels, params, cfg.n_classes)
    # bf16 matmul inputs (f32 accumulation) -> loosened tolerance vs f32 ref
    assert jnp.allclose(out, ref, rtol=5e-2, atol=2.5e-2), (out, ref)

    print("KERNEL_OK")
</pallas_src>

<mosaic_0001>
module attributes {stable_mosaic.version = 11 : i64} {
  func.func @kernel(%arg0: i32, %arg1: memref<2x384x16xbf16, #tpu.memory_space<vmem>>, %arg2: memref<2x16x8xbf16, #tpu.memory_space<vmem>>, %arg3: memref<128x16xbf16, #tpu.memory_space<vmem>>, %arg4: memref<64x16xf32, #tpu.memory_space<vmem>>, %arg5: memref<1x16xf32, #tpu.memory_space<vmem>>, %arg6: memref<1x16xf32, #tpu.memory_space<vmem>>, %arg7: memref<2x128xf32, #tpu.memory_space<vmem>>, %arg8: memref<2x384x8xbf16, #tpu.memory_space<vmem>>, %arg9: memref<1x128x16xf32, #tpu.memory_space<vmem>>, %arg10: memref<8x16xf32, #tpu.memory_space<vmem>>, %arg11: memref<8x16xf32, #tpu.memory_space<vmem>>) attributes {dimension_semantics = [#tpu.dimension_semantics<arbitrary>], iteration_bounds = array<i64: 1>, scalar_prefetch = 0 : i64, scratch_operands = 4 : i64, tpu.core_type = #tpu.core_type<tc>, window_params = [{transform_indices = @transform_0, window_bounds = array<i64: 2, 384, 16>}, {transform_indices = @transform_1, window_bounds = array<i64: 2, 16, 8>}, {pipeline_mode = #tpu.pipeline_mode<synchronous>, transform_indices = @transform_2, window_bounds = array<i64: 128, 16>}, {pipeline_mode = #tpu.pipeline_mode<synchronous>, transform_indices = @transform_3, window_bounds = array<i64: 64, 16>}, {pipeline_mode = #tpu.pipeline_mode<synchronous>, transform_indices = @transform_4, window_bounds = array<i64: 1, 16>}, {pipeline_mode = #tpu.pipeline_mode<synchronous>, transform_indices = @transform_5, window_bounds = array<i64: 1, 16>}, {pipeline_mode = #tpu.pipeline_mode<synchronous>, transform_indices = @transform_6, window_bounds = array<i64: 2, 128>}]} {
    %c0 = arith.constant 0 : index
    %c0_0 = arith.constant 0 : index
    %c0_1 = arith.constant 0 : index
    %0 = vector.load %arg1[%c0, %c0_0, %c0_1] : memref<2x384x16xbf16, #tpu.memory_space<vmem>>, vector<2x384x16xbf16>
    %c0_2 = arith.constant 0 : index
    %c0_3 = arith.constant 0 : index
    %c0_4 = arith.constant 0 : index
    %1 = vector.load %arg2[%c0_2, %c0_3, %c0_4] : memref<2x16x8xbf16, #tpu.memory_space<vmem>>, vector<2x16x8xbf16>
    "tpu.trace_start"() <{level = 10 : i32, message = "bri,bif->brf"}> : () -> ()
    %cst = arith.constant dense<0.000000e+00> : vector<2x384x8xf32>
    %2 = tpu.matmul %0, %1, %cst {dimension_numbers = #tpu.dot_dimension_numbers<[2], [1], [1], [2], [0, 0, 0, 1, 1, 2], [0], [0]>} : vector<2x384x16xbf16>, vector<2x16x8xbf16>, vector<2x384x8xf32> -> vector<2x384x8xf32>
    %cst_5 = arith.constant 0.000000e+00 : f32
    "tpu.trace_stop"() : () -> ()
    %3 = vector.broadcast %cst_5 : f32 to vector<2x384x8xf32>
    %4 = arith.cmpf oge, %2, %3 : vector<2x384x8xf32>
    %cst_6 = arith.constant 2.000000e-01 : f32
    %5 = vector.broadcast %cst_6 : f32 to vector<2x384x8xf32>
    %6 = arith.mulf %5, %2 : vector<2x384x8xf32>
    %7 = arith.select %4, %2, %6 : vector<2x384x8xi1>, vector<2x384x8xf32>
    %8 = arith.truncf %7 : vector<2x384x8xf32> to vector<2x384x8xbf16>
    %c0_7 = arith.constant 0 : index
    %c0_8 = arith.constant 0 : index
    %c0_9 = arith.constant 0 : index
    %9 = vector.load %arg8[%c0_7, %c0_8, %c0_9] : memref<2x384x8xbf16, #tpu.memory_space<vmem>>, vector<2x384x8xbf16>
    tpu.vector_store %arg8[%c0_7, %c0_8, %c0_9], %8 {strides = array<i32>} : memref<2x384x8xbf16, #tpu.memory_space<vmem>>, vector<2x384x8xbf16>,
    %c0_10 = arith.constant 0 : index
    %c0_11 = arith.constant 0 : index
    %c0_12 = arith.constant 0 : index
    %10 = vector.load %arg8[%c0_10, %c0_11, %c0_12] : memref<2x384x8xbf16, #tpu.memory_space<vmem>>, vector<2x64x8xbf16>
    %c0_13 = arith.constant 0 : index
    %c1 = arith.constant 1 : index
    %c0_14 = arith.constant 0 : index
    %11 = vector.load %arg8[%c0_13, %c1, %c0_14] : memref<2x384x8xbf16, #tpu.memory_space<vmem>>, vector<2x64x8xbf16>
    %c0_15 = arith.constant 0 : index
    %c9 = arith.constant 9 : index
    %c0_16 = arith.constant 0 : index
    %12 = vector.load %arg8[%c0_15, %c9, %c0_16] : memref<2x384x8xbf16, #tpu.memory_space<vmem>>, vector<2x64x8xbf16>
    %c0_17 = arith.constant 0 : index
    %c10 = arith.constant 10 : index
    %c0_18 = arith.constant 0 : index
    %13 = vector.load %arg8[%c0_17, %c10, %c0_18] : memref<2x384x8xbf16, #tpu.memory_space<vmem>>, vector<2x64x8xbf16>
    %c0_19 = arith.constant 0 : index
    %c96 = arith.constant 96 : index
    %c0_20 = arith.constant 0 : index
    %14 = vector.load %arg8[%c0_19, %c96, %c0_20] : memref<2x384x8xbf16, #tpu.memory_space<vmem>>, vector<2x64x8xbf16>
    %c0_21 = arith.constant 0 : index
    %c97 = arith.constant 97 : index
    %c0_22 = arith.constant 0 : index
    %15 = vector.load %arg8[%c0_21, %c97, %c0_22] : memref<2x384x8xbf16, #tpu.memory_space<vmem>>, vector<2x64x8xbf16>
    %c0_23 = arith.constant 0 : index
    %c105 = arith.constant 105 : index
    %c0_24 = arith.constant 0 : index
    %16 = vector.load %arg8[%c0_23, %c105, %c0_24] : memref<2x384x8xbf16, #tpu.memory_space<vmem>>, vector<2x64x8xbf16>
    %c0_25 = arith.constant 0 : index
    %c106 = arith.constant 106 : index
    %c0_26 = arith.constant 0 : index
    %17 = vector.load %arg8[%c0_25, %c106, %c0_26] : memref<2x384x8xbf16, #tpu.memory_space<vmem>>, vector<2x64x8xbf16>
    %c0_27 = arith.constant 0 : index
    %c192 = arith.constant 192 : index
    %c0_28 = arith.constant 0 : index
    %18 = vector.load %arg8[%c0_27, %c192, %c0_28] : memref<2x384x8xbf16, #tpu.memory_space<vmem>>, vector<2x64x8xbf16>
    %c0_29 = arith.constant 0 : index
    %c193 = arith.constant 193 : index
    %c0_30 = arith.constant 0 : index
    %19 = vector.load %arg8[%c0_29, %c193, %c0_30] : memref<2x384x8xbf16, #tpu.memory_space<vmem>>, vector<2x64x8xbf16>
    %c0_31 = arith.constant 0 : index
    %c201 = arith.constant 201 : index
    %c0_32 = arith.constant 0 : index
    %20 = vector.load %arg8[%c0_31, %c201, %c0_32] : memref<2x384x8xbf16, #tpu.memory_space<vmem>>, vector<2x64x8xbf16>
    %c0_33 = arith.constant 0 : index
    %c202 = arith.constant 202 : index
    %c0_34 = arith.constant 0 : index
    %21 = vector.load %arg8[%c0_33, %c202, %c0_34] : memref<2x384x8xbf16, #tpu.memory_space<vmem>>, vector<2x64x8xbf16>
    %c0_35 = arith.constant 0 : index
    %c288 = arith.constant 288 : index
    %c0_36 = arith.constant 0 : index
    %22 = vector.load %arg8[%c0_35, %c288, %c0_36] : memref<2x384x8xbf16, #tpu.memory_space<vmem>>, vector<2x64x8xbf16>
    %c0_37 = arith.constant 0 : index
    %c289 = arith.constant 289 : index
    %c0_38 = arith.constant 0 : index
    %23 = vector.load %arg8[%c0_37, %c289, %c0_38] : memref<2x384x8xbf16, #tpu.memory_space<vmem>>, vector<2x64x8xbf16>
    %c0_39 = arith.constant 0 : index
    %c297 = arith.constant 297 : index
    %c0_40 = arith.constant 0 : index
    %24 = vector.load %arg8[%c0_39, %c297, %c0_40] : memref<2x384x8xbf16, #tpu.memory_space<vmem>>, vector<2x64x8xbf16>
    %c0_41 = arith.constant 0 : index
    %c298 = arith.constant 298 : index
    %c0_42 = arith.constant 0 : index
    %25 = vector.load %arg8[%c0_41, %c298, %c0_42] : memref<2x384x8xbf16, #tpu.memory_space<vmem>>, vector<2x64x8xbf16>
    %26 = tpu.concatenate %10, %11, %12, %13, %14, %15, %16, %17, %18, %19, %20, %21, %22, %23, %24, %25 in 2 : vector<2x64x8xbf16>, vector<2x64x8xbf16>, vector<2x64x8xbf16>, vector<2x64x8xbf16>, vector<2x64x8xbf16>, vector<2x64x8xbf16>, vector<2x64x8xbf16>, vector<2x64x8xbf16>, vector<2x64x8xbf16>, vector<2x64x8xbf16>, vector<2x64x8xbf16>, vector<2x64x8xbf16>, vector<2x64x8xbf16>, vector<2x64x8xbf16>, vector<2x64x8xbf16>, vector<2x64x8xbf16> -> vector<2x64x128xbf16>
    %27 = vector.shape_cast %26 : vector<2x64x128xbf16> to vector<128x128xbf16>
    %c0_43 = arith.constant 0 : index
    %c0_44 = arith.constant 0 : index
    %28 = vector.load %arg3[%c0_43, %c0_44] : memref<128x16xbf16, #tpu.memory_space<vmem>>, vector<128x16xbf16>
    %cst_45 = arith.constant dense<0.000000e+00> : vector<128x16xf32>
    %29 = tpu.matmul %27, %28, %cst_45 {dimension_numbers = #tpu.dot_dimension_numbers<[1], [0], [0], [1], [0, 0, 1, 1], [], []>} : vector<128x128xbf16>, vector<128x16xbf16>, vector<128x16xf32> -> vector<128x16xf32>
    %30 = arith.index_cast %arg0 : i32 to index
    %c0_46 = arith.constant 0 : index
    %c0_47 = arith.constant 0 : index
    %31 = vector.load %arg9[%30, %c0_46, %c0_47] : memref<1x128x16xf32, #tpu.memory_space<vmem>>, vector<1x128x16xf32>
    %32 = vector.shape_cast %31 : vector<1x128x16xf32> to vector<128x16xf32>
    %33 = vector.shape_cast %29 : vector<128x16xf32> to vector<1x128x16xf32>
    tpu.vector_store %arg9[%30, %c0_46, %c0_47], %33 {strides = array<i32>} : memref<1x128x16xf32, #tpu.memory_space<vmem>>, vector<1x128x16xf32>,
    %c0_i32 = arith.constant 0 : i32
    %34 = arith.cmpi eq, %arg0, %c0_i32 : i32
    %35 = arith.extui %34 : i1 to i32
    %c0_i32_48 = arith.constant 0 : i32
    %36 = arith.cmpi ne, %35, %c0_i32_48 : i32
    scf.if %36 {
      %cst_65 = arith.constant 0.000000e+00 : f32
      %95 = vector.broadcast %cst_65 : f32 to vector<8x16xf32>
      %c0_66 = arith.constant 0 : index
      %c0_67 = arith.constant 0 : index
      %96 = vector.load %arg10[%c0_66, %c0_67] : memref<8x16xf32, #tpu.memory_space<vmem>>, vector<8x16xf32>
      tpu.vector_store %arg10[%c0_66, %c0_67], %95 {strides = array<i32>} : memref<8x16xf32, #tpu.memory_space<vmem>>, vector<8x16xf32>,
      %cst_68 = arith.constant 0.000000e+00 : f32
      %97 = vector.broadcast %cst_68 : f32 to vector<8x16xf32>
      %c0_69 = arith.constant 0 : index
      %c0_70 = arith.constant 0 : index
      %98 = vector.load %arg11[%c0_69, %c0_70] : memref<8x16xf32, #tpu.memory_space<vmem>>, vector<8x16xf32>
      tpu.vector_store %arg11[%c0_69, %c0_70], %97 {strides = array<i32>} : memref<8x16xf32, #tpu.memory_space<vmem>>, vector<8x16xf32>,
    } else {
    }
    %37 = tpu.iota {dimensions = array<i32: 0>} : vector<128x1xi32>
    %c63_i32 = arith.constant 63 : i32
    %38 = vector.broadcast %c63_i32 : i32 to vector<128x1xi32>
    %39 = arith.andi %37, %38 : vector<128x1xi32>
    %c0_i32_49 = arith.constant 0 : i32
    %40 = vector.broadcast %c0_i32_49 : i32 to vector<128x1xi32>
    %c9_i32 = arith.constant 9 : i32
    %41 = vector.broadcast %c9_i32 : i32 to vector<128x1xi32>
    %42 = arith.cmpi sge, %39, %41 : vector<128x1xi32>
    %43 = arith.extui %42 : vector<128x1xi1> to vector<128x1xi32>
    %44 = arith.addi %40, %43 : vector<128x1xi32>
    %c18_i32 = arith.constant 18 : i32
    %45 = vector.broadcast %c18_i32 : i32 to vector<128x1xi32>
    %46 = arith.cmpi sge, %39, %45 : vector<128x1xi32>
    %47 = arith.extui %46 : vector<128x1xi1> to vector<128x1xi32>
    %48 = arith.addi %44, %47 : vector<128x1xi32>
    %c27_i32 = arith.constant 27 : i32
    %49 = vector.broadcast %c27_i32 : i32 to vector<128x1xi32>
    %50 = arith.cmpi sge, %39, %49 : vector<128x1xi32>
    %51 = arith.extui %50 : vector<128x1xi1> to vector<128x1xi32>
    %52 = arith.addi %48, %51 : vector<128x1xi32>
    %c36_i32 = arith.constant 36 : i32
    %53 = vector.broadcast %c36_i32 : i32 to vector<128x1xi32>
    %54 = arith.cmpi sge, %39, %53 : vector<128x1xi32>
    %55 = arith.extui %54 : vector<128x1xi1> to vector<128x1xi32>
    %56 = arith.addi %52, %55 : vector<128x1xi32>
    %c45_i32 = arith.constant 45 : i32
    %57 = vector.broadcast %c45_i32 : i32 to vector<128x1xi32>
    %58 = arith.cmpi sge, %39, %57 : vector<128x1xi32>
    %59 = arith.extui %58 : vector<128x1xi1> to vector<128x1xi32>
    %60 = arith.addi %56, %59 : vector<128x1xi32>
    %c54_i32 = arith.constant 54 : i32
    %61 = vector.broadcast %c54_i32 : i32 to vector<128x1xi32>
    %62 = arith.cmpi sge, %39, %61 : vector<128x1xi32>
    %63 = arith.extui %62 : vector<128x1xi1> to vector<128x1xi32>
    %64 = arith.addi %60, %63 : vector<128x1xi32>
    %c63_i32_50 = arith.constant 63 : i32
    %65 = vector.broadcast %c63_i32_50 : i32 to vector<128x1xi32>
    %66 = arith.cmpi sge, %39, %65 : vector<128x1xi32>
    %67 = arith.extui %66 : vector<128x1xi1> to vector<128x1xi32>
    %68 = arith.addi %64, %67 : vector<128x1xi32>
    %c9_i32_51 = arith.constant 9 : i32
    %69 = vector.broadcast %c9_i32_51 : i32 to vector<128x1xi32>
    %70 = arith.muli %69, %68 : vector<128x1xi32>
    %71 = arith.subi %39, %70 : vector<128x1xi32>
    %c7_i32 = arith.constant 7 : i32
    %72 = vector.broadcast %c7_i32 : i32 to vector<128x1xi32>
    %73 = arith.cmpi slt, %68, %72 : vector<128x1xi32>
    %c7_i32_52 = arith.constant 7 : i32
    %74 = vector.broadcast %c7_i32_52 : i32 to vector<128x1xi32>
    %75 = arith.cmpi slt, %71, %74 : vector<128x1xi32>
    %76 = arith.andi %73, %75 : vector<128x1xi1>
    %77 = arith.extui %76 : vector<128x1xi1> to vector<128x1xi32>
    %78 = arith.sitofp %77 : vector<128x1xi32> to vector<128x1xf32>
    %79 = vector.broadcast %78 : vector<128x1xf32> to vector<128x16xf32>
    %80 = arith.mulf %29, %79 : vector<128x16xf32>
    %c0_53 = arith.constant 0 : index
    %c0_54 = arith.constant 0 : index
    %81 = vector.load %arg10[%c0_53, %c0_54] : memref<8x16xf32, #tpu.memory_space<vmem>>, vector<8x16xf32>
    %82 = vector.shape_cast %80 : vector<128x16xf32> to vector<16x8x16xf32>
    %cst_55 = arith.constant dense<0.000000e+00> : vector<8x16xf32>
    %83 = vector.multi_reduction <add>, %82, %cst_55 [0] : vector<16x8x16xf32> to vector<8x16xf32>
    %84 = arith.addf %81, %83 : vector<8x16xf32>
    %c0_56 = arith.constant 0 : index
    %c0_57 = arith.constant 0 : index
    %85 = vector.load %arg10[%c0_56, %c0_57] : memref<8x16xf32, #tpu.memory_space<vmem>>, vector<8x16xf32>
    tpu.vector_store %arg10[%c0_56, %c0_57], %84 {strides = array<i32>} : memref<8x16xf32, #tpu.memory_space<vmem>>, vector<8x16xf32>,
    %c0_58 = arith.constant 0 : index
    %c0_59 = arith.constant 0 : index
    %86 = vector.load %arg11[%c0_58, %c0_59] : memref<8x16xf32, #tpu.memory_space<vmem>>, vector<8x16xf32>
    %87 = arith.mulf %80, %29 : vector<128x16xf32>
    %88 = vector.shape_cast %87 : vector<128x16xf32> to vector<16x8x16xf32>
    %cst_60 = arith.constant dense<0.000000e+00> : vector<8x16xf32>
    %89 = vector.multi_reduction <add>, %88, %cst_60 [0] : vector<16x8x16xf32> to vector<8x16xf32>
    %90 = arith.addf %86, %89 : vector<8x16xf32>
    %c0_61 = arith.constant 0 : index
    %c0_62 = arith.constant 0 : index
    %91 = vector.load %arg11[%c0_61, %c0_62] : memref<8x16xf32, #tpu.memory_space<vmem>>, vector<8x16xf32>
    tpu.vector_store %arg11[%c0_61, %c0_62], %90 {strides = array<i32>} : memref<8x16xf32, #tpu.memory_space<vmem>>, vector<8x16xf32>,
    %c0_i32_63 = arith.constant 0 : i32
    %92 = arith.cmpi eq, %arg0, %c0_i32_63 : i32
    %93 = arith.extui %92 : i1 to i32
    %c0_i32_64 = arith.constant 0 : i32
    %94 = arith.cmpi ne, %93, %c0_i32_64 : i32
    scf.if %94 {
      %c0_65 = arith.constant 0 : index
      %c0_66 = arith.constant 0 : index
      %95 = vector.load %arg10[%c0_65, %c0_66] : memref<8x16xf32, #tpu.memory_space<vmem>>, vector<8x16xf32>
      %cst_67 = arith.constant dense<0.000000e+00> : vector<16xf32>
      %96 = vector.multi_reduction <add>, %95, %cst_67 [0] : vector<8x16xf32> to vector<16xf32>
      %97 = vector.shape_cast %96 : vector<16xf32> to vector<1x16xf32>
      %c0_68 = arith.constant 0 : index
      %c0_69 = arith.constant 0 : index
      %98 = vector.load %arg11[%c0_68, %c0_69] : memref<8x16xf32, #tpu.memory_space<vmem>>, vector<8x16xf32>
      %cst_70 = arith.constant dense<0.000000e+00> : vector<16xf32>
      %99 = vector.multi_reduction <add>, %98, %cst_70 [0] : vector<8x16xf32> to vector<16xf32>
      %100 = vector.shape_cast %99 : vector<16xf32> to vector<1x16xf32>
      %cst_71 = arith.constant 9.800000e+01 : f32
      %101 = vector.broadcast %cst_71 : f32 to vector<1x16xf32>
      %102 = arith.divf %97, %101 : vector<1x16xf32>
      %cst_72 = arith.constant 9.800000e+01 : f32
      %103 = vector.broadcast %cst_72 : f32 to vector<1x16xf32>
      %104 = arith.divf %100, %103 : vector<1x16xf32>
      %105 = arith.mulf %102, %102 : vector<1x16xf32>
      %106 = arith.subf %104, %105 : vector<1x16xf32>
      %cst_73 = arith.constant 9.99999974E-6 : f32
      %107 = vector.broadcast %cst_73 : f32 to vector<1x16xf32>
      %108 = arith.addf %106, %107 : vector<1x16xf32>
      %109 = math.rsqrt %108 : vector<1x16xf32>
      %c0_74 = arith.constant 0 : index
      %c0_75 = arith.constant 0 : index
      %110 = vector.load %arg5[%c0_74, %c0_75] : memref<1x16xf32, #tpu.memory_space<vmem>>, vector<1x16xf32>
      %111 = arith.mulf %109, %110 : vector<1x16xf32>
      %c0_76 = arith.constant 0 : index
      %c0_77 = arith.constant 0 : index
      %112 = vector.load %arg6[%c0_76, %c0_77] : memref<1x16xf32, #tpu.memory_space<vmem>>, vector<1x16xf32>
      %113 = arith.mulf %102, %111 : vector<1x16xf32>
      %114 = arith.subf %112, %113 : vector<1x16xf32>
      %c0_78 = arith.constant 0 : index
      %c0_79 = arith.constant 0 : index
      %c0_80 = arith.constant 0 : index
      %115 = vector.load %arg9[%c0_78, %c0_79, %c0_80] : memref<1x128x16xf32, #tpu.memory_space<vmem>>, vector<1x128x16xf32>
      %116 = vector.shape_cast %115 : vector<1x128x16xf32> to vector<2x64x16xf32>
      %117 = vector.shape_cast %111 : vector<1x16xf32> to vector<1x1x16xf32>
      %118 = vector.broadcast %117 : vector<1x1x16xf32> to vector<2x64x16xf32>
      %119 = arith.mulf %116, %118 : vector<2x64x16xf32>
      %120 = vector.shape_cast %114 : vector<1x16xf32> to vector<1x1x16xf32>
      %121 = vector.broadcast %120 : vector<1x1x16xf32> to vector<2x64x16xf32>
      %122 = arith.addf %119, %121 : vector<2x64x16xf32>
      %cst_81 = arith.constant 0.000000e+00 : f32
      %123 = vector.broadcast %cst_81 : f32 to vector<2x64x16xf32>
      %124 = arith.cmpf oge, %122, %123 : vector<2x64x16xf32>
      %cst_82 = arith.constant 2.000000e-01 : f32
      %125 = vector.broadcast %cst_82 : f32 to vector<2x64x16xf32>
      %126 = arith.mulf %125, %122 : vector<2x64x16xf32>
      %127 = arith.select %124, %122, %126 : vector<2x64x16xi1>, vector<2x64x16xf32>
      %c0_83 = arith.constant 0 : index
      %c0_84 = arith.constant 0 : index
      %128 = vector.load %arg4[%c0_83, %c0_84] : memref<64x16xf32, #tpu.memory_space<vmem>>, vector<64x16xf32>
      %129 = vector.shape_cast %128 : vector<64x16xf32> to vector<1x64x16xf32>
      %130 = vector.broadcast %129 : vector<1x64x16xf32> to vector<2x64x16xf32>
      %131 = arith.mulf %127, %130 : vector<2x64x16xf32>
      %cst_85 = arith.constant dense<0.000000e+00> : vector<2x16xf32>
      %132 = vector.multi_reduction <add>, %131, %cst_85 [1] : vector<2x64x16xf32> to vector<2x16xf32>
      %cst_86 = arith.constant dense<0.000000e+00> : vector<2xf32>
      %133 = vector.multi_reduction <add>, %132, %cst_86 [1] : vector<2x16xf32> to vector<2xf32>
      %134 = vector.shape_cast %133 : vector<2xf32> to vector<2x1xf32>
      %cst_87 = arith.constant 0.000000e+00 : f32
      %135 = vector.broadcast %cst_87 : f32 to vector<2x1xf32>
      %136 = arith.subf %135, %134 : vector<2x1xf32>
      %137 = math.exp %136 : vector<2x1xf32>
      %cst_88 = arith.constant 1.000000e+00 : f32
      %138 = vector.broadcast %cst_88 : f32 to vector<2x1xf32>
      %139 = arith.addf %138, %137 : vector<2x1xf32>
      %cst_89 = arith.constant 1.000000e+00 : f32
      %140 = vector.broadcast %cst_89 : f32 to vector<2x1xf32>
      %141 = arith.divf %140, %139 : vector<2x1xf32>
      %142 = vector.shape_cast %141 : vector<2x1xf32> to vector<2x1xf32>
      %143 = vector.broadcast %142 : vector<2x1xf32> to vector<2x128xf32>
      %c0_90 = arith.constant 0 : index
      %c0_91 = arith.constant 0 : index
      %144 = vector.load %arg7[%c0_90, %c0_91] : memref<2x128xf32, #tpu.memory_space<vmem>>, vector<2x128xf32>
      tpu.vector_store %arg7[%c0_90, %c0_91], %143 {strides = array<i32>} : memref<2x128xf32, #tpu.memory_space<vmem>>, vector<2x128xf32>,
    } else {
    }
    return
  }
  func.func @transform_0(%arg0: i32) -> (i32, i32, i32) {
    %c0_i32 = arith.constant 0 : i32
    %c0_i32_0 = arith.constant 0 : i32
    %c0_i32_1 = arith.constant 0 : i32
    return %arg0, %c0_i32, %c0_i32_0 : i32, i32, i32
  }
  func.func @transform_1(%arg0: i32) -> (i32, i32, i32) {
    %c0_i32 = arith.constant 0 : i32
    %c0_i32_0 = arith.constant 0 : i32
    %c0_i32_1 = arith.constant 0 : i32
    return %arg0, %c0_i32, %c0_i32_0 : i32, i32, i32
  }
  func.func @transform_2(%arg0: i32) -> (i32, i32) {
    %c0_i32 = arith.constant 0 : i32
    %c0_i32_0 = arith.constant 0 : i32
    %c0_i32_1 = arith.constant 0 : i32
    return %c0_i32, %c0_i32_0 : i32, i32
  }
  func.func @transform_3(%arg0: i32) -> (i32, i32) {
    %c0_i32 = arith.constant 0 : i32
    %c0_i32_0 = arith.constant 0 : i32
    %c0_i32_1 = arith.constant 0 : i32
    return %c0_i32, %c0_i32_0 : i32, i32
  }
  func.func @transform_4(%arg0: i32) -> (i32, i32) {
    %c0_i32 = arith.constant 0 : i32
    %c0_i32_0 = arith.constant 0 : i32
    %c0_i32_1 = arith.constant 0 : i32
    return %c0_i32, %c0_i32_0 : i32, i32
  }
  func.func @transform_5(%arg0: i32) -> (i32, i32) {
    %c0_i32 = arith.constant 0 : i32
    %c0_i32_0 = arith.constant 0 : i32
    %c0_i32_1 = arith.constant 0 : i32
    return %c0_i32, %c0_i32_0 : i32, i32
  }
  func.func @transform_6(%arg0: i32) -> (i32, i32) {
    %c0_i32 = arith.constant 0 : i32
    %c0_i32_0 = arith.constant 0 : i32
    %c0_i32_1 = arith.constant 0 : i32
    return %c0_i32, %c0_i32_0 : i32, i32
  }
}

</mosaic_0001>

<llo_original>
// kernel: discriminator_forward.1
$region0: #{discriminator_forward.1}
  #allocation0 [shape = 'u32[]', space=smem, size = 0x4, offset = 0x4, fixed_abs, tag = 'smem constant byte address 0x4 - core index']
  #allocation1 [shape = 'u32[144,128]{1,0:T(1,128)}', space=vmem, size = 0x12000, scoped, tag = 'internal scratch']
  #allocation2 [shape = 'bf16[2,384,8]{2,1,0:T(16,128)(2,1)}', space=vmem, size = 0x30000, scoped, tag = 'scratch operand']
  #allocation3 [shape = 'f32[1,128,16]{2,1,0:T(8,128)}', space=vmem, size = 0x10000, scoped, tag = 'scratch operand']
  #allocation4 [shape = 'f32[8,16]{1,0:T(8,128)}', space=vmem, size = 0x1000, scoped, tag = 'scratch operand']
  #allocation5 [shape = 'f32[8,16]{1,0:T(8,128)}', space=vmem, size = 0x1000, scoped, tag = 'scratch operand']
  %s0 = inlined_call_operand.vmem [shape: bf16[2,384,16], index: 0, kind: input, shape index: {}]
  %s1 = inlined_call_operand.vmem [shape: bf16[2,16,8], index: 1, kind: input, shape index: {}]
  %s2 = inlined_call_operand.vmem [shape: bf16[128,16], index: 2, kind: input, shape index: {}]
  %s3 = inlined_call_operand.vmem [shape: f32[64,16], index: 3, kind: input, shape index: {}]
  %s4 = inlined_call_operand.vmem [shape: f32[1,16], index: 4, kind: input, shape index: {}]
  %s5 = inlined_call_operand.vmem [shape: f32[1,16], index: 5, kind: input, shape index: {}]
  %s6 = inlined_call_operand.vmem [shape: f32[2,128], index: 6, kind: output, shape index: {}]
  %s7 = sld [smem:[#allocation0]]
  $region42: #{discriminator_forward.1} parent=0
    _
  %s9 = ssub.s32 1, %s7
  %s10 = scalar_select 0, %s9, %s7
  // Predicated region
  $region2: #{discriminator_forward.1} parent=0 // pred_check
    _
  $region3: #{discriminator_forward.1} parent=0 // pred_check_branch
    %12 = sbr.rel (0) target = $region5
  $region4: #{discriminator_forward.1} parent=0 // pred_region
    _
  $region5: #{discriminator_forward.1} parent=0 // pred_fallthru
    _
  // Predicated region
  $region6: #{discriminator_forward.1} parent=0 // pred_check
    _
  $region7: #{discriminator_forward.1} parent=0 // pred_check_branch
    %14 = sbr.rel (0) target = $region9
  $region8: #{discriminator_forward.1} parent=0 // pred_region
    _
  $region9: #{discriminator_forward.1} parent=0 // pred_fallthru
    _
  // Predicated region
  $region10: #{discriminator_forward.1} parent=0 // pred_check
    _
  $region11: #{discriminator_forward.1} parent=0 // pred_check_branch
    %16 = sbr.rel (0) target = $region13
  $region12: #{discriminator_forward.1} parent=0 // pred_region
    _
  $region13: #{discriminator_forward.1} parent=0 // pred_fallthru
    _
  // Predicated region
  $region14: #{discriminator_forward.1} parent=0 // pred_check
    _
  $region15: #{discriminator_forward.1} parent=0 // pred_check_branch
    %18 = sbr.rel (0) target = $region17
  $region16: #{discriminator_forward.1} parent=0 // pred_region
    _
  $region17: #{discriminator_forward.1} parent=0 // pred_fallthru
    _
  // Predicated region
  $region18: #{discriminator_forward.1} parent=0 // pred_check
    _
  $region19: #{discriminator_forward.1} parent=0 // pred_check_branch
    %20 = sbr.rel (0) target = $region21
  $region20: #{discriminator_forward.1} parent=0 // pred_region
    _
  $region21: #{discriminator_forward.1} parent=0 // pred_fallthru
    _
  // Predicated region
  $region22: #{discriminator_forward.1} parent=0 // pred_check
    _
  $region23: #{discriminator_forward.1} parent=0 // pred_check_branch
    %22 = sbr.rel (0) target = $region25
  $region24: #{discriminator_forward.1} parent=0 // pred_region
    _
  $region25: #{discriminator_forward.1} parent=0 // pred_fallthru
    _
  %v24 = vld [vmem:[%s0] sm:$0xf]
  %v25 = vld [vmem:[%s0 + $0x4] sm:$0xf]
  %v26 = vld [vmem:[%s0 + $0x8] sm:$0xf]
  %v27 = vld [vmem:[%s0 + $0xc] sm:$0xf]
  %v28 = vld [vmem:[%s0 + $0x10] sm:$0xf]
  %v29 = vld [vmem:[%s0 + $0x14] sm:$0xf]
  %v30 = vld [vmem:[%s0 + $0x18] sm:$0xf]
  %v31 = vld [vmem:[%s0 + $0x1c] sm:$0xf]
  %v32 = vld [vmem:[%s0 + $0x20] sm:$0xf]
  %v33 = vld [vmem:[%s0 + $0x24] sm:$0xf]
  %v34 = vld [vmem:[%s0 + $0x28] sm:$0xf]
  %v35 = vld [vmem:[%s0 + $0x2c] sm:$0xf]
  %v36 = vld [vmem:[%s0 + $0x30] sm:$0xf]
  %v37 = vld [vmem:[%s0 + $0x34] sm:$0xf]
  %v38 = vld [vmem:[%s0 + $0x38] sm:$0xf]
  %v39 = vld [vmem:[%s0 + $0x3c] sm:$0xf]
  %v40 = vld [vmem:[%s0 + $0x40] sm:$0xf]
  %v41 = vld [vmem:[%s0 + $0x44] sm:$0xf]
  %v42 = vld [vmem:[%s0 + $0x48] sm:$0xf]
  %v43 = vld [vmem:[%s0 + $0x4c] sm:$0xf]
  %v44 = vld [vmem:[%s0 + $0x50] sm:$0xf]
  %v45 = vld [vmem:[%s0 + $0x54] sm:$0xf]
  %v46 = vld [vmem:[%s0 + $0x58] sm:$0xf]
  %v47 = vld [vmem:[%s0 + $0x5c] sm:$0xf]
  %v48 = vld [vmem:[%s0 + $0x60] sm:$0xf]
  %v49 = vld [vmem:[%s0 + $0x64] sm:$0xf]
  %v50 = vld [vmem:[%s0 + $0x68] sm:$0xf]
  %v51 = vld [vmem:[%s0 + $0x6c] sm:$0xf]
  %v52 = vld [vmem:[%s0 + $0x70] sm:$0xf]
  %v53 = vld [vmem:[%s0 + $0x74] sm:$0xf]
  %v54 = vld [vmem:[%s0 + $0x78] sm:$0xf]
  %v55 = vld [vmem:[%s0 + $0x7c] sm:$0xf]
  %v56 = vld [vmem:[%s0 + $0x80] sm:$0xf]
  %v57 = vld [vmem:[%s0 + $0x84] sm:$0xf]
  %v58 = vld [vmem:[%s0 + $0x88] sm:$0xf]
  %v59 = vld [vmem:[%s0 + $0x8c] sm:$0xf]
  %v60 = vld [vmem:[%s0 + $0x90] sm:$0xf]
  %v61 = vld [vmem:[%s0 + $0x94] sm:$0xf]
  %v62 = vld [vmem:[%s0 + $0x98] sm:$0xf]
  %v63 = vld [vmem:[%s0 + $0x9c] sm:$0xf]
  %v64 = vld [vmem:[%s0 + $0xa0] sm:$0xf]
  %v65 = vld [vmem:[%s0 + $0xa4] sm:$0xf]
  %v66 = vld [vmem:[%s0 + $0xa8] sm:$0xf]
  %v67 = vld [vmem:[%s0 + $0xac] sm:$0xf]
  %v68 = vld [vmem:[%s0 + $0xb0] sm:$0xf]
  %v69 = vld [vmem:[%s0 + $0xb4] sm:$0xf]
  %v70 = vld [vmem:[%s0 + $0xb8] sm:$0xf]
  %v71 = vld [vmem:[%s0 + $0xbc] sm:$0xf]
  %v72 = vld [vmem:[%s0 + $0xc0] sm:$0xf]
  %v73 = vld [vmem:[%s0 + $0xc4] sm:$0xf]
  %v74 = vld [vmem:[%s0 + $0xc8] sm:$0xf]
  %v75 = vld [vmem:[%s0 + $0xcc] sm:$0xf]
  %v76 = vld [vmem:[%s0 + $0xd0] sm:$0xf]
  %v77 = vld [vmem:[%s0 + $0xd4] sm:$0xf]
  %v78 = vld [vmem:[%s0 + $0xd8] sm:$0xf]
  %v79 = vld [vmem:[%s0 + $0xdc] sm:$0xf]
  %v80 = vld [vmem:[%s0 + $0xe0] sm:$0xf]
  %v81 = vld [vmem:[%s0 + $0xe4] sm:$0xf]
  %v82 = vld [vmem:[%s0 + $0xe8] sm:$0xf]
  %v83 = vld [vmem:[%s0 + $0xec] sm:$0xf]
  %v84 = vld [vmem:[%s0 + $0xf0] sm:$0xf]
  %v85 = vld [vmem:[%s0 + $0xf4] sm:$0xf]
  %v86 = vld [vmem:[%s0 + $0xf8] sm:$0xf]
  %v87 = vld [vmem:[%s0 + $0xfc] sm:$0xf]
  %v88 = vld [vmem:[%s0 + $0x100] sm:$0xf]
  %v89 = vld [vmem:[%s0 + $0x104] sm:$0xf]
  %v90 = vld [vmem:[%s0 + $0x108] sm:$0xf]
  %v91 = vld [vmem:[%s0 + $0x10c] sm:$0xf]
  %v92 = vld [vmem:[%s0 + $0x110] sm:$0xf]
  %v93 = vld [vmem:[%s0 + $0x114] sm:$0xf]
  %v94 = vld [vmem:[%s0 + $0x118] sm:$0xf]
  %v95 = vld [vmem:[%s0 + $0x11c] sm:$0xf]
  %v96 = vld [vmem:[%s0 + $0x120] sm:$0xf]
  %v97 = vld [vmem:[%s0 + $0x124] sm:$0xf]
  %v98 = vld [vmem:[%s0 + $0x128] sm:$0xf]
  %v99 = vld [vmem:[%s0 + $0x12c] sm:$0xf]
  %v100 = vld [vmem:[%s0 + $0x130] sm:$0xf]
  %v101 = vld [vmem:[%s0 + $0x134] sm:$0xf]
  %v102 = vld [vmem:[%s0 + $0x138] sm:$0xf]
  %v103 = vld [vmem:[%s0 + $0x13c] sm:$0xf]
  %v104 = vld [vmem:[%s0 + $0x140] sm:$0xf]
  %v105 = vld [vmem:[%s0 + $0x144] sm:$0xf]
  %v106 = vld [vmem:[%s0 + $0x148] sm:$0xf]
  %v107 = vld [vmem:[%s0 + $0x14c] sm:$0xf]
  %v108 = vld [vmem:[%s0 + $0x150] sm:$0xf]
  %v109 = vld [vmem:[%s0 + $0x154] sm:$0xf]
  %v110 = vld [vmem:[%s0 + $0x158] sm:$0xf]
  %v111 = vld [vmem:[%s0 + $0x15c] sm:$0xf]
  %v112 = vld [vmem:[%s0 + $0x160] sm:$0xf]
  %v113 = vld [vmem:[%s0 + $0x164] sm:$0xf]
  %v114 = vld [vmem:[%s0 + $0x168] sm:$0xf]
  %v115 = vld [vmem:[%s0 + $0x16c] sm:$0xf]
  %v116 = vld [vmem:[%s0 + $0x170] sm:$0xf]
  %v117 = vld [vmem:[%s0 + $0x174] sm:$0xf]
  %v118 = vld [vmem:[%s0 + $0x178] sm:$0xf]
  %v119 = vld [vmem:[%s0 + $0x17c] sm:$0xf]
  %v120 = vld [vmem:[%s1] sm:$0xf]
  %v121 = vld [vmem:[%s1 + $0x4] sm:$0xf]
  %v122 = vld [vmem:[%s1 + $0x8] sm:$0xf]
  %v123 = vld [vmem:[%s1 + $0xc] sm:$0xf]
  %v172 = vunpack.c.l.b16 %v24
  %v173 = vunpack.c.l.b16 %v25
  %v174 = vunpack.c.l.b16 %v26
  %v175 = vunpack.c.l.b16 %v27
  %v176 = vunpack.c.l.b16 %v28
  %v177 = vunpack.c.l.b16 %v29
  %v178 = vunpack.c.l.b16 %v30
  %v179 = vunpack.c.l.b16 %v31
  %v180 = vunpack.c.l.b16 %v32
  %v181 = vunpack.c.l.b16 %v33
  %v182 = vunpack.c.l.b16 %v34
  %v183 = vunpack.c.l.b16 %v35
  %v184 = vunpack.c.l.b16 %v36
  %v185 = vunpack.c.l.b16 %v37
  %v186 = vunpack.c.l.b16 %v38
  %v187 = vunpack.c.l.b16 %v39
  %v188 = vunpack.c.l.b16 %v40
  %v189 = vunpack.c.l.b16 %v41
  %v190 = vunpack.c.l.b16 %v42
  %v191 = vunpack.c.l.b16 %v43
  %v192 = vunpack.c.l.b16 %v44
  %v193 = vunpack.c.l.b16 %v45
  %v194 = vunpack.c.l.b16 %v46
  %v195 = vunpack.c.l.b16 %v47
  %v196 = vunpack.c.l.b16 %v48
  %v197 = vunpack.c.l.b16 %v49
  %v198 = vunpack.c.l.b16 %v50
  %v199 = vunpack.c.l.b16 %v51
  %v200 = vunpack.c.l.b16 %v52
  %v201 = vunpack.c.l.b16 %v53
  %v202 = vunpack.c.l.b16 %v54
  %v203 = vunpack.c.l.b16 %v55
  %v204 = vunpack.c.l.b16 %v56
  %v205 = vunpack.c.l.b16 %v57
  %v206 = vunpack.c.l.b16 %v58
  %v207 = vunpack.c.l.b16 %v59
  %v208 = vunpack.c.l.b16 %v60
  %v209 = vunpack.c.l.b16 %v61
  %v210 = vunpack.c.l.b16 %v62
  %v211 = vunpack.c.l.b16 %v63
  %v212 = vunpack.c.l.b16 %v64
  %v213 = vunpack.c.l.b16 %v65
  %v214 = vunpack.c.l.b16 %v66
  %v215 = vunpack.c.l.b16 %v67
  %v216 = vunpack.c.l.b16 %v68
  %v217 = vunpack.c.l.b16 %v69
  %v218 = vunpack.c.l.b16 %v70
  %v219 = vunpack.c.l.b16 %v71
  %v220 = vpack.c.b16 %v173, %v172
  %v221 = vpack.c.b16 %v175, %v174
  %v222 = vpack.c.b16 %v177, %v176
  %v223 = vpack.c.b16 %v179, %v178
  %v224 = vpack.c.b16 %v181, %v180
  %v225 = vpack.c.b16 %v183, %v182
  %v226 = vpack.c.b16 %v185, %v184
  %v227 = vpack.c.b16 %v187, %v186
  %v228 = vpack.c.b16 %v189, %v188
  %v229 = vpack.c.b16 %v191, %v190
  %v230 = vpack.c.b16 %v193, %v192
  %v231 = vpack.c.b16 %v195, %v194
  %v232 = vpack.c.b16 %v197, %v196
  %v233 = vpack.c.b16 %v199, %v198
  %v234 = vpack.c.b16 %v201, %v200
  %v235 = vpack.c.b16 %v203, %v202
  %v236 = vpack.c.b16 %v205, %v204
  %v237 = vpack.c.b16 %v207, %v206
  %v238 = vpack.c.b16 %v209, %v208
  %v239 = vpack.c.b16 %v211, %v210
  %v240 = vpack.c.b16 %v213, %v212
  %v241 = vpack.c.b16 %v215, %v214
  %v242 = vpack.c.b16 %v217, %v216
  %v243 = vpack.c.b16 %v219, %v218
  %v246 = vunpack.c.l.b16 %v120
  %v247 = vunpack.c.l.b16 %v121
  %v248 = vpack.c.b16 %v247, %v246
  %vm250 = vcmask 130048
  %v252 = vsel %vm250, %v220, 0
  %v255 = vsel %vm250, %v221, 0
  %v258 = vsel %vm250, %v222, 0
  %v261 = vsel %vm250, %v223, 0
  %v264 = vsel %vm250, %v224, 0
  %v267 = vsel %vm250, %v225, 0
  %v270 = vsel %vm250, %v226, 0
  %v273 = vsel %vm250, %v227, 0
  %v276 = vsel %vm250, %v228, 0
  %v279 = vsel %vm250, %v229, 0
  %v282 = vsel %vm250, %v230, 0
  %v285 = vsel %vm250, %v231, 0
  %v288 = vsel %vm250, %v232, 0
  %v291 = vsel %vm250, %v233, 0
  %v294 = vsel %vm250, %v234, 0
  %v297 = vsel %vm250, %v235, 0
  %v300 = vsel %vm250, %v236, 0
  %v303 = vsel %vm250, %v237, 0
  %v306 = vsel %vm250, %v238, 0
  %v309 = vsel %vm250, %v239, 0
  %v312 = vsel %vm250, %v240, 0
  %v315 = vsel %vm250, %v241, 0
  %v318 = vsel %vm250, %v242, 0
  %v321 = vsel %vm250, %v243, 0
  %323 = vmatprep.subr.bf16.mxu0 0
  %324 = vmatpush1.bf16.msra.mxu0 %v248
  %325 = vmatprep.subr.bf16.mxu0 0
  %326 = vmatpush1.bf16.msra.mxu0 0
  %327 = vmatprep.subr.bf16.mxu0 0
  %328 = vmatpush1.bf16.msra.mxu0 0
  %329 = vmatprep.subr.bf16.mxu0 0
  %330 = vmatpush1.bf16.msra.mxu0 0
  %331 = vmatprep.subr.bf16.mxu0 0
  %332 = vmatpush1.bf16.msra.mxu0 0
  %333 = vmatprep.subr.bf16.mxu0 0
  %334 = vmatpush1.bf16.msra.mxu0 0
  %335 = vmatprep.subr.bf16.mxu0 0
  %336 = vmatpush1.bf16.msra.mxu0 0
  %337 = vmatprep.subr.bf16.mxu0 0
  %338 = vmatpush1.bf16.msra.mxu0 0
  %339 = vmatprep.subr.bf16.mxu0 0
  %340 = vmatpush1.bf16.msra.mxu0 0
  %341 = vmatprep.subr.bf16.mxu0 0
  %342 = vmatpush1.bf16.msra.mxu0 0
  %343 = vmatprep.subr.bf16.mxu0 0
  %344 = vmatpush1.bf16.msra.mxu0 0
  %345 = vmatprep.subr.bf16.mxu0 0
  %346 = vmatpush1.bf16.msra.mxu0 0
  %347 = vmatprep.subr.bf16.mxu0 0
  %348 = vmatpush1.bf16.msra.mxu0 0
  %349 = vmatprep.subr.bf16.mxu0 0
  %350 = vmatpush1.bf16.msra.mxu0 0
  %351 = vmatprep.subr.bf16.mxu0 0
  %352 = vmatpush1.bf16.msra.mxu0 0
  %353 = vmatprep.subr.bf16.mxu0 0
  %354 = vmatpush1.bf16.msra.mxu0 0
  %355 = vmatprep.mubr.bf16.mxu0 0
  %356 = vmatmul.mubr.bf16.gmra.mrb[0].mxu0 %v252
  %v357 = vpop.f32.mrb[0].mxu0
  %v358 = vadd.f32 0.0, %v357
  %v359 = vpop.f32.mrb[0].mxu0
  %v360 = vpop.f32.mrb[0].mxu0
  %v361 = vadd.f32 0.0, %v360
  %v362 = vpop.f32.mrb[0].mxu0
  %363 = vmatprep.mubr.bf16.mxu0 0
  %364 = vmatmul.mubr.bf16.gmra.mrb[0].mxu0 %v255
  %v365 = vpop.f32.mrb[0].mxu0
  %v366 = vadd.f32 0.0, %v365
  %v367 = vpop.f32.mrb[0].mxu0
  %v368 = vpop.f32.mrb[0].mxu0
  %v369 = vadd.f32 0.0, %v368
  %v370 = vpop.f32.mrb[0].mxu0
  %371 = vmatprep.mubr.bf16.mxu0 0
  %372 = vmatmul.mubr.bf16.gmra.mrb[0].mxu0 %v258
  %v373 = vpop.f32.mrb[0].mxu0
  %v374 = vadd.f32 0.0, %v373
  %v375 = vpop.f32.mrb[0].mxu0
  %v376 = vpop.f32.mrb[0].mxu0
  %v377 = vadd.f32 0.0, %v376
  %v378 = vpop.f32.mrb[0].mxu0
  %379 = vmatprep.mubr.bf16.mxu0 0
  %380 = vmatmul.mubr.bf16.gmra.mrb[0].mxu0 %v261
  %v381 = vpop.f32.mrb[0].mxu0
  %v382 = vadd.f32 0.0, %v381
  %v383 = vpop.f32.mrb[0].mxu0
  %v384 = vpop.f32.mrb[0].mxu0
  %v385 = vadd.f32 0.0, %v384
  %v386 = vpop.f32.mrb[0].mxu0
  %387 = vmatprep.mubr.bf16.mxu0 0
  %388 = vmatmul.mubr.bf16.gmra.mrb[0].mxu0 %v264
  %v389 = vpop.f32.mrb[0].mxu0
  %v390 = vadd.f32 0.0, %v389
  %v391 = vpop.f32.mrb[0].mxu0
  %v392 = vpop.f32.mrb[0].mxu0
  %v393 = vadd.f32 0.0, %v392
  %v394 = vpop.f32.mrb[0].mxu0
  %395 = vmatprep.mubr.bf16.mxu0 0
  %396 = vmatmul.mubr.bf16.gmra.mrb[0].mxu0 %v267
  %v397 = vpop.f32.mrb[0].mxu0
  %v398 = vadd.f32 0.0, %v397
  %v399 = vpop.f32.mrb[0].mxu0
  %v400 = vpop.f32.mrb[0].mxu0
  %v401 = vadd.f32 0.0, %v400
  %v402 = vpop.f32.mrb[0].mxu0
  %403 = vmatprep.mubr.bf16.mxu0 0
  %404 = vmatmul.mubr.bf16.gmra.mrb[0].mxu0 %v270
  %v405 = vpop.f32.mrb[0].mxu0
  %v406 = vadd.f32 0.0, %v405
  %v407 = vpop.f32.mrb[0].mxu0
  %v408 = vpop.f32.mrb[0].mxu0
  %v409 = vadd.f32 0.0, %v408
  %v410 = vpop.f32.mrb[0].mxu0
  %411 = vmatprep.mubr.bf16.mxu0 0
  %412 = vmatmul.mubr.bf16.gmra.mrb[0].mxu0 %v273
  %v413 = vpop.f32.mrb[0].mxu0
  %v414 = vadd.f32 0.0, %v413
  %v415 = vpop.f32.mrb[0].mxu0
  %v416 = vpop.f32.mrb[0].mxu0
  %v417 = vadd.f32 0.0, %v416
  %v418 = vpop.f32.mrb[0].mxu0
  %419 = vmatprep.mubr.bf16.mxu0 0
  %420 = vmatmul.mubr.bf16.gmra.mrb[0].mxu0 %v276
  %v421 = vpop.f32.mrb[0].mxu0
  %v422 = vadd.f32 0.0, %v421
  %v423 = vpop.f32.mrb[0].mxu0
  %v424 = vpop.f32.mrb[0].mxu0
  %v425 = vadd.f32 0.0, %v424
  %v426 = vpop.f32.mrb[0].mxu0
  %427 = vmatprep.mubr.bf16.mxu0 0
  %428 = vmatmul.mubr.bf16.gmra.mrb[0].mxu0 %v279
  %v429 = vpop.f32.mrb[0].mxu0
  %v430 = vadd.f32 0.0, %v429
  %v431 = vpop.f32.mrb[0].mxu0
  %v432 = vpop.f32.mrb[0].mxu0
  %v433 = vadd.f32 0.0, %v432
  %v434 = vpop.f32.mrb[0].mxu0
  %435 = vmatprep.mubr.bf16.mxu0 0
  %436 = vmatmul.mubr.bf16.gmra.mrb[0].mxu0 %v282
  %v437 = vpop.f32.mrb[0].mxu0
  %v438 = vadd.f32 0.0, %v437
  %v439 = vpop.f32.mrb[0].mxu0
  %v440 = vpop.f32.mrb[0].mxu0
  %v441 = vadd.f32 0.0, %v440
  %v442 = vpop.f32.mrb[0].mxu0
  %443 = vmatprep.mubr.bf16.mxu0 0
  %444 = vmatmul.mubr.bf16.gmra.mrb[0].mxu0 %v285
  %v445 = vpop.f32.mrb[0].mxu0
  %v446 = vadd.f32 0.0, %v445
  %v447 = vpop.f32.mrb[0].mxu0
  %v448 = vpop.f32.mrb[0].mxu0
  %v449 = vadd.f32 0.0, %v448
  %v450 = vpop.f32.mrb[0].mxu0
  %451 = vmatprep.mubr.bf16.mxu0 0
  %452 = vmatmul.mubr.bf16.gmra.mrb[0].mxu0 %v288
  %v453 = vpop.f32.mrb[0].mxu0
  %v454 = vadd.f32 0.0, %v453
  %v455 = vpop.f32.mrb[0].mxu0
  %v456 = vpop.f32.mrb[0].mxu0
  %v457 = vadd.f32 0.0, %v456
  %v458 = vpop.f32.mrb[0].mxu0
  %459 = vmatprep.mubr.bf16.mxu0 0
  %460 = vmatmul.mubr.bf16.gmra.mrb[0].mxu0 %v291
  %v461 = vpop.f32.mrb[0].mxu0
  %v462 = vadd.f32 0.0, %v461
  %v463 = vpop.f32.mrb[0].mxu0
  %v464 = vpop.f32.mrb[0].mxu0
  %v465 = vadd.f32 0.0, %v464
  %v466 = vpop.f32.mrb[0].mxu0
  %467 = vmatprep.mubr.bf16.mxu0 0
  %468 = vmatmul.mubr.bf16.gmra.mrb[0].mxu0 %v294
  %v469 = vpop.f32.mrb[0].mxu0
  %v470 = vadd.f32 0.0, %v469
  %v471 = vpop.f32.mrb[0].mxu0
  %v472 = vpop.f32.mrb[0].mxu0
  %v473 = vadd.f32 0.0, %v472
  %v474 = vpop.f32.mrb[0].mxu0
  %475 = vmatprep.mubr.bf16.mxu0 0
  %476 = vmatmul.mubr.bf16.gmra.mrb[0].mxu0 %v297
  %v477 = vpop.f32.mrb[0].mxu0
  %v478 = vadd.f32 0.0, %v477
  %v479 = vpop.f32.mrb[0].mxu0
  %v480 = vpop.f32.mrb[0].mxu0
  %v481 = vadd.f32 0.0, %v480
  %v482 = vpop.f32.mrb[0].mxu0
  %483 = vmatprep.mubr.bf16.mxu0 0
  %484 = vmatmul.mubr.bf16.gmra.mrb[0].mxu0 %v300
  %v485 = vpop.f32.mrb[0].mxu0
  %v486 = vadd.f32 0.0, %v485
  %v487 = vpop.f32.mrb[0].mxu0
  %v488 = vpop.f32.mrb[0].mxu0
  %v489 = vadd.f32 0.0, %v488
  %v490 = vpop.f32.mrb[0].mxu0
  %491 = vmatprep.mubr.bf16.mxu0 0
  %492 = vmatmul.mubr.bf16.gmra.mrb[0].mxu0 %v303
  %v493 = vpop.f32.mrb[0].mxu0
  %v494 = vadd.f32 0.0, %v493
  %v495 = vpop.f32.mrb[0].mxu0
  %v496 = vpop.f32.mrb[0].mxu0
  %v497 = vadd.f32 0.0, %v496
  %v498 = vpop.f32.mrb[0].mxu0
  %499 = vmatprep.mubr.bf16.mxu0 0
  %500 = vmatmul.mubr.bf16.gmra.mrb[0].mxu0 %v306
  %v501 = vpop.f32.mrb[0].mxu0
  %v502 = vadd.f32 0.0, %v501
  %v503 = vpop.f32.mrb[0].mxu0
  %v504 = vpop.f32.mrb[0].mxu0
  %v505 = vadd.f32 0.0, %v504
  %v506 = vpop.f32.mrb[0].mxu0
  %507 = vmatprep.mubr.bf16.mxu0 0
  %508 = vmatmul.mubr.bf16.gmra.mrb[0].mxu0 %v309
  %v509 = vpop.f32.mrb[0].mxu0
  %v510 = vadd.f32 0.0, %v509
  %v511 = vpop.f32.mrb[0].mxu0
  %v512 = vpop.f32.mrb[0].mxu0
  %v513 = vadd.f32 0.0, %v512
  %v514 = vpop.f32.mrb[0].mxu0
  %515 = vmatprep.mubr.bf16.mxu0 0
  %516 = vmatmul.mubr.bf16.gmra.mrb[0].mxu0 %v312
  %v517 = vpop.f32.mrb[0].mxu0
  %v518 = vadd.f32 0.0, %v517
  %v519 = vpop.f32.mrb[0].mxu0
  %v520 = vpop.f32.mrb[0].mxu0
  %v521 = vadd.f32 0.0, %v520
  %v522 = vpop.f32.mrb[0].mxu0
  %523 = vmatprep.mubr.bf16.mxu0 0
  %524 = vmatmul.mubr.bf16.gmra.mrb[0].mxu0 %v315
  %v525 = vpop.f32.mrb[0].mxu0
  %v526 = vadd.f32 0.0, %v525
  %v527 = vpop.f32.mrb[0].mxu0
  %v528 = vpop.f32.mrb[0].mxu0
  %v529 = vadd.f32 0.0, %v528
  %v530 = vpop.f32.mrb[0].mxu0
  %531 = vmatprep.mubr.bf16.mxu0 0
  %532 = vmatmul.mubr.bf16.gmra.mrb[0].mxu0 %v318
  %v533 = vpop.f32.mrb[0].mxu0
  %v534 = vadd.f32 0.0, %v533
  %v535 = vpop.f32.mrb[0].mxu0
  %v536 = vpop.f32.mrb[0].mxu0
  %v537 = vadd.f32 0.0, %v536
  %v538 = vpop.f32.mrb[0].mxu0
  %539 = vmatprep.mubr.bf16.mxu0 0
  %540 = vmatmul.mubr.bf16.gmra.mrb[0].mxu0 %v321
  %v541 = vpop.f32.mrb[0].mxu0
  %v542 = vadd.f32 0.0, %v541
  %v543 = vpop.f32.mrb[0].mxu0
  %v544 = vpop.f32.mrb[0].mxu0
  %v545 = vadd.f32 0.0, %v544
  %v546 = vpop.f32.mrb[0].mxu0
  %547 = vdwg.mxu0
  %v596 = vunpack.c.l.b16 %v72
  %v597 = vunpack.c.l.b16 %v73
  %v598 = vunpack.c.l.b16 %v74
  %v599 = vunpack.c.l.b16 %v75
  %v600 = vunpack.c.l.b16 %v76
  %v601 = vunpack.c.l.b16 %v77
  %v602 = vunpack.c.l.b16 %v78
  %v603 = vunpack.c.l.b16 %v79
  %v604 = vunpack.c.l.b16 %v80
  %v605 = vunpack.c.l.b16 %v81
  %v606 = vunpack.c.l.b16 %v82
  %v607 = vunpack.c.l.b16 %v83
  %v608 = vunpack.c.l.b16 %v84
  %v609 = vunpack.c.l.b16 %v85
  %v610 = vunpack.c.l.b16 %v86
  %v611 = vunpack.c.l.b16 %v87
  %v612 = vunpack.c.l.b16 %v88
  %v613 = vunpack.c.l.b16 %v89
  %v614 = vunpack.c.l.b16 %v90
  %v615 = vunpack.c.l.b16 %v91
  %v616 = vunpack.c.l.b16 %v92
  %v617 = vunpack.c.l.b16 %v93
  %v618 = vunpack.c.l.b16 %v94
  %v619 = vunpack.c.l.b16 %v95
  %v620 = vunpack.c.l.b16 %v96
  %v621 = vunpack.c.l.b16 %v97
  %v622 = vunpack.c.l.b16 %v98
  %v623 = vunpack.c.l.b16 %v99
  %v624 = vunpack.c.l.b16 %v100
  %v625 = vunpack.c.l.b16 %v101
  %v626 = vunpack.c.l.b16 %v102
  %v627 = vunpack.c.l.b16 %v103
  %v628 = vunpack.c.l.b16 %v104
  %v629 = vunpack.c.l.b16 %v105
  %v630 = vunpack.c.l.b16 %v106
  %v631 = vunpack.c.l.b16 %v107
  %v632 = vunpack.c.l.b16 %v108
  %v633 = vunpack.c.l.b16 %v109
  %v634 = vunpack.c.l.b16 %v110
  %v635 = vunpack.c.l.b16 %v111
  %v636 = vunpack.c.l.b16 %v112
  %v637 = vunpack.c.l.b16 %v113
  %v638 = vunpack.c.l.b16 %v114
  %v639 = vunpack.c.l.b16 %v115
  %v640 = vunpack.c.l.b16 %v116
  %v641 = vunpack.c.l.b16 %v117
  %v642 = vunpack.c.l.b16 %v118
  %v643 = vunpack.c.l.b16 %v119
  %v644 = vpack.c.b16 %v597, %v596
  %v645 = vpack.c.b16 %v599, %v598
  %v646 = vpack.c.b16 %v601, %v600
  %v647 = vpack.c.b16 %v603, %v602
  %v648 = vpack.c.b16 %v605, %v604
  %v649 = vpack.c.b16 %v607, %v606
  %v650 = vpack.c.b16 %v609, %v608
  %v651 = vpack.c.b16 %v611, %v610
  %v652 = vpack.c.b16 %v613, %v612
  %v653 = vpack.c.b16 %v615, %v614
  %v654 = vpack.c.b16 %v617, %v616
  %v655 = vpack.c.b16 %v619, %v618
  %v656 = vpack.c.b16 %v621, %v620
  %v657 = vpack.c.b16 %v623, %v622
  %v658 = vpack.c.b16 %v625, %v624
  %v659 = vpack.c.b16 %v627, %v626
  %v660 = vpack.c.b16 %v629, %v628
  %v661 = vpack.c.b16 %v631, %v630
  %v662 = vpack.c.b16 %v633, %v632
  %v663 = vpack.c.b16 %v635, %v634
  %v664 = vpack.c.b16 %v637, %v636
  %v665 = vpack.c.b16 %v639, %v638
  %v666 = vpack.c.b16 %v641, %v640
  %v667 = vpack.c.b16 %v643, %v642
  %v670 = vunpack.c.l.b16 %v122
  %v671 = vunpack.c.l.b16 %v123
  %v672 = vpack.c.b16 %v671, %v670
  %v675 = vsel %vm250, %v644, 0
  %v678 = vsel %vm250, %v645, 0
  %v681 = vsel %vm250, %v646, 0
  %v684 = vsel %vm250, %v647, 0
  %v687 = vsel %vm250, %v648, 0
  %v690 = vsel %vm250, %v649, 0
  %v693 = vsel %vm250, %v650, 0
  %v696 = vsel %vm250, %v651, 0
  %v699 = vsel %vm250, %v652, 0
  %v702 = vsel %vm250, %v653, 0
  %v705 = vsel %vm250, %v654, 0
  %v708 = vsel %vm250, %v655, 0
  %v711 = vsel %vm250, %v656, 0
  %v714 = vsel %vm250, %v657, 0
  %v717 = vsel %vm250, %v658, 0
  %v720 = vsel %vm250, %v659, 0
  %v723 = vsel %vm250, %v660, 0
  %v726 = vsel %vm250, %v661, 0
  %v729 = vsel %vm250, %v662, 0
  %v732 = vsel %vm250, %v663, 0
  %v735 = vsel %vm250, %v664, 0
  %v738 = vsel %vm250, %v665, 0
  %v741 = vsel %vm250, %v666, 0
  %v744 = vsel %vm250, %v667, 0
  %746 = vmatprep.subr.bf16.mxu0 0
  %747 = vmatpush1.bf16.msra.mxu0 %v672
  %748 = vmatprep.subr.bf16.mxu0 0
  %749 = vmatpush1.bf16.msra.mxu0 0
  %750 = vmatprep.subr.bf16.mxu0 0
  %751 = vmatpush1.bf16.msra.mxu0 0
  %752 = vmatprep.subr.bf16.mxu0 0
  %753 = vmatpush1.bf16.msra.mxu0 0
  %754 = vmatprep.subr.bf16.mxu0 0
  %755 = vmatpush1.bf16.msra.mxu0 0
  %756 = vmatprep.subr.bf16.mxu0 0
  %757 = vmatpush1.bf16.msra.mxu0 0
  %758 = vmatprep.subr.bf16.mxu0 0
  %759 = vmatpush1.bf16.msra.mxu0 0
  %760 = vmatprep.subr.bf16.mxu0 0
  %761 = vmatpush1.bf16.msra.mxu0 0
  %762 = vmatprep.subr.bf16.mxu0 0
  %763 = vmatpush1.bf16.msra.mxu0 0
  %764 = vmatprep.subr.bf16.mxu0 0
  %765 = vmatpush1.bf16.msra.mxu0 0
  %766 = vmatprep.subr.bf16.mxu0 0
  %767 = vmatpush1.bf16.msra.mxu0 0
  %768 = vmatprep.subr.bf16.mxu0 0
  %769 = vmatpush1.bf16.msra.mxu0 0
  %770 = vmatprep.subr.bf16.mxu0 0
  %771 = vmatpush1.bf16.msra.mxu0 0
  %772 = vmatprep.subr.bf16.mxu0 0
  %773 = vmatpush1.bf16.msra.mxu0 0
  %774 = vmatprep.subr.bf16.mxu0 0
  %775 = vmatpush1.bf16.msra.mxu0 0
  %776 = vmatprep.subr.bf16.mxu0 0
  %777 = vmatpush1.bf16.msra.mxu0 0
  %778 = vmatprep.mubr.bf16.mxu0 0
  %779 = vmatmul.mubr.bf16.gmra.mrb[0].mxu0 %v675
  %v780 = vpop.f32.mrb[0].mxu0
  %v781 = vadd.f32 0.0, %v780
  %v782 = vpop.f32.mrb[0].mxu0
  %v783 = vpop.f32.mrb[0].mxu0
  %v784 = vadd.f32 0.0, %v783
  %v785 = vpop.f32.mrb[0].mxu0
  %786 = vmatprep.mubr.bf16.mxu0 0
  %787 = vmatmul.mubr.bf16.gmra.mrb[0].mxu0 %v678
  %v788 = vpop.f32.mrb[0].mxu0
  %v789 = vadd.f32 0.0, %v788
  %v790 = vpop.f32.mrb[0].mxu0
  %v791 = vpop.f32.mrb[0].mxu0
  %v792 = vadd.f32 0.0, %v791
  %v793 = vpop.f32.mrb[0].mxu0
  %794 = vmatprep.mubr.bf16.mxu0 0
  %795 = vmatmul.mubr.bf16.gmra.mrb[0].mxu0 %v681
  %v796 = vpop.f32.mrb[0].mxu0
  %v797 = vadd.f32 0.0, %v796
  %v798 = vpop.f32.mrb[0].mxu0
  %v799 = vpop.f32.mrb[0].mxu0
  %v800 = vadd.f32 0.0, %v799
  %v801 = vpop.f32.mrb[0].mxu0
  %802 = vmatprep.mubr.bf16.mxu0 0
  %803 = vmatmul.mubr.bf16.gmra.mrb[0].mxu0 %v684
  %v804 = vpop.f32.mrb[0].mxu0
  %v805 = vadd.f32 0.0, %v804
  %v806 = vpop.f32.mrb[0].mxu0
  %v807 = vpop.f32.mrb[0].mxu0
  %v808 = vadd.f32 0.0, %v807
  %v809 = vpop.f32.mrb[0].mxu0
  %810 = vmatprep.mubr.bf16.mxu0 0
  %811 = vmatmul.mubr.bf16.gmra.mrb[0].mxu0 %v687
  %v812 = vpop.f32.mrb[0].mxu0
  %v813 = vadd.f32 0.0, %v812
  %v814 = vpop.f32.mrb[0].mxu0
  %v815 = vpop.f32.mrb[0].mxu0
  %v816 = vadd.f32 0.0, %v815
  %v817 = vpop.f32.mrb[0].mxu0
  %818 = vmatprep.mubr.bf16.mxu0 0
  %819 = vmatmul.mubr.bf16.gmra.mrb[0].mxu0 %v690
  %v820 = vpop.f32.mrb[0].mxu0
  %v821 = vadd.f32 0.0, %v820
  %v822 = vpop.f32.mrb[0].mxu0
  %v823 = vpop.f32.mrb[0].mxu0
  %v824 = vadd.f32 0.0, %v823
  %v825 = vpop.f32.mrb[0].mxu0
  %826 = vmatprep.mubr.bf16.mxu0 0
  %827 = vmatmul.mubr.bf16.gmra.mrb[0].mxu0 %v693
  %v828 = vpop.f32.mrb[0].mxu0
  %v829 = vadd.f32 0.0, %v828
  %v830 = vpop.f32.mrb[0].mxu0
  %v831 = vpop.f32.mrb[0].mxu0
  %v832 = vadd.f32 0.0, %v831
  %v833 = vpop.f32.mrb[0].mxu0
  %834 = vmatprep.mubr.bf16.mxu0 0
  %835 = vmatmul.mubr.bf16.gmra.mrb[0].mxu0 %v696
  %v836 = vpop.f32.mrb[0].mxu0
  %v837 = vadd.f32 0.0, %v836
  %v838 = vpop.f32.mrb[0].mxu0
  %v839 = vpop.f32.mrb[0].mxu0
  %v840 = vadd.f32 0.0, %v839
  %v841 = vpop.f32.mrb[0].mxu0
  %842 = vmatprep.mubr.bf16.mxu0 0
  %843 = vmatmul.mubr.bf16.gmra.mrb[0].mxu0 %v699
  %v844 = vpop.f32.mrb[0].mxu0
  %v845 = vadd.f32 0.0, %v844
  %v846 = vpop.f32.mrb[0].mxu0
  %v847 = vpop.f32.mrb[0].mxu0
  %v848 = vadd.f32 0.0, %v847
  %v849 = vpop.f32.mrb[0].mxu0
  %850 = vmatprep.mubr.bf16.mxu0 0
  %851 = vmatmul.mubr.bf16.gmra.mrb[0].mxu0 %v702
  %v852 = vpop.f32.mrb[0].mxu0
  %v853 = vadd.f32 0.0, %v852
  %v854 = vpop.f32.mrb[0].mxu0
  %v855 = vpop.f32.mrb[0].mxu0
  %v856 = vadd.f32 0.0, %v855
  %v857 = vpop.f32.mrb[0].mxu0
  %858 = vmatprep.mubr.bf16.mxu0 0
  %859 = vmatmul.mubr.bf16.gmra.mrb[0].mxu0 %v705
  %v860 = vpop.f32.mrb[0].mxu0
  %v861 = vadd.f32 0.0, %v860
  %v862 = vpop.f32.mrb[0].mxu0
  %v863 = vpop.f32.mrb[0].mxu0
  %v864 = vadd.f32 0.0, %v863
  %v865 = vpop.f32.mrb[0].mxu0
  %866 = vmatprep.mubr.bf16.mxu0 0
  %867 = vmatmul.mubr.bf16.gmra.mrb[0].mxu0 %v708
  %v868 = vpop.f32.mrb[0].mxu0
  %v869 = vadd.f32 0.0, %v868
  %v870 = vpop.f32.mrb[0].mxu0
  %v871 = vpop.f32.mrb[0].mxu0
  %v872 = vadd.f32 0.0, %v871
  %v873 = vpop.f32.mrb[0].mxu0
  %874 = vmatprep.mubr.bf16.mxu0 0
  %875 = vmatmul.mubr.bf16.gmra.mrb[0].mxu0 %v711
  %v876 = vpop.f32.mrb[0].mxu0
  %v877 = vadd.f32 0.0, %v876
  %v878 = vpop.f32.mrb[0].mxu0
  %v879 = vpop.f32.mrb[0].mxu0
  %v880 = vadd.f32 0.0, %v879
  %v881 = vpop.f32.mrb[0].mxu0
  %882 = vmatprep.mubr.bf16.mxu0 0
  %883 = vmatmul.mubr.bf16.gmra.mrb[0].mxu0 %v714
  %v884 = vpop.f32.mrb[0].mxu0
  %v885 = vadd.f32 0.0, %v884
  %v886 = vpop.f32.mrb[0].mxu0
  %v887 = vpop.f32.mrb[0].mxu0
  %v888 = vadd.f32 0.0, %v887
  %v889 = vpop.f32.mrb[0].mxu0
  %890 = vmatprep.mubr.bf16.mxu0 0
  %891 = vmatmul.mubr.bf16.gmra.mrb[0].mxu0 %v717
  %v892 = vpop.f32.mrb[0].mxu0
  %v893 = vadd.f32 0.0, %v892
  %v894 = vpop.f32.mrb[0].mxu0
  %v895 = vpop.f32.mrb[0].mxu0
  %v896 = vadd.f32 0.0, %v895
  %v897 = vpop.f32.mrb[0].mxu0
  %898 = vmatprep.mubr.bf16.mxu0 0
  %899 = vmatmul.mubr.bf16.gmra.mrb[0].mxu0 %v720
  %v900 = vpop.f32.mrb[0].mxu0
  %v901 = vadd.f32 0.0, %v900
  %v902 = vpop.f32.mrb[0].mxu0
  %v903 = vpop.f32.mrb[0].mxu0
  %v904 = vadd.f32 0.0, %v903
  %v905 = vpop.f32.mrb[0].mxu0
  %906 = vmatprep.mubr.bf16.mxu0 0
  %907 = vmatmul.mubr.bf16.gmra.mrb[0].mxu0 %v723
  %v908 = vpop.f32.mrb[0].mxu0
  %v909 = vadd.f32 0.0, %v908
  %v910 = vpop.f32.mrb[0].mxu0
  %v911 = vpop.f32.mrb[0].mxu0
  %v912 = vadd.f32 0.0, %v911
  %v913 = vpop.f32.mrb[0].mxu0
  %914 = vmatprep.mubr.bf16.mxu0 0
  %915 = vmatmul.mubr.bf16.gmra.mrb[0].mxu0 %v726
  %v916 = vpop.f32.mrb[0].mxu0
  %v917 = vadd.f32 0.0, %v916
  %v918 = vpop.f32.mrb[0].mxu0
  %v919 = vpop.f32.mrb[0].mxu0
  %v920 = vadd.f32 0.0, %v919
  %v921 = vpop.f32.mrb[0].mxu0
  %922 = vmatprep.mubr.bf16.mxu0 0
  %923 = vmatmul.mubr.bf16.gmra.mrb[0].mxu0 %v729
  %v924 = vpop.f32.mrb[0].mxu0
  %v925 = vadd.f32 0.0, %v924
  %v926 = vpop.f32.mrb[0].mxu0
  %v927 = vpop.f32.mrb[0].mxu0
  %v928 = vadd.f32 0.0, %v927
  %v929 = vpop.f32.mrb[0].mxu0
  %930 = vmatprep.mubr.bf16.mxu0 0
  %931 = vmatmul.mubr.bf16.gmra.mrb[0].mxu0 %v732
  %v932 = vpop.f32.mrb[0].mxu0
  %v933 = vadd.f32 0.0, %v932
  %v934 = vpop.f32.mrb[0].mxu0
  %v935 = vpop.f32.mrb[0].mxu0
  %v936 = vadd.f32 0.0, %v935
  %v937 = vpop.f32.mrb[0].mxu0
  %938 = vmatprep.mubr.bf16.mxu0 0
  %939 = vmatmul.mubr.bf16.gmra.mrb[0].mxu0 %v735
  %v940 = vpop.f32.mrb[0].mxu0
  %v941 = vadd.f32 0.0, %v940
  %v942 = vpop.f32.mrb[0].mxu0
  %v943 = vpop.f32.mrb[0].mxu0
  %v944 = vadd.f32 0.0, %v943
  %v945 = vpop.f32.mrb[0].mxu0
  %946 = vmatprep.mubr.bf16.mxu0 0
  %947 = vmatmul.mubr.bf16.gmra.mrb[0].mxu0 %v738
  %v948 = vpop.f32.mrb[0].mxu0
  %v949 = vadd.f32 0.0, %v948
  %v950 = vpop.f32.mrb[0].mxu0
  %v951 = vpop.f32.mrb[0].mxu0
  %v952 = vadd.f32 0.0, %v951
  %v953 = vpop.f32.mrb[0].mxu0
  %954 = vmatprep.mubr.bf16.mxu0 0
  %955 = vmatmul.mubr.bf16.gmra.mrb[0].mxu0 %v741
  %v956 = vpop.f32.mrb[0].mxu0
  %v957 = vadd.f32 0.0, %v956
  %v958 = vpop.f32.mrb[0].mxu0
  %v959 = vpop.f32.mrb[0].mxu0
  %v960 = vadd.f32 0.0, %v959
  %v961 = vpop.f32.mrb[0].mxu0
  %962 = vmatprep.mubr.bf16.mxu0 0
  %963 = vmatmul.mubr.bf16.gmra.mrb[0].mxu0 %v744
  %v964 = vpop.f32.mrb[0].mxu0
  %v965 = vadd.f32 0.0, %v964
  %v966 = vpop.f32.mrb[0].mxu0
  %v967 = vpop.f32.mrb[0].mxu0
  %v968 = vadd.f32 0.0, %v967
  %v969 = vpop.f32.mrb[0].mxu0
  %970 = vdwg.mxu0
  %vm971 = vcmp.ge.f32.partialorder %v358, 0.0
  %vm972 = vcmp.ge.f32.partialorder %v361, 0.0
  %vm973 = vcmp.ge.f32.partialorder %v366, 0.0
  %vm974 = vcmp.ge.f32.partialorder %v369, 0.0
  %vm975 = vcmp.ge.f32.partialorder %v374, 0.0
  %vm976 = vcmp.ge.f32.partialorder %v377, 0.0
  %vm977 = vcmp.ge.f32.partialorder %v382, 0.0
  %vm978 = vcmp.ge.f32.partialorder %v385, 0.0
  %vm979 = vcmp.ge.f32.partialorder %v390, 0.0
  %vm980 = vcmp.ge.f32.partialorder %v393, 0.0
  %vm981 = vcmp.ge.f32.partialorder %v398, 0.0
  %vm982 = vcmp.ge.f32.partialorder %v401, 0.0
  %vm983 = vcmp.ge.f32.partialorder %v406, 0.0
  %vm984 = vcmp.ge.f32.partialorder %v409, 0.0
  %vm985 = vcmp.ge.f32.partialorder %v414, 0.0
  %vm986 = vcmp.ge.f32.partialorder %v417, 0.0
  %vm987 = vcmp.ge.f32.partialorder %v422, 0.0
  %vm988 = vcmp.ge.f32.partialorder %v425, 0.0
  %vm989 = vcmp.ge.f32.partialorder %v430, 0.0
  %vm990 = vcmp.ge.f32.partialorder %v433, 0.0
  %vm991 = vcmp.ge.f32.partialorder %v438, 0.0
  %vm992 = vcmp.ge.f32.partialorder %v441, 0.0
  %vm993 = vcmp.ge.f32.partialorder %v446, 0.0
  %vm994 = vcmp.ge.f32.partialorder %v449, 0.0
  %vm995 = vcmp.ge.f32.partialorder %v454, 0.0
  %vm996 = vcmp.ge.f32.partialorder %v457, 0.0
  %vm997 = vcmp.ge.f32.partialorder %v462, 0.0
  %vm998 = vcmp.ge.f32.partialorder %v465, 0.0
  %vm999 = vcmp.ge.f32.partialorder %v470, 0.0
  %vm1000 = vcmp.ge.f32.partialorder %v473, 0.0
  %vm1001 = vcmp.ge.f32.partialorder %v478, 0.0
  %vm1002 = vcmp.ge.f32.partialorder %v481, 0.0
  %vm1003 = vcmp.ge.f32.partialorder %v486, 0.0
  %vm1004 = vcmp.ge.f32.partialorder %v489, 0.0
  %vm1005 = vcmp.ge.f32.partialorder %v494, 0.0
  %vm1006 = vcmp.ge.f32.partialorder %v497, 0.0
  %vm1007 = vcmp.ge.f32.partialorder %v502, 0.0
  %vm1008 = vcmp.ge.f32.partialorder %v505, 0.0
  %vm1009 = vcmp.ge.f32.partialorder %v510, 0.0
  %vm1010 = vcmp.ge.f32.partialorder %v513, 0.0
  %vm1011 = vcmp.ge.f32.partialorder %v518, 0.0
  %vm1012 = vcmp.ge.f32.partialorder %v521, 0.0
  %vm1013 = vcmp.ge.f32.partialorder %v526, 0.0
  %vm1014 = vcmp.ge.f32.partialorder %v529, 0.0
  %vm1015 = vcmp.ge.f32.partialorder %v534, 0.0
  %vm1016 = vcmp.ge.f32.partialorder %v537, 0.0
  %vm1017 = vcmp.ge.f32.partialorder %v542, 0.0
  %vm1018 = vcmp.ge.f32.partialorder %v545, 0.0
  %vm1019 = vcmp.ge.f32.partialorder %v781, 0.0
  %vm1020 = vcmp.ge.f32.partialorder %v784, 0.0
  %vm1021 = vcmp.ge.f32.partialorder %v789, 0.0
  %vm1022 = vcmp.ge.f32.partialorder %v792, 0.0
  %vm1023 = vcmp.ge.f32.partialorder %v797, 0.0
  %vm1024 = vcmp.ge.f32.partialorder %v800, 0.0
  %vm1025 = vcmp.ge.f32.partialorder %v805, 0.0
  %vm1026 = vcmp.ge.f32.partialorder %v808, 0.0
  %vm1027 = vcmp.ge.f32.partialorder %v813, 0.0
  %vm1028 = vcmp.ge.f32.partialorder %v816, 0.0
  %vm1029 = vcmp.ge.f32.partialorder %v821, 0.0
  %vm1030 = vcmp.ge.f32.partialorder %v824, 0.0
  %vm1031 = vcmp.ge.f32.partialorder %v829, 0.0
  %vm1032 = vcmp.ge.f32.partialorder %v832, 0.0
  %vm1033 = vcmp.ge.f32.partialorder %v837, 0.0
  %vm1034 = vcmp.ge.f32.partialorder %v840, 0.0
  %vm1035 = vcmp.ge.f32.partialorder %v845, 0.0
  %vm1036 = vcmp.ge.f32.partialorder %v848, 0.0
  %vm1037 = vcmp.ge.f32.partialorder %v853, 0.0
  %vm1038 = vcmp.ge.f32.partialorder %v856, 0.0
  %vm1039 = vcmp.ge.f32.partialorder %v861, 0.0
  %vm1040 = vcmp.ge.f32.partialorder %v864, 0.0
  %vm1041 = vcmp.ge.f32.partialorder %v869, 0.0
  %vm1042 = vcmp.ge.f32.partialorder %v872, 0.0
  %vm1043 = vcmp.ge.f32.partialorder %v877, 0.0
  %vm1044 = vcmp.ge.f32.partialorder %v880, 0.0
  %vm1045 = vcmp.ge.f32.partialorder %v885, 0.0
  %vm1046 = vcmp.ge.f32.partialorder %v888, 0.0
  %vm1047 = vcmp.ge.f32.partialorder %v893, 0.0
  %vm1048 = vcmp.ge.f32.partialorder %v896, 0.0
  %vm1049 = vcmp.ge.f32.partialorder %v901, 0.0
  %vm1050 = vcmp.ge.f32.partialorder %v904, 0.0
  %vm1051 = vcmp.ge.f32.partialorder %v909, 0.0
  %vm1052 = vcmp.ge.f32.partialorder %v912, 0.0
  %vm1053 = vcmp.ge.f32.partialorder %v917, 0.0
  %vm1054 = vcmp.ge.f32.partialorder %v920, 0.0
  %vm1055 = vcmp.ge.f32.partialorder %v925, 0.0
  %vm1056 = vcmp.ge.f32.partialorder %v928, 0.0
  %vm1057 = vcmp.ge.f32.partialorder %v933, 0.0
  %vm1058 = vcmp.ge.f32.partialorder %v936, 0.0
  %vm1059 = vcmp.ge.f32.partialorder %v941, 0.0
  %vm1060 = vcmp.ge.f32.partialorder %v944, 0.0
  %vm1061 = vcmp.ge.f32.partialorder %v949, 0.0
  %vm1062 = vcmp.ge.f32.partialorder %v952, 0.0
  %vm1063 = vcmp.ge.f32.partialorder %v957, 0.0
  %vm1064 = vcmp.ge.f32.partialorder %v960, 0.0
  %vm1065 = vcmp.ge.f32.partialorder %v965, 0.0
  %vm1066 = vcmp.ge.f32.partialorder %v968, 0.0
  %v1067 = vmul.f32 %v358, 0.2
  %v1068 = vmul.f32 %v361, 0.2
  %v1069 = vmul.f32 %v366, 0.2
  %v1070 = vmul.f32 %v369, 0.2
  %v1071 = vmul.f32 %v374, 0.2
  %v1072 = vmul.f32 %v377, 0.2
  %v1073 = vmul.f32 %v382, 0.2
  %v1074 = vmul.f32 %v385, 0.2
  %v1075 = vmul.f32 %v390, 0.2
  %v1076 = vmul.f32 %v393, 0.2
  %v1077 = vmul.f32 %v398, 0.2
  %v1078 = vmul.f32 %v401, 0.2
  %v1079 = vmul.f32 %v406, 0.2
  %v1080 = vmul.f32 %v409, 0.2
  %v1081 = vmul.f32 %v414, 0.2
  %v1082 = vmul.f32 %v417, 0.2
  %v1083 = vmul.f32 %v422, 0.2
  %v1084 = vmul.f32 %v425, 0.2
  %v1085 = vmul.f32 %v430, 0.2
  %v1086 = vmul.f32 %v433, 0.2
  %v1087 = vmul.f32 %v438, 0.2
  %v1088 = vmul.f32 %v441, 0.2
  %v1089 = vmul.f32 %v446, 0.2
  %v1090 = vmul.f32 %v449, 0.2
  %v1091 = vmul.f32 %v454, 0.2
  %v1092 = vmul.f32 %v457, 0.2
  %v1093 = vmul.f32 %v462, 0.2
  %v1094 = vmul.f32 %v465, 0.2
  %v1095 = vmul.f32 %v470, 0.2
  %v1096 = vmul.f32 %v473, 0.2
  %v1097 = vmul.f32 %v478, 0.2
  %v1098 = vmul.f32 %v481, 0.2
  %v1099 = vmul.f32 %v486, 0.2
  %v1100 = vmul.f32 %v489, 0.2
  %v1101 = vmul.f32 %v494, 0.2
  %v1102 = vmul.f32 %v497, 0.2
  %v1103 = vmul.f32 %v502, 0.2
  %v1104 = vmul.f32 %v505, 0.2
  %v1105 = vmul.f32 %v510, 0.2
  %v1106 = vmul.f32 %v513, 0.2
  %v1107 = vmul.f32 %v518, 0.2
  %v1108 = vmul.f32 %v521, 0.2
  %v1109 = vmul.f32 %v526, 0.2
  %v1110 = vmul.f32 %v529, 0.2
  %v1111 = vmul.f32 %v534, 0.2
  %v1112 = vmul.f32 %v537, 0.2
  %v1113 = vmul.f32 %v542, 0.2
  %v1114 = vmul.f32 %v545, 0.2
  %v1115 = vmul.f32 %v781, 0.2
  %v1116 = vmul.f32 %v784, 0.2
  %v1117 = vmul.f32 %v789, 0.2
  %v1118 = vmul.f32 %v792, 0.2
  %v1119 = vmul.f32 %v797, 0.2
  %v1120 = vmul.f32 %v800, 0.2
  %v1121 = vmul.f32 %v805, 0.2
  %v1122 = vmul.f32 %v808, 0.2
  %v1123 = vmul.f32 %v813, 0.2
  %v1124 = vmul.f32 %v816, 0.2
  %v1125 = vmul.f32 %v821, 0.2
  %v1126 = vmul.f32 %v824, 0.2
  %v1127 = vmul.f32 %v829, 0.2
  %v1128 = vmul.f32 %v832, 0.2
  %v1129 = vmul.f32 %v837, 0.2
  %v1130 = vmul.f32 %v840, 0.2
  %v1131 = vmul.f32 %v845, 0.2
  %v1132 = vmul.f32 %v848, 0.2
  %v1133 = vmul.f32 %v853, 0.2
  %v1134 = vmul.f32 %v856, 0.2
  %v1135 = vmul.f32 %v861, 0.2
  %v1136 = vmul.f32 %v864, 0.2
  %v1137 = vmul.f32 %v869, 0.2
  %v1138 = vmul.f32 %v872, 0.2
  %v1139 = vmul.f32 %v877, 0.2
  %v1140 = vmul.f32 %v880, 0.2
  %v1141 = vmul.f32 %v885, 0.2
  %v1142 = vmul.f32 %v888, 0.2
  %v1143 = vmul.f32 %v893, 0.2
  %v1144 = vmul.f32 %v896, 0.2
  %v1145 = vmul.f32 %v901, 0.2
  %v1146 = vmul.f32 %v904, 0.2
  %v1147 = vmul.f32 %v909, 0.2
  %v1148 = vmul.f32 %v912, 0.2
  %v1149 = vmul.f32 %v917, 0.2
  %v1150 = vmul.f32 %v920, 0.2
  %v1151 = vmul.f32 %v925, 0.2
  %v1152 = vmul.f32 %v928, 0.2
  %v1153 = vmul.f32 %v933, 0.2
  %v1154 = vmul.f32 %v936, 0.2
  %v1155 = vmul.f32 %v941, 0.2
  %v1156 = vmul.f32 %v944, 0.2
  %v1157 = vmul.f32 %v949, 0.2
  %v1158 = vmul.f32 %v952, 0.2
  %v1159 = vmul.f32 %v957, 0.2
  %v1160 = vmul.f32 %v960, 0.2
  %v1161 = vmul.f32 %v965, 0.2
  %v1162 = vmul.f32 %v968, 0.2
  %v1163 = vsel %vm971, %v358, %v1067
  %v1164 = vsel %vm972, %v361, %v1068
  %v1165 = vsel %vm973, %v366, %v1069
  %v1166 = vsel %vm974, %v369, %v1070
  %v1167 = vsel %vm975, %v374, %v1071
  %v1168 = vsel %vm976, %v377, %v1072
  %v1169 = vsel %vm977, %v382, %v1073
  %v1170 = vsel %vm978, %v385, %v1074
  %v1171 = vsel %vm979, %v390, %v1075
  %v1172 = vsel %vm980, %v393, %v1076
  %v1173 = vsel %vm981, %v398, %v1077
  %v1174 = vsel %vm982, %v401, %v1078
  %v1175 = vsel %vm983, %v406, %v1079
  %v1176 = vsel %vm984, %v409, %v1080
  %v1177 = vsel %vm985, %v414, %v1081
  %v1178 = vsel %vm986, %v417, %v1082
  %v1179 = vsel %vm987, %v422, %v1083
  %v1180 = vsel %vm988, %v425, %v1084
  %v1181 = vsel %vm989, %v430, %v1085
  %v1182 = vsel %vm990, %v433, %v1086
  %v1183 = vsel %vm991, %v438, %v1087
  %v1184 = vsel %vm992, %v441, %v1088
  %v1185 = vsel %vm993, %v446, %v1089
  %v1186 = vsel %vm994, %v449, %v1090
  %v1187 = vsel %vm995, %v454, %v1091
  %v1188 = vsel %vm996, %v457, %v1092
  %v1189 = vsel %vm997, %v462, %v1093
  %v1190 = vsel %vm998, %v465, %v1094
  %v1191 = vsel %vm999, %v470, %v1095
  %v1192 = vsel %vm1000, %v473, %v1096
  %v1193 = vsel %vm1001, %v478, %v1097
  %v1194 = vsel %vm1002, %v481, %v1098
  %v1195 = vsel %vm1003, %v486, %v1099
  %v1196 = vsel %vm1004, %v489, %v1100
  %v1197 = vsel %vm1005, %v494, %v1101
  %v1198 = vsel %vm1006, %v497, %v1102
  %v1199 = vsel %vm1007, %v502, %v1103
  %v1200 = vsel %vm1008, %v505, %v1104
  %v1201 = vsel %vm1009, %v510, %v1105
  %v1202 = vsel %vm1010, %v513, %v1106
  %v1203 = vsel %vm1011, %v518, %v1107
  %v1204 = vsel %vm1012, %v521, %v1108
  %v1205 = vsel %vm1013, %v526, %v1109
  %v1206 = vsel %vm1014, %v529, %v1110
  %v1207 = vsel %vm1015, %v534, %v1111
  %v1208 = vsel %vm1016, %v537, %v1112
  %v1209 = vsel %vm1017, %v542, %v1113
  %v1210 = vsel %vm1018, %v545, %v1114
  %v1211 = vsel %vm1019, %v781, %v1115
  %v1212 = vsel %vm1020, %v784, %v1116
  %v1213 = vsel %vm1021, %v789, %v1117
  %v1214 = vsel %vm1022, %v792, %v1118
  %v1215 = vsel %vm1023, %v797, %v1119
  %v1216 = vsel %vm1024, %v800, %v1120
  %v1217 = vsel %vm1025, %v805, %v1121
  %v1218 = vsel %vm1026, %v808, %v1122
  %v1219 = vsel %vm1027, %v813, %v1123
  %v1220 = vsel %vm1028, %v816, %v1124
  %v1221 = vsel %vm1029, %v821, %v1125
  %v1222 = vsel %vm1030, %v824, %v1126
  %v1223 = vsel %vm1031, %v829, %v1127
  %v1224 = vsel %vm1032, %v832, %v1128
  %v1225 = vsel %vm1033, %v837, %v1129
  %v1226 = vsel %vm1034, %v840, %v1130
  %v1227 = vsel %vm1035, %v845, %v1131
  %v1228 = vsel %vm1036, %v848, %v1132
  %v1229 = vsel %vm1037, %v853, %v1133
  %v1230 = vsel %vm1038, %v856, %v1134
  %v1231 = vsel %vm1039, %v861, %v1135
  %v1232 = vsel %vm1040, %v864, %v1136
  %v1233 = vsel %vm1041, %v869, %v1137
  %v1234 = vsel %vm1042, %v872, %v1138
  %v1235 = vsel %vm1043, %v877, %v1139
  %v1236 = vsel %vm1044, %v880, %v1140
  %v1237 = vsel %vm1045, %v885, %v1141
  %v1238 = vsel %vm1046, %v888, %v1142
  %v1239 = vsel %vm1047, %v893, %v1143
  %v1240 = vsel %vm1048, %v896, %v1144
  %v1241 = vsel %vm1049, %v901, %v1145
  %v1242 = vsel %vm1050, %v904, %v1146
  %v1243 = vsel %vm1051, %v909, %v1147
  %v1244 = vsel %vm1052, %v912, %v1148
  %v1245 = vsel %vm1053, %v917, %v1149
  %v1246 = vsel %vm1054, %v920, %v1150
  %v1247 = vsel %vm1055, %v925, %v1151
  %v1248 = vsel %vm1056, %v928, %v1152
  %v1249 = vsel %vm1057, %v933, %v1153
  %v1250 = vsel %vm1058, %v936, %v1154
  %v1251 = vsel %vm1059, %v941, %v1155
  %v1252 = vsel %vm1060, %v944, %v1156
  %v1253 = vsel %vm1061, %v949, %v1157
  %v1254 = vsel %vm1062, %v952, %v1158
  %v1255 = vsel %vm1063, %v957, %v1159
  %v1256 = vsel %vm1064, %v960, %v1160
  %v1257 = vsel %vm1065, %v965, %v1161
  %v1258 = vsel %vm1066, %v968, %v1162
  %v1259 = vpack.c.bf16 %v1164, %v1163
  %v1260 = vpack.c.bf16 %v1166, %v1165
  %v1261 = vpack.c.bf16 %v1168, %v1167
  %v1262 = vpack.c.bf16 %v1170, %v1169
  %v1263 = vpack.c.bf16 %v1172, %v1171
  %v1264 = vpack.c.bf16 %v1174, %v1173
  %v1265 = vpack.c.bf16 %v1176, %v1175
  %v1266 = vpack.c.bf16 %v1178, %v1177
  %v1267 = vpack.c.bf16 %v1180, %v1179
  %v1268 = vpack.c.bf16 %v1182, %v1181
  %v1269 = vpack.c.bf16 %v1184, %v1183
  %v1270 = vpack.c.bf16 %v1186, %v1185
  %v1271 = vpack.c.bf16 %v1188, %v1187
  %v1272 = vpack.c.bf16 %v1190, %v1189
  %v1273 = vpack.c.bf16 %v1192, %v1191
  %v1274 = vpack.c.bf16 %v1194, %v1193
  %v1275 = vpack.c.bf16 %v1196, %v1195
  %v1276 = vpack.c.bf16 %v1198, %v1197
  %v1277 = vpack.c.bf16 %v1200, %v1199
  %v1278 = vpack.c.bf16 %v1202, %v1201
  %v1279 = vpack.c.bf16 %v1204, %v1203
  %v1280 = vpack.c.bf16 %v1206, %v1205
  %v1281 = vpack.c.bf16 %v1208, %v1207
  %v1282 = vpack.c.bf16 %v1210, %v1209
  %v1283 = vpack.c.bf16 %v1212, %v1211
  %v1284 = vpack.c.bf16 %v1214, %v1213
  %v1285 = vpack.c.bf16 %v1216, %v1215
  %v1286 = vpack.c.bf16 %v1218, %v1217
  %v1287 = vpack.c.bf16 %v1220, %v1219
  %v1288 = vpack.c.bf16 %v1222, %v1221
  %v1289 = vpack.c.bf16 %v1224, %v1223
  %v1290 = vpack.c.bf16 %v1226, %v1225
  %v1291 = vpack.c.bf16 %v1228, %v1227
  %v1292 = vpack.c.bf16 %v1230, %v1229
  %v1293 = vpack.c.bf16 %v1232, %v1231
  %v1294 = vpack.c.bf16 %v1234, %v1233
  %v1295 = vpack.c.bf16 %v1236, %v1235
  %v1296 = vpack.c.bf16 %v1238, %v1237
  %v1297 = vpack.c.bf16 %v1240, %v1239
  %v1298 = vpack.c.bf16 %v1242, %v1241
  %v1299 = vpack.c.bf16 %v1244, %v1243
  %v1300 = vpack.c.bf16 %v1246, %v1245
  %v1301 = vpack.c.bf16 %v1248, %v1247
  %v1302 = vpack.c.bf16 %v1250, %v1249
  %v1303 = vpack.c.bf16 %v1252, %v1251
  %v1304 = vpack.c.bf16 %v1254, %v1253
  %v1305 = vpack.c.bf16 %v1256, %v1255
  %v1306 = vpack.c.bf16 %v1258, %v1257
  %vm1307 = vcmask 64512
  %1308 = vst.msk [vmem:[#allocation2] sm:$0xff] %vm1307, %v1259
  %1309 = vst.msk [vmem:[#allocation2 + $0x8] sm:$0xff] %vm1307, %v1260
  %1310 = vst.msk [vmem:[#allocation2 + $0x10] sm:$0xff] %vm1307, %v1261
  %1311 = vst.msk [vmem:[#allocation2 + $0x18] sm:$0xff] %vm1307, %v1262
  %1312 = vst.msk [vmem:[#allocation2 + $0x20] sm:$0xff] %vm1307, %v1263
  %1313 = vst.msk [vmem:[#allocation2 + $0x28] sm:$0xff] %vm1307, %v1264
  %1314 = vst.msk [vmem:[#allocation2 + $0x30] sm:$0xff] %vm1307, %v1265
  %1315 = vst.msk [vmem:[#allocation2 + $0x38] sm:$0xff] %vm1307, %v1266
  %1316 = vst.msk [vmem:[#allocation2 + $0x40] sm:$0xff] %vm1307, %v1267
  %1317 = vst.msk [vmem:[#allocation2 + $0x48] sm:$0xff] %vm1307, %v1268
  %1318 = vst.msk [vmem:[#allocation2 + $0x50] sm:$0xff] %vm1307, %v1269
  %1319 = vst.msk [vmem:[#allocation2 + $0x58] sm:$0xff] %vm1307, %v1270
  %1320 = vst.msk [vmem:[#allocation2 + $0x60] sm:$0xff] %vm1307, %v1271
  %1321 = vst.msk [vmem:[#allocation2 + $0x68] sm:$0xff] %vm1307, %v1272
  %1322 = vst.msk [vmem:[#allocation2 + $0x70] sm:$0xff] %vm1307, %v1273
  %1323 = vst.msk [vmem:[#allocation2 + $0x78] sm:$0xff] %vm1307, %v1274
  %1324 = vst.msk [vmem:[#allocation2 + $0x80] sm:$0xff] %vm1307, %v1275
  %1325 = vst.msk [vmem:[#allocation2 + $0x88] sm:$0xff] %vm1307, %v1276
  %1326 = vst.msk [vmem:[#allocation2 + $0x90] sm:$0xff] %vm1307, %v1277
  %1327 = vst.msk [vmem:[#allocation2 + $0x98] sm:$0xff] %vm1307, %v1278
  %1328 = vst.msk [vmem:[#allocation2 + $0xa0] sm:$0xff] %vm1307, %v1279
  %1329 = vst.msk [vmem:[#allocation2 + $0xa8] sm:$0xff] %vm1307, %v1280
  %1330 = vst.msk [vmem:[#allocation2 + $0xb0] sm:$0xff] %vm1307, %v1281
  %1331 = vst.msk [vmem:[#allocation2 + $0xb8] sm:$0xff] %vm1307, %v1282
  %1332 = vst.msk [vmem:[#allocation2 + $0xc0] sm:$0xff] %vm1307, %v1283
  %1333 = vst.msk [vmem:[#allocation2 + $0xc8] sm:$0xff] %vm1307, %v1284
  %1334 = vst.msk [vmem:[#allocation2 + $0xd0] sm:$0xff] %vm1307, %v1285
  %1335 = vst.msk [vmem:[#allocation2 + $0xd8] sm:$0xff] %vm1307, %v1286
  %1336 = vst.msk [vmem:[#allocation2 + $0xe0] sm:$0xff] %vm1307, %v1287
  %1337 = vst.msk [vmem:[#allocation2 + $0xe8] sm:$0xff] %vm1307, %v1288
  %1338 = vst.msk [vmem:[#allocation2 + $0xf0] sm:$0xff] %vm1307, %v1289
  %1339 = vst.msk [vmem:[#allocation2 + $0xf8] sm:$0xff] %vm1307, %v1290
  %1340 = vst.msk [vmem:[#allocation2 + $0x100] sm:$0xff] %vm1307, %v1291
  %1341 = vst.msk [vmem:[#allocation2 + $0x108] sm:$0xff] %vm1307, %v1292
  %1342 = vst.msk [vmem:[#allocation2 + $0x110] sm:$0xff] %vm1307, %v1293
  %1343 = vst.msk [vmem:[#allocation2 + $0x118] sm:$0xff] %vm1307, %v1294
  %1344 = vst.msk [vmem:[#allocation2 + $0x120] sm:$0xff] %vm1307, %v1295
  %1345 = vst.msk [vmem:[#allocation2 + $0x128] sm:$0xff] %vm1307, %v1296
  %1346 = vst.msk [vmem:[#allocation2 + $0x130] sm:$0xff] %vm1307, %v1297
  %1347 = vst.msk [vmem:[#allocation2 + $0x138] sm:$0xff] %vm1307, %v1298
  %1348 = vst.msk [vmem:[#allocation2 + $0x140] sm:$0xff] %vm1307, %v1299
  %1349 = vst.msk [vmem:[#allocation2 + $0x148] sm:$0xff] %vm1307, %v1300
  %1350 = vst.msk [vmem:[#allocation2 + $0x150] sm:$0xff] %vm1307, %v1301
  %1351 = vst.msk [vmem:[#allocation2 + $0x158] sm:$0xff] %vm1307, %v1302
  %1352 = vst.msk [vmem:[#allocation2 + $0x160] sm:$0xff] %vm1307, %v1303
  %1353 = vst.msk [vmem:[#allocation2 + $0x168] sm:$0xff] %vm1307, %v1304
  %1354 = vst.msk [vmem:[#allocation2 + $0x170] sm:$0xff] %vm1307, %v1305
  %1355 = vst.msk [vmem:[#allocation2 + $0x178] sm:$0xff] %vm1307, %v1306
  %v1356 = vld [vmem:[#allocation2] sm:$0xff]
  %v1357 = vld [vmem:[#allocation2 + $0x8] sm:$0xff]
  %v1358 = vld [vmem:[#allocation2 + $0x10] sm:$0xff]
  %v1359 = vld [vmem:[#allocation2 + $0x18] sm:$0xff]
  %v1360 = vld [vmem:[#allocation2 + $0xc0] sm:$0xff]
  %v1361 = vld [vmem:[#allocation2 + $0xc8] sm:$0xff]
  %v1362 = vld [vmem:[#allocation2 + $0xd0] sm:$0xff]
  %v1363 = vld [vmem:[#allocation2 + $0xd8] sm:$0xff]
  %v1364 = vld [vmem:[#allocation2 + $0x20] sm:$0x1]
  %v1365 = vld [vmem:[#allocation2 + $0xe0] sm:$0x1]
  %v1366 = vld [vmem:[#allocation2] sm:$0xf0]
  %v1367 = vld [vmem:[#allocation2 + $0x20] sm:$0x1f]
  %v1368 = vld [vmem:[#allocation2 + $0xc0] sm:$0xf0]
  %v1369 = vld [vmem:[#allocation2 + $0xe0] sm:$0x1f]
  %v1370 = vld [vmem:[#allocation2] sm:$0xe0]
  %v1371 = vld [vmem:[#allocation2 + $0xc0] sm:$0xe0]
  %v1372 = vld [vmem:[#allocation2 + $0x30] sm:$0xff]
  %v1373 = vld [vmem:[#allocation2 + $0x38] sm:$0xff]
  %v1374 = vld [vmem:[#allocation2 + $0x40] sm:$0xff]
  %v1375 = vld [vmem:[#allocation2 + $0x48] sm:$0xff]
  %v1376 = vld [vmem:[#allocation2 + $0xf0] sm:$0xff]
  %v1377 = vld [vmem:[#allocation2 + $0xf8] sm:$0xff]
  %v1378 = vld [vmem:[#allocation2 + $0x100] sm:$0xff]
  %v1379 = vld [vmem:[#allocation2 + $0x108] sm:$0xff]
  %v1380 = vld [vmem:[#allocation2 + $0x50] sm:$0x1]
  %v1381 = vld [vmem:[#allocation2 + $0x110] sm:$0x1]
  %v1382 = vld [vmem:[#allocation2 + $0x30] sm:$0xf0]
  %v1383 = vld [vmem:[#allocation2 + $0x50] sm:$0x1f]
  %v1384 = vld [vmem:[#allocation2 + $0xf0] sm:$0xf0]
  %v1385 = vld [vmem:[#allocation2 + $0x110] sm:$0x1f]
  %v1386 = vld [vmem:[#allocation2 + $0x30] sm:$0xe0]
  %v1387 = vld [vmem:[#allocation2 + $0xf0] sm:$0xe0]
  %v1388 = vld [vmem:[#allocation2 + $0x60] sm:$0xff]
  %v1389 = vld [vmem:[#allocation2 + $0x68] sm:$0xff]
  %v1390 = vld [vmem:[#allocation2 + $0x70] sm:$0xff]
  %v1391 = vld [vmem:[#allocation2 + $0x78] sm:$0xff]
  %v1392 = vld [vmem:[#allocation2 + $0x120] sm:$0xff]
  %v1393 = vld [vmem:[#allocation2 + $0x128] sm:$0xff]
  %v1394 = vld [vmem:[#allocation2 + $0x130] sm:$0xff]
  %v1395 = vld [vmem:[#allocation2 + $0x138] sm:$0xff]
  %v1396 = vld [vmem:[#allocation2 + $0x80] sm:$0x1]
  %v1397 = vld [vmem:[#allocation2 + $0x140] sm:$0x1]
  %v1398 = vld [vmem:[#allocation2 + $0x60] sm:$0xf0]
  %v1399 = vld [vmem:[#allocation2 + $0x80] sm:$0x1f]
  %v1400 = vld [vmem:[#allocation2 + $0x120] sm:$0xf0]
  %v1401 = vld [vmem:[#allocation2 + $0x140] sm:$0x1f]
  %v1402 = vld [vmem:[#allocation2 + $0x60] sm:$0xe0]
  %v1403 = vld [vmem:[#allocation2 + $0x120] sm:$0xe0]
  %v1404 = vld [vmem:[#allocation2 + $0x90] sm:$0xff]
  %v1405 = vld [vmem:[#allocation2 + $0x98] sm:$0xff]
  %v1406 = vld [vmem:[#allocation2 + $0xa0] sm:$0xff]
  %v1407 = vld [vmem:[#allocation2 + $0xa8] sm:$0xff]
  %v1408 = vld [vmem:[#allocation2 + $0x150] sm:$0xff]
  %v1409 = vld [vmem:[#allocation2 + $0x158] sm:$0xff]
  %v1410 = vld [vmem:[#allocation2 + $0x160] sm:$0xff]
  %v1411 = vld [vmem:[#allocation2 + $0x168] sm:$0xff]
  %v1412 = vld [vmem:[#allocation2 + $0xb0] sm:$0x1]
  %v1413 = vld [vmem:[#allocation2 + $0x170] sm:$0x1]
  %v1414 = vld [vmem:[#allocation2 + $0x90] sm:$0xf0]
  %v1415 = vld [vmem:[#allocation2 + $0xb0] sm:$0x1f]
  %v1416 = vld [vmem:[#allocation2 + $0x150] sm:$0xf0]
  %v1417 = vld [vmem:[#allocation2 + $0x170] sm:$0x1f]
  %v1418 = vld [vmem:[#allocation2 + $0x90] sm:$0xe0]
  %v1419 = vld [vmem:[#allocation2 + $0x150] sm:$0xe0]
  %vm1420 = vsmask.f32 7424
  %v1422 = vshrl.u32 %v1356, 16
  %v1424 = vshll.u32 %v1356, 16
  %v1426 = vrot.slane %v1424, 1
  %v1427 = vor.u32 %v1422, %v1426
  %v1429 = vshll.u32 %v1357, 16
  %v1431 = vrot.slane %v1429, 1
  %v1432 = vsel %vm1420, %v1427, %v1431
  %v1433 = vshrl.u32 %v1357, 16
  %v1435 = vor.u32 %v1433, %v1431
  %v1437 = vshll.u32 %v1358, 16
  %v1439 = vrot.slane %v1437, 1
  %v1440 = vsel %vm1420, %v1435, %v1439
  %v1441 = vshrl.u32 %v1358, 16
  %v1443 = vor.u32 %v1441, %v1439
  %v1445 = vshll.u32 %v1359, 16
  %v1447 = vrot.slane %v1445, 1
  %v1448 = vsel %vm1420, %v1443, %v1447
  %v1449 = vshrl.u32 %v1359, 16
  %v1451 = vor.u32 %v1449, %v1447
  %v1453 = vshll.u32 %v1364, 16
  %v1455 = vrot.slane %v1453, 1
  %v1456 = vsel %vm1420, %v1451, %v1455
  %v1458 = vshrl.u32 %v1360, 16
  %v1460 = vshll.u32 %v1360, 16
  %v1462 = vrot.slane %v1460, 1
  %v1463 = vor.u32 %v1458, %v1462
  %v1465 = vshll.u32 %v1361, 16
  %v1467 = vrot.slane %v1465, 1
  %v1468 = vsel %vm1420, %v1463, %v1467
  %v1469 = vshrl.u32 %v1361, 16
  %v1471 = vor.u32 %v1469, %v1467
  %v1473 = vshll.u32 %v1362, 16
  %v1475 = vrot.slane %v1473, 1
  %v1476 = vsel %vm1420, %v1471, %v1475
  %v1477 = vshrl.u32 %v1362, 16
  %v1479 = vor.u32 %v1477, %v1475
  %v1481 = vshll.u32 %v1363, 16
  %v1483 = vrot.slane %v1481, 1
  %v1484 = vsel %vm1420, %v1479, %v1483
  %v1485 = vshrl.u32 %v1363, 16
  %v1487 = vor.u32 %v1485, %v1483
  %v1489 = vshll.u32 %v1365, 16
  %v1491 = vrot.slane %v1489, 1
  %v1492 = vsel %vm1420, %v1487, %v1491
  %1493 = vrot.lane.b32.xlu0 %v1432, 8
  %v1494 = vpop.permute.xlu0 %1493
  %1495 = vrot.lane.b32.xlu0 %v1440, 8
  %v1496 = vpop.permute.xlu0 %1495
  %1497 = vrot.lane.b32.xlu0 %v1448, 8
  %v1498 = vpop.permute.xlu0 %1497
  %1499 = vrot.lane.b32.xlu0 %v1456, 8
  %v1500 = vpop.permute.xlu0 %1499
  %1501 = vrot.lane.b32.xlu0 %v1468, 8
  %v1502 = vpop.permute.xlu0 %1501
  %1503 = vrot.lane.b32.xlu0 %v1476, 8
  %v1504 = vpop.permute.xlu0 %1503
  %1505 = vrot.lane.b32.xlu0 %v1484, 8
  %v1506 = vpop.permute.xlu0 %1505
  %1507 = vrot.lane.b32.xlu0 %v1492, 8
  %v1508 = vpop.permute.xlu0 %1507
  %vm1509 = vsmask.f32 3328
  %v1511 = vshrl.u32 %v1366, 16
  %v1513 = vrot.slane %v1511, 4
  %v1514 = vshll.u32 %v1366, 16
  %v1516 = vrot.slane %v1514, 5
  %v1517 = vor.u32 %v1513, %v1516
  %v1518 = vrot.slane %v1433, 4
  %v1519 = vrot.slane %v1429, 5
  %v1520 = vor.u32 %v1518, %v1519
  %v1521 = vsel %vm1509, %v1517, %v1520
  %v1522 = vrot.slane %v1441, 4
  %v1523 = vrot.slane %v1437, 5
  %v1524 = vor.u32 %v1522, %v1523
  %v1525 = vsel %vm1509, %v1520, %v1524
  %v1526 = vrot.slane %v1449, 4
  %v1527 = vrot.slane %v1445, 5
  %v1528 = vor.u32 %v1526, %v1527
  %v1529 = vsel %vm1509, %v1524, %v1528
  %v1531 = vshrl.u32 %v1367, 16
  %v1533 = vrot.slane %v1531, 4
  %v1534 = vshll.u32 %v1367, 16
  %v1536 = vrot.slane %v1534, 5
  %v1537 = vor.u32 %v1533, %v1536
  %v1538 = vsel %vm1509, %v1528, %v1537
  %v1540 = vshrl.u32 %v1368, 16
  %v1542 = vrot.slane %v1540, 4
  %v1543 = vshll.u32 %v1368, 16
  %v1545 = vrot.slane %v1543, 5
  %v1546 = vor.u32 %v1542, %v1545
  %v1547 = vrot.slane %v1469, 4
  %v1548 = vrot.slane %v1465, 5
  %v1549 = vor.u32 %v1547, %v1548
  %v1550 = vsel %vm1509, %v1546, %v1549
  %v1551 = vrot.slane %v1477, 4
  %v1552 = vrot.slane %v1473, 5
  %v1553 = vor.u32 %v1551, %v1552
  %v1554 = vsel %vm1509, %v1549, %v1553
  %v1555 = vrot.slane %v1485, 4
  %v1556 = vrot.slane %v1481, 5
  %v1557 = vor.u32 %v1555, %v1556
  %v1558 = vsel %vm1509, %v1553, %v1557
  %v1560 = vshrl.u32 %v1369, 16
  %v1562 = vrot.slane %v1560, 4
  %v1563 = vshll.u32 %v1369, 16
  %v1565 = vrot.slane %v1563, 5
  %v1566 = vor.u32 %v1562, %v1565
  %v1567 = vsel %vm1509, %v1557, %v1566
  %1568 = vrot.lane.b32.xlu0 %v1521, 16
  %v1569 = vpop.permute.xlu0 %1568
  %1570 = vrot.lane.b32.xlu0 %v1525, 16
  %v1571 = vpop.permute.xlu0 %1570
  %1572 = vrot.lane.b32.xlu0 %v1529, 16
  %v1573 = vpop.permute.xlu0 %1572
  %1574 = vrot.lane.b32.xlu0 %v1538, 16
  %v1575 = vpop.permute.xlu0 %1574
  %1576 = vrot.lane.b32.xlu0 %v1550, 16
  %v1577 = vpop.permute.xlu0 %1576
  %1578 = vrot.lane.b32.xlu0 %v1554, 16
  %v1579 = vpop.permute.xlu0 %1578
  %1580 = vrot.lane.b32.xlu0 %v1558, 16
  %v1581 = vpop.permute.xlu0 %1580
  %1582 = vrot.lane.b32.xlu0 %v1567, 16
  %v1583 = vpop.permute.xlu0 %1582
  %vm1594 = vcmask 1042432
  %v1595 = vrot.slane %v1370, 5
  %v1596 = vrot.slane %v1357, 5
  %v1597 = vsel %vm1594, %v1595, %v1596
  %v1598 = vrot.slane %v1358, 5
  %v1599 = vsel %vm1594, %v1596, %v1598
  %v1600 = vrot.slane %v1359, 5
  %v1601 = vsel %vm1594, %v1598, %v1600
  %v1602 = vrot.slane %v1367, 5
  %v1603 = vsel %vm1594, %v1600, %v1602
  %v1604 = vrot.slane %v1371, 5
  %v1605 = vrot.slane %v1361, 5
  %v1606 = vsel %vm1594, %v1604, %v1605
  %v1607 = vrot.slane %v1362, 5
  %v1608 = vsel %vm1594, %v1605, %v1607
  %v1609 = vrot.slane %v1363, 5
  %v1610 = vsel %vm1594, %v1607, %v1609
  %v1611 = vrot.slane %v1369, 5
  %v1612 = vsel %vm1594, %v1609, %v1611
  %1613 = vrot.lane.b32.xlu0 %v1597, 24
  %v1614 = vpop.permute.xlu0 %1613
  %1615 = vrot.lane.b32.xlu0 %v1599, 24
  %v1616 = vpop.permute.xlu0 %1615
  %1617 = vrot.lane.b32.xlu0 %v1601, 24
  %v1618 = vpop.permute.xlu0 %1617
  %1619 = vrot.lane.b32.xlu0 %v1603, 24
  %v1620 = vpop.permute.xlu0 %1619
  %1621 = vrot.lane.b32.xlu0 %v1606, 24
  %v1622 = vpop.permute.xlu0 %1621
  %1623 = vrot.lane.b32.xlu0 %v1608, 24
  %v1624 = vpop.permute.xlu0 %1623
  %1625 = vrot.lane.b32.xlu0 %v1610, 24
  %v1626 = vpop.permute.xlu0 %1625
  %1627 = vrot.lane.b32.xlu0 %v1612, 24
  %v1628 = vpop.permute.xlu0 %1627
  %1637 = vrot.lane.b32.xlu0 %v1372, 32
  %v1638 = vpop.permute.xlu0 %1637
  %1639 = vrot.lane.b32.xlu0 %v1373, 32
  %v1640 = vpop.permute.xlu0 %1639
  %1641 = vrot.lane.b32.xlu0 %v1374, 32
  %v1642 = vpop.permute.xlu0 %1641
  %1643 = vrot.lane.b32.xlu0 %v1375, 32
  %v1644 = vpop.permute.xlu0 %1643
  %1645 = vrot.lane.b32.xlu0 %v1376, 32
  %v1646 = vpop.permute.xlu0 %1645
  %1647 = vrot.lane.b32.xlu0 %v1377, 32
  %v1648 = vpop.permute.xlu0 %1647
  %1649 = vrot.lane.b32.xlu0 %v1378, 32
  %v1650 = vpop.permute.xlu0 %1649
  %1651 = vrot.lane.b32.xlu0 %v1379, 32
  %v1652 = vpop.permute.xlu0 %1651
  %v1654 = vshrl.u32 %v1372, 16
  %v1656 = vshll.u32 %v1372, 16
  %v1658 = vrot.slane %v1656, 1
  %v1659 = vor.u32 %v1654, %v1658
  %v1661 = vshll.u32 %v1373, 16
  %v1663 = vrot.slane %v1661, 1
  %v1664 = vsel %vm1420, %v1659, %v1663
  %v1665 = vshrl.u32 %v1373, 16
  %v1667 = vor.u32 %v1665, %v1663
  %v1669 = vshll.u32 %v1374, 16
  %v1671 = vrot.slane %v1669, 1
  %v1672 = vsel %vm1420, %v1667, %v1671
  %v1673 = vshrl.u32 %v1374, 16
  %v1675 = vor.u32 %v1673, %v1671
  %v1677 = vshll.u32 %v1375, 16
  %v1679 = vrot.slane %v1677, 1
  %v1680 = vsel %vm1420, %v1675, %v1679
  %v1681 = vshrl.u32 %v1375, 16
  %v1683 = vor.u32 %v1681, %v1679
  %v1685 = vshll.u32 %v1380, 16
  %v1687 = vrot.slane %v1685, 1
  %v1688 = vsel %vm1420, %v1683, %v1687
  %v1690 = vshrl.u32 %v1376, 16
  %v1692 = vshll.u32 %v1376, 16
  %v1694 = vrot.slane %v1692, 1
  %v1695 = vor.u32 %v1690, %v1694
  %v1697 = vshll.u32 %v1377, 16
  %v1699 = vrot.slane %v1697, 1
  %v1700 = vsel %vm1420, %v1695, %v1699
  %v1701 = vshrl.u32 %v1377, 16
  %v1703 = vor.u32 %v1701, %v1699
  %v1705 = vshll.u32 %v1378, 16
  %v1707 = vrot.slane %v1705, 1
  %v1708 = vsel %vm1420, %v1703, %v1707
  %v1709 = vshrl.u32 %v1378, 16
  %v1711 = vor.u32 %v1709, %v1707
  %v1713 = vshll.u32 %v1379, 16
  %v1715 = vrot.slane %v1713, 1
  %v1716 = vsel %vm1420, %v1711, %v1715
  %v1717 = vshrl.u32 %v1379, 16
  %v1719 = vor.u32 %v1717, %v1715
  %v1721 = vshll.u32 %v1381, 16
  %v1723 = vrot.slane %v1721, 1
  %v1724 = vsel %vm1420, %v1719, %v1723
  %1725 = vrot.lane.b32.xlu0 %v1664, 40
  %v1726 = vpop.permute.xlu0 %1725
  %1727 = vrot.lane.b32.xlu0 %v1672, 40
  %v1728 = vpop.permute.xlu0 %1727
  %1729 = vrot.lane.b32.xlu0 %v1680, 40
  %v1730 = vpop.permute.xlu0 %1729
  %1731 = vrot.lane.b32.xlu0 %v1688, 40
  %v1732 = vpop.permute.xlu0 %1731
  %1733 = vrot.lane.b32.xlu0 %v1700, 40
  %v1734 = vpop.permute.xlu0 %1733
  %1735 = vrot.lane.b32.xlu0 %v1708, 40
  %v1736 = vpop.permute.xlu0 %1735
  %1737 = vrot.lane.b32.xlu0 %v1716, 40
  %v1738 = vpop.permute.xlu0 %1737
  %1739 = vrot.lane.b32.xlu0 %v1724, 40
  %v1740 = vpop.permute.xlu0 %1739
  %v1742 = vshrl.u32 %v1382, 16
  %v1744 = vrot.slane %v1742, 4
  %v1745 = vshll.u32 %v1382, 16
  %v1747 = vrot.slane %v1745, 5
  %v1748 = vor.u32 %v1744, %v1747
  %v1749 = vrot.slane %v1665, 4
  %v1750 = vrot.slane %v1661, 5
  %v1751 = vor.u32 %v1749, %v1750
  %v1752 = vsel %vm1509, %v1748, %v1751
  %v1753 = vrot.slane %v1673, 4
  %v1754 = vrot.slane %v1669, 5
  %v1755 = vor.u32 %v1753, %v1754
  %v1756 = vsel %vm1509, %v1751, %v1755
  %v1757 = vrot.slane %v1681, 4
  %v1758 = vrot.slane %v1677, 5
  %v1759 = vor.u32 %v1757, %v1758
  %v1760 = vsel %vm1509, %v1755, %v1759
  %v1762 = vshrl.u32 %v1383, 16
  %v1764 = vrot.slane %v1762, 4
  %v1765 = vshll.u32 %v1383, 16
  %v1767 = vrot.slane %v1765, 5
  %v1768 = vor.u32 %v1764, %v1767
  %v1769 = vsel %vm1509, %v1759, %v1768
  %v1771 = vshrl.u32 %v1384, 16
  %v1773 = vrot.slane %v1771, 4
  %v1774 = vshll.u32 %v1384, 16
  %v1776 = vrot.slane %v1774, 5
  %v1777 = vor.u32 %v1773, %v1776
  %v1778 = vrot.slane %v1701, 4
  %v1779 = vrot.slane %v1697, 5
  %v1780 = vor.u32 %v1778, %v1779
  %v1781 = vsel %vm1509, %v1777, %v1780
  %v1782 = vrot.slane %v1709, 4
  %v1783 = vrot.slane %v1705, 5
  %v1784 = vor.u32 %v1782, %v1783
  %v1785 = vsel %vm1509, %v1780, %v1784
  %v1786 = vrot.slane %v1717, 4
  %v1787 = vrot.slane %v1713, 5
  %v1788 = vor.u32 %v1786, %v1787
  %v1789 = vsel %vm1509, %v1784, %v1788
  %v1791 = vshrl.u32 %v1385, 16
  %v1793 = vrot.slane %v1791, 4
  %v1794 = vshll.u32 %v1385, 16
  %v1796 = vrot.slane %v1794, 5
  %v1797 = vor.u32 %v1793, %v1796
  %v1798 = vsel %vm1509, %v1788, %v1797
  %1799 = vrot.lane.b32.xlu0 %v1752, 48
  %v1800 = vpop.permute.xlu0 %1799
  %1801 = vrot.lane.b32.xlu0 %v1756, 48
  %v1802 = vpop.permute.xlu0 %1801
  %1803 = vrot.lane.b32.xlu0 %v1760, 48
  %v1804 = vpop.permute.xlu0 %1803
  %1805 = vrot.lane.b32.xlu0 %v1769, 48
  %v1806 = vpop.permute.xlu0 %1805
  %1807 = vrot.lane.b32.xlu0 %v1781, 48
  %v1808 = vpop.permute.xlu0 %1807
  %1809 = vrot.lane.b32.xlu0 %v1785, 48
  %v1810 = vpop.permute.xlu0 %1809
  %1811 = vrot.lane.b32.xlu0 %v1789, 48
  %v1812 = vpop.permute.xlu0 %1811
  %1813 = vrot.lane.b32.xlu0 %v1798, 48
  %v1814 = vpop.permute.xlu0 %1813
  %v1819 = vrot.slane %v1386, 5
  %v1820 = vrot.slane %v1373, 5
  %v1821 = vsel %vm1594, %v1819, %v1820
  %v1822 = vrot.slane %v1374, 5
  %v1823 = vsel %vm1594, %v1820, %v1822
  %v1824 = vrot.slane %v1375, 5
  %v1825 = vsel %vm1594, %v1822, %v1824
  %v1826 = vrot.slane %v1383, 5
  %v1827 = vsel %vm1594, %v1824, %v1826
  %v1828 = vrot.slane %v1387, 5
  %v1829 = vrot.slane %v1377, 5
  %v1830 = vsel %vm1594, %v1828, %v1829
  %v1831 = vrot.slane %v1378, 5
  %v1832 = vsel %vm1594, %v1829, %v1831
  %v1833 = vrot.slane %v1379, 5
  %v1834 = vsel %vm1594, %v1831, %v1833
  %v1835 = vrot.slane %v1385, 5
  %v1836 = vsel %vm1594, %v1833, %v1835
  %1837 = vrot.lane.b32.xlu0 %v1821, 56
  %v1838 = vpop.permute.xlu0 %1837
  %1839 = vrot.lane.b32.xlu0 %v1823, 56
  %v1840 = vpop.permute.xlu0 %1839
  %1841 = vrot.lane.b32.xlu0 %v1825, 56
  %v1842 = vpop.permute.xlu0 %1841
  %1843 = vrot.lane.b32.xlu0 %v1827, 56
  %v1844 = vpop.permute.xlu0 %1843
  %1845 = vrot.lane.b32.xlu0 %v1830, 56
  %v1846 = vpop.permute.xlu0 %1845
  %1847 = vrot.lane.b32.xlu0 %v1832, 56
  %v1848 = vpop.permute.xlu0 %1847
  %1849 = vrot.lane.b32.xlu0 %v1834, 56
  %v1850 = vpop.permute.xlu0 %1849
  %1851 = vrot.lane.b32.xlu0 %v1836, 56
  %v1852 = vpop.permute.xlu0 %1851
  %1861 = vrot.lane.b32.xlu0 %v1388, 64
  %v1862 = vpop.permute.xlu0 %1861
  %1863 = vrot.lane.b32.xlu0 %v1389, 64
  %v1864 = vpop.permute.xlu0 %1863
  %1865 = vrot.lane.b32.xlu0 %v1390, 64
  %v1866 = vpop.permute.xlu0 %1865
  %1867 = vrot.lane.b32.xlu0 %v1391, 64
  %v1868 = vpop.permute.xlu0 %1867
  %1869 = vrot.lane.b32.xlu0 %v1392, 64
  %v1870 = vpop.permute.xlu0 %1869
  %1871 = vrot.lane.b32.xlu0 %v1393, 64
  %v1872 = vpop.permute.xlu0 %1871
  %1873 = vrot.lane.b32.xlu0 %v1394, 64
  %v1874 = vpop.permute.xlu0 %1873
  %1875 = vrot.lane.b32.xlu0 %v1395, 64
  %v1876 = vpop.permute.xlu0 %1875
  %v1878 = vshrl.u32 %v1388, 16
  %v1880 = vshll.u32 %v1388, 16
  %v1882 = vrot.slane %v1880, 1
  %v1883 = vor.u32 %v1878, %v1882
  %v1885 = vshll.u32 %v1389, 16
  %v1887 = vrot.slane %v1885, 1
  %v1888 = vsel %vm1420, %v1883, %v1887
  %v1889 = vshrl.u32 %v1389, 16
  %v1891 = vor.u32 %v1889, %v1887
  %v1893 = vshll.u32 %v1390, 16
  %v1895 = vrot.slane %v1893, 1
  %v1896 = vsel %vm1420, %v1891, %v1895
  %v1897 = vshrl.u32 %v1390, 16
  %v1899 = vor.u32 %v1897, %v1895
  %v1901 = vshll.u32 %v1391, 16
  %v1903 = vrot.slane %v1901, 1
  %v1904 = vsel %vm1420, %v1899, %v1903
  %v1905 = vshrl.u32 %v1391, 16
  %v1907 = vor.u32 %v1905, %v1903
  %v1909 = vshll.u32 %v1396, 16
  %v1911 = vrot.slane %v1909, 1
  %v1912 = vsel %vm1420, %v1907, %v1911
  %v1914 = vshrl.u32 %v1392, 16
  %v1916 = vshll.u32 %v1392, 16
  %v1918 = vrot.slane %v1916, 1
  %v1919 = vor.u32 %v1914, %v1918
  %v1921 = vshll.u32 %v1393, 16
  %v1923 = vrot.slane %v1921, 1
  %v1924 = vsel %vm1420, %v1919, %v1923
  %v1925 = vshrl.u32 %v1393, 16
  %v1927 = vor.u32 %v1925, %v1923
  %v1929 = vshll.u32 %v1394, 16
  %v1931 = vrot.slane %v1929, 1
  %v1932 = vsel %vm1420, %v1927, %v1931
  %v1933 = vshrl.u32 %v1394, 16
  %v1935 = vor.u32 %v1933, %v1931
  %v1937 = vshll.u32 %v1395, 16
  %v1939 = vrot.slane %v1937, 1
  %v1940 = vsel %vm1420, %v1935, %v1939
  %v1941 = vshrl.u32 %v1395, 16
  %v1943 = vor.u32 %v1941, %v1939
  %v1945 = vshll.u32 %v1397, 16
  %v1947 = vrot.slane %v1945, 1
  %v1948 = vsel %vm1420, %v1943, %v1947
  %1949 = vrot.lane.b32.xlu0 %v1888, 72
  %v1950 = vpop.permute.xlu0 %1949
  %1951 = vrot.lane.b32.xlu0 %v1896, 72
  %v1952 = vpop.permute.xlu0 %1951
  %1953 = vrot.lane.b32.xlu0 %v1904, 72
  %v1954 = vpop.permute.xlu0 %1953
  %1955 = vrot.lane.b32.xlu0 %v1912, 72
  %v1956 = vpop.permute.xlu0 %1955
  %1957 = vrot.lane.b32.xlu0 %v1924, 72
  %v1958 = vpop.permute.xlu0 %1957
  %1959 = vrot.lane.b32.xlu0 %v1932, 72
  %v1960 = vpop.permute.xlu0 %1959
  %1961 = vrot.lane.b32.xlu0 %v1940, 72
  %v1962 = vpop.permute.xlu0 %1961
  %1963 = vrot.lane.b32.xlu0 %v1948, 72
  %v1964 = vpop.permute.xlu0 %1963
  %v1966 = vshrl.u32 %v1398, 16
  %v1968 = vrot.slane %v1966, 4
  %v1969 = vshll.u32 %v1398, 16
  %v1971 = vrot.slane %v1969, 5
  %v1972 = vor.u32 %v1968, %v1971
  %v1973 = vrot.slane %v1889, 4
  %v1974 = vrot.slane %v1885, 5
  %v1975 = vor.u32 %v1973, %v1974
  %v1976 = vsel %vm1509, %v1972, %v1975
  %v1977 = vrot.slane %v1897, 4
  %v1978 = vrot.slane %v1893, 5
  %v1979 = vor.u32 %v1977, %v1978
  %v1980 = vsel %vm1509, %v1975, %v1979
  %v1981 = vrot.slane %v1905, 4
  %v1982 = vrot.slane %v1901, 5
  %v1983 = vor.u32 %v1981, %v1982
  %v1984 = vsel %vm1509, %v1979, %v1983
  %v1986 = vshrl.u32 %v1399, 16
  %v1988 = vrot.slane %v1986, 4
  %v1989 = vshll.u32 %v1399, 16
  %v1991 = vrot.slane %v1989, 5
  %v1992 = vor.u32 %v1988, %v1991
  %v1993 = vsel %vm1509, %v1983, %v1992
  %v1995 = vshrl.u32 %v1400, 16
  %v1997 = vrot.slane %v1995, 4
  %v1998 = vshll.u32 %v1400, 16
  %v2000 = vrot.slane %v1998, 5
  %v2001 = vor.u32 %v1997, %v2000
  %v2002 = vrot.slane %v1925, 4
  %v2003 = vrot.slane %v1921, 5
  %v2004 = vor.u32 %v2002, %v2003
  %v2005 = vsel %vm1509, %v2001, %v2004
  %v2006 = vrot.slane %v1933, 4
  %v2007 = vrot.slane %v1929, 5
  %v2008 = vor.u32 %v2006, %v2007
  %v2009 = vsel %vm1509, %v2004, %v2008
  %v2010 = vrot.slane %v1941, 4
  %v2011 = vrot.slane %v1937, 5
  %v2012 = vor.u32 %v2010, %v2011
  %v2013 = vsel %vm1509, %v2008, %v2012
  %v2015 = vshrl.u32 %v1401, 16
  %v2017 = vrot.slane %v2015, 4
  %v2018 = vshll.u32 %v1401, 16
  %v2020 = vrot.slane %v2018, 5
  %v2021 = vor.u32 %v2017, %v2020
  %v2022 = vsel %vm1509, %v2012, %v2021
  %2023 = vrot.lane.b32.xlu0 %v1976, 80
  %v2024 = vpop.permute.xlu0 %2023
  %2025 = vrot.lane.b32.xlu0 %v1980, 80
  %v2026 = vpop.permute.xlu0 %2025
  %2027 = vrot.lane.b32.xlu0 %v1984, 80
  %v2028 = vpop.permute.xlu0 %2027
  %2029 = vrot.lane.b32.xlu0 %v1993, 80
  %v2030 = vpop.permute.xlu0 %2029
  %2031 = vrot.lane.b32.xlu0 %v2005, 80
  %v2032 = vpop.permute.xlu0 %2031
  %2033 = vrot.lane.b32.xlu0 %v2009, 80
  %v2034 = vpop.permute.xlu0 %2033
  %2035 = vrot.lane.b32.xlu0 %v2013, 80
  %v2036 = vpop.permute.xlu0 %2035
  %2037 = vrot.lane.b32.xlu0 %v2022, 80
  %v2038 = vpop.permute.xlu0 %2037
  %v2043 = vrot.slane %v1402, 5
  %v2044 = vrot.slane %v1389, 5
  %v2045 = vsel %vm1594, %v2043, %v2044
  %v2046 = vrot.slane %v1390, 5
  %v2047 = vsel %vm1594, %v2044, %v2046
  %v2048 = vrot.slane %v1391, 5
  %v2049 = vsel %vm1594, %v2046, %v2048
  %v2050 = vrot.slane %v1399, 5
  %v2051 = vsel %vm1594, %v2048, %v2050
  %v2052 = vrot.slane %v1403, 5
  %v2053 = vrot.slane %v1393, 5
  %v2054 = vsel %vm1594, %v2052, %v2053
  %v2055 = vrot.slane %v1394, 5
  %v2056 = vsel %vm1594, %v2053, %v2055
  %v2057 = vrot.slane %v1395, 5
  %v2058 = vsel %vm1594, %v2055, %v2057
  %v2059 = vrot.slane %v1401, 5
  %v2060 = vsel %vm1594, %v2057, %v2059
  %2061 = vrot.lane.b32.xlu0 %v2045, 88
  %v2062 = vpop.permute.xlu0 %2061
  %2063 = vrot.lane.b32.xlu0 %v2047, 88
  %v2064 = vpop.permute.xlu0 %2063
  %2065 = vrot.lane.b32.xlu0 %v2049, 88
  %v2066 = vpop.permute.xlu0 %2065
  %2067 = vrot.lane.b32.xlu0 %v2051, 88
  %v2068 = vpop.permute.xlu0 %2067
  %2069 = vrot.lane.b32.xlu0 %v2054, 88
  %v2070 = vpop.permute.xlu0 %2069
  %2071 = vrot.lane.b32.xlu0 %v2056, 88
  %v2072 = vpop.permute.xlu0 %2071
  %2073 = vrot.lane.b32.xlu0 %v2058, 88
  %v2074 = vpop.permute.xlu0 %2073
  %2075 = vrot.lane.b32.xlu0 %v2060, 88
  %v2076 = vpop.permute.xlu0 %2075
  %2085 = vrot.lane.b32.xlu0 %v1404, 96
  %v2086 = vpop.permute.xlu0 %2085
  %2087 = vrot.lane.b32.xlu0 %v1405, 96
  %v2088 = vpop.permute.xlu0 %2087
  %2089 = vrot.lane.b32.xlu0 %v1406, 96
  %v2090 = vpop.permute.xlu0 %2089
  %2091 = vrot.lane.b32.xlu0 %v1407, 96
  %v2092 = vpop.permute.xlu0 %2091
  %2093 = vrot.lane.b32.xlu0 %v1408, 96
  %v2094 = vpop.permute.xlu0 %2093
  %2095 = vrot.lane.b32.xlu0 %v1409, 96
  %v2096 = vpop.permute.xlu0 %2095
  %2097 = vrot.lane.b32.xlu0 %v1410, 96
  %v2098 = vpop.permute.xlu0 %2097
  %2099 = vrot.lane.b32.xlu0 %v1411, 96
  %v2100 = vpop.permute.xlu0 %2099
  %v2102 = vshrl.u32 %v1404, 16
  %v2104 = vshll.u32 %v1404, 16
  %v2106 = vrot.slane %v2104, 1
  %v2107 = vor.u32 %v2102, %v2106
  %v2109 = vshll.u32 %v1405, 16
  %v2111 = vrot.slane %v2109, 1
  %v2112 = vsel %vm1420, %v2107, %v2111
  %v2113 = vshrl.u32 %v1405, 16
  %v2115 = vor.u32 %v2113, %v2111
  %v2117 = vshll.u32 %v1406, 16
  %v2119 = vrot.slane %v2117, 1
  %v2120 = vsel %vm1420, %v2115, %v2119
  %v2121 = vshrl.u32 %v1406, 16
  %v2123 = vor.u32 %v2121, %v2119
  %v2125 = vshll.u32 %v1407, 16
  %v2127 = vrot.slane %v2125, 1
  %v2128 = vsel %vm1420, %v2123, %v2127
  %v2129 = vshrl.u32 %v1407, 16
  %v2131 = vor.u32 %v2129, %v2127
  %v2133 = vshll.u32 %v1412, 16
  %v2135 = vrot.slane %v2133, 1
  %v2136 = vsel %vm1420, %v2131, %v2135
  %v2138 = vshrl.u32 %v1408, 16
  %v2140 = vshll.u32 %v1408, 16
  %v2142 = vrot.slane %v2140, 1
  %v2143 = vor.u32 %v2138, %v2142
  %v2145 = vshll.u32 %v1409, 16
  %v2147 = vrot.slane %v2145, 1
  %v2148 = vsel %vm1420, %v2143, %v2147
  %v2149 = vshrl.u32 %v1409, 16
  %v2151 = vor.u32 %v2149, %v2147
  %v2153 = vshll.u32 %v1410, 16
  %v2155 = vrot.slane %v2153, 1
  %v2156 = vsel %vm1420, %v2151, %v2155
  %v2157 = vshrl.u32 %v1410, 16
  %v2159 = vor.u32 %v2157, %v2155
  %v2161 = vshll.u32 %v1411, 16
  %v2163 = vrot.slane %v2161, 1
  %v2164 = vsel %vm1420, %v2159, %v2163
  %v2165 = vshrl.u32 %v1411, 16
  %v2167 = vor.u32 %v2165, %v2163
  %v2169 = vshll.u32 %v1413, 16
  %v2171 = vrot.slane %v2169, 1
  %v2172 = vsel %vm1420, %v2167, %v2171
  %2173 = vrot.lane.b32.xlu0 %v2112, 104
  %v2174 = vpop.permute.xlu0 %2173
  %2175 = vrot.lane.b32.xlu0 %v2120, 104
  %v2176 = vpop.permute.xlu0 %2175
  %2177 = vrot.lane.b32.xlu0 %v2128, 104
  %v2178 = vpop.permute.xlu0 %2177
  %2179 = vrot.lane.b32.xlu0 %v2136, 104
  %v2180 = vpop.permute.xlu0 %2179
  %2181 = vrot.lane.b32.xlu0 %v2148, 104
  %v2182 = vpop.permute.xlu0 %2181
  %2183 = vrot.lane.b32.xlu0 %v2156, 104
  %v2184 = vpop.permute.xlu0 %2183
  %2185 = vrot.lane.b32.xlu0 %v2164, 104
  %v2186 = vpop.permute.xlu0 %2185
  %2187 = vrot.lane.b32.xlu0 %v2172, 104
  %v2188 = vpop.permute.xlu0 %2187
  %v2190 = vshrl.u32 %v1414, 16
  %v2192 = vrot.slane %v2190, 4
  %v2193 = vshll.u32 %v1414, 16
  %v2195 = vrot.slane %v2193, 5
  %v2196 = vor.u32 %v2192, %v2195
  %v2197 = vrot.slane %v2113, 4
  %v2198 = vrot.slane %v2109, 5
  %v2199 = vor.u32 %v2197, %v2198
  %v2200 = vsel %vm1509, %v2196, %v2199
  %v2201 = vrot.slane %v2121, 4
  %v2202 = vrot.slane %v2117, 5
  %v2203 = vor.u32 %v2201, %v2202
  %v2204 = vsel %vm1509, %v2199, %v2203
  %v2205 = vrot.slane %v2129, 4
  %v2206 = vrot.slane %v2125, 5
  %v2207 = vor.u32 %v2205, %v2206
  %v2208 = vsel %vm1509, %v2203, %v2207
  %v2210 = vshrl.u32 %v1415, 16
  %v2212 = vrot.slane %v2210, 4
  %v2213 = vshll.u32 %v1415, 16
  %v2215 = vrot.slane %v2213, 5
  %v2216 = vor.u32 %v2212, %v2215
  %v2217 = vsel %vm1509, %v2207, %v2216
  %v2219 = vshrl.u32 %v1416, 16
  %v2221 = vrot.slane %v2219, 4
  %v2222 = vshll.u32 %v1416, 16
  %v2224 = vrot.slane %v2222, 5
  %v2225 = vor.u32 %v2221, %v2224
  %v2226 = vrot.slane %v2149, 4
  %v2227 = vrot.slane %v2145, 5
  %v2228 = vor.u32 %v2226, %v2227
  %v2229 = vsel %vm1509, %v2225, %v2228
  %v2230 = vrot.slane %v2157, 4
  %v2231 = vrot.slane %v2153, 5
  %v2232 = vor.u32 %v2230, %v2231
  %v2233 = vsel %vm1509, %v2228, %v2232
  %v2234 = vrot.slane %v2165, 4
  %v2235 = vrot.slane %v2161, 5
  %v2236 = vor.u32 %v2234, %v2235
  %v2237 = vsel %vm1509, %v2232, %v2236
  %v2239 = vshrl.u32 %v1417, 16
  %v2241 = vrot.slane %v2239, 4
  %v2242 = vshll.u32 %v1417, 16
  %v2244 = vrot.slane %v2242, 5
  %v2245 = vor.u32 %v2241, %v2244
  %v2246 = vsel %vm1509, %v2236, %v2245
  %2247 = vrot.lane.b32.xlu0 %v2200, 112
  %v2248 = vpop.permute.xlu0 %2247
  %2249 = vrot.lane.b32.xlu0 %v2204, 112
  %v2250 = vpop.permute.xlu0 %2249
  %2251 = vrot.lane.b32.xlu0 %v2208, 112
  %v2252 = vpop.permute.xlu0 %2251
  %2253 = vrot.lane.b32.xlu0 %v2217, 112
  %v2254 = vpop.permute.xlu0 %2253
  %2255 = vrot.lane.b32.xlu0 %v2229, 112
  %v2256 = vpop.permute.xlu0 %2255
  %2257 = vrot.lane.b32.xlu0 %v2233, 112
  %v2258 = vpop.permute.xlu0 %2257
  %2259 = vrot.lane.b32.xlu0 %v2237, 112
  %v2260 = vpop.permute.xlu0 %2259
  %2261 = vrot.lane.b32.xlu0 %v2246, 112
  %v2262 = vpop.permute.xlu0 %2261
  %v2267 = vrot.slane %v1418, 5
  %v2268 = vrot.slane %v1405, 5
  %v2269 = vsel %vm1594, %v2267, %v2268
  %v2270 = vrot.slane %v1406, 5
  %v2271 = vsel %vm1594, %v2268, %v2270
  %v2272 = vrot.slane %v1407, 5
  %v2273 = vsel %vm1594, %v2270, %v2272
  %v2274 = vrot.slane %v1415, 5
  %v2275 = vsel %vm1594, %v2272, %v2274
  %v2276 = vrot.slane %v1419, 5
  %v2277 = vrot.slane %v1409, 5
  %v2278 = vsel %vm1594, %v2276, %v2277
  %v2279 = vrot.slane %v1410, 5
  %v2280 = vsel %vm1594, %v2277, %v2279
  %v2281 = vrot.slane %v1411, 5
  %v2282 = vsel %vm1594, %v2279, %v2281
  %v2283 = vrot.slane %v1417, 5
  %v2284 = vsel %vm1594, %v2281, %v2283
  %2285 = vrot.lane.b32.xlu0 %v2269, 120
  %v2286 = vpop.permute.xlu0 %2285
  %2287 = vrot.lane.b32.xlu0 %v2271, 120
  %v2288 = vpop.permute.xlu0 %2287
  %2289 = vrot.lane.b32.xlu0 %v2273, 120
  %v2290 = vpop.permute.xlu0 %2289
  %2291 = vrot.lane.b32.xlu0 %v2275, 120
  %v2292 = vpop.permute.xlu0 %2291
  %2293 = vrot.lane.b32.xlu0 %v2278, 120
  %v2294 = vpop.permute.xlu0 %2293
  %2295 = vrot.lane.b32.xlu0 %v2280, 120
  %v2296 = vpop.permute.xlu0 %2295
  %2297 = vrot.lane.b32.xlu0 %v2282, 120
  %v2298 = vpop.permute.xlu0 %2297
  %2299 = vrot.lane.b32.xlu0 %v2284, 120
  %v2300 = vpop.permute.xlu0 %2299
  %v2302 = vsel %vm1307, %v1356, %v1494
  %v2304 = vsel %vm1307, %v1357, %v1496
  %v2306 = vsel %vm1307, %v1358, %v1498
  %v2308 = vsel %vm1307, %v1359, %v1500
  %v2310 = vsel %vm1307, %v1360, %v1502
  %v2312 = vsel %vm1307, %v1361, %v1504
  %v2314 = vsel %vm1307, %v1362, %v1506
  %v2316 = vsel %vm1307, %v1363, %v1508
  %v2318 = vsel %vm250, %v2302, %v1569
  %v2320 = vsel %vm250, %v2304, %v1571
  %v2322 = vsel %vm250, %v2306, %v1573
  %v2324 = vsel %vm250, %v2308, %v1575
  %v2326 = vsel %vm250, %v2310, %v1577
  %v2328 = vsel %vm250, %v2312, %v1579
  %v2330 = vsel %vm250, %v2314, %v1581
  %v2332 = vsel %vm250, %v2316, %v1583
  %vm2333 = vcmask 195584
  %v2335 = vsel %vm2333, %v2318, %v1614
  %v2337 = vsel %vm2333, %v2320, %v1616
  %v2339 = vsel %vm2333, %v2322, %v1618
  %v2341 = vsel %vm2333, %v2324, %v1620
  %v2343 = vsel %vm2333, %v2326, %v1622
  %v2345 = vsel %vm2333, %v2328, %v1624
  %v2347 = vsel %vm2333, %v2330, %v1626
  %v2349 = vsel %vm2333, %v2332, %v1628
  %vm2350 = vcmask 261120
  %v2352 = vsel %vm2350, %v2335, %v1638
  %v2354 = vsel %vm2350, %v2337, %v1640
  %v2356 = vsel %vm2350, %v2339, %v1642
  %v2358 = vsel %vm2350, %v2341, %v1644
  %v2360 = vsel %vm2350, %v2343, %v1646
  %v2362 = vsel %vm2350, %v2345, %v1648
  %v2364 = vsel %vm2350, %v2347, %v1650
  %v2366 = vsel %vm2350, %v2349, %v1652
  %vm2367 = vcmask 326656
  %v2369 = vsel %vm2367, %v2352, %v1726
  %v2371 = vsel %vm2367, %v2354, %v1728
  %v2373 = vsel %vm2367, %v2356, %v1730
  %v2375 = vsel %vm2367, %v2358, %v1732
  %v2377 = vsel %vm2367, %v2360, %v1734
  %v2379 = vsel %vm2367, %v2362, %v1736
  %v2381 = vsel %vm2367, %v2364, %v1738
  %v2383 = vsel %vm2367, %v2366, %v1740
  %vm2384 = vcmask 392192
  %v2386 = vsel %vm2384, %v2369, %v1800
  %v2388 = vsel %vm2384, %v2371, %v1802
  %v2390 = vsel %vm2384, %v2373, %v1804
  %v2392 = vsel %vm2384, %v2375, %v1806
  %v2394 = vsel %vm2384, %v2377, %v1808
  %v2396 = vsel %vm2384, %v2379, %v1810
  %v2398 = vsel %vm2384, %v2381, %v1812
  %v2400 = vsel %vm2384, %v2383, %v1814
  %vm2401 = vcmask 457728
  %v2403 = vsel %vm2401, %v2386, %v1838
  %v2405 = vsel %vm2401, %v2388, %v1840
  %v2407 = vsel %vm2401, %v2390, %v1842
  %v2409 = vsel %vm2401, %v2392, %v1844
  %v2411 = vsel %vm2401, %v2394, %v1846
  %v2413 = vsel %vm2401, %v2396, %v1848
  %v2415 = vsel %vm2401, %v2398, %v1850
  %v2417 = vsel %vm2401, %v2400, %v1852
  %vm2418 = vcmask 523264
  %v2420 = vsel %vm2418, %v2403, %v1862
  %v2422 = vsel %vm2418, %v2405, %v1864
  %v2424 = vsel %vm2418, %v2407, %v1866
  %v2426 = vsel %vm2418, %v2409, %v1868
  %v2428 = vsel %vm2418, %v2411, %v1870
  %v2430 = vsel %vm2418, %v2413, %v1872
  %v2432 = vsel %vm2418, %v2415, %v1874
  %v2434 = vsel %vm2418, %v2417, %v1876
  %vm2435 = vcmask 588800
  %v2437 = vsel %vm2435, %v2420, %v1950
  %v2439 = vsel %vm2435, %v2422, %v1952
  %v2441 = vsel %vm2435, %v2424, %v1954
  %v2443 = vsel %vm2435, %v2426, %v1956
  %v2445 = vsel %vm2435, %v2428, %v1958
  %v2447 = vsel %vm2435, %v2430, %v1960
  %v2449 = vsel %vm2435, %v2432, %v1962
  %v2451 = vsel %vm2435, %v2434, %v1964
  %vm2452 = vcmask 654336
  %v2454 = vsel %vm2452, %v2437, %v2024
  %v2456 = vsel %vm2452, %v2439, %v2026
  %v2458 = vsel %vm2452, %v2441, %v2028
  %v2460 = vsel %vm2452, %v2443, %v2030
  %v2462 = vsel %vm2452, %v2445, %v2032
  %v2464 = vsel %vm2452, %v2447, %v2034
  %v2466 = vsel %vm2452, %v2449, %v2036
  %v2468 = vsel %vm2452, %v2451, %v2038
  %vm2469 = vcmask 719872
  %v2471 = vsel %vm2469, %v2454, %v2062
  %v2473 = vsel %vm2469, %v2456, %v2064
  %v2475 = vsel %vm2469, %v2458, %v2066
  %v2477 = vsel %vm2469, %v2460, %v2068
  %v2479 = vsel %vm2469, %v2462, %v2070
  %v2481 = vsel %vm2469, %v2464, %v2072
  %v2483 = vsel %vm2469, %v2466, %v2074
  %v2485 = vsel %vm2469, %v2468, %v2076
  %vm2486 = vcmask 785408
  %v2488 = vsel %vm2486, %v2471, %v2086
  %v2490 = vsel %vm2486, %v2473, %v2088
  %v2492 = vsel %vm2486, %v2475, %v2090
  %v2494 = vsel %vm2486, %v2477, %v2092
  %v2496 = vsel %vm2486, %v2479, %v2094
  %v2498 = vsel %vm2486, %v2481, %v2096
  %v2500 = vsel %vm2486, %v2483, %v2098
  %v2502 = vsel %vm2486, %v2485, %v2100
  %vm2503 = vcmask 850944
  %v2505 = vsel %vm2503, %v2488, %v2174
  %v2507 = vsel %vm2503, %v2490, %v2176
  %v2509 = vsel %vm2503, %v2492, %v2178
  %v2511 = vsel %vm2503, %v2494, %v2180
  %v2513 = vsel %vm2503, %v2496, %v2182
  %v2515 = vsel %vm2503, %v2498, %v2184
  %v2517 = vsel %vm2503, %v2500, %v2186
  %v2519 = vsel %vm2503, %v2502, %v2188
  %vm2520 = vcmask 916480
  %v2522 = vsel %vm2520, %v2505, %v2248
  %v2524 = vsel %vm2520, %v2507, %v2250
  %v2526 = vsel %vm2520, %v2509, %v2252
  %v2528 = vsel %vm2520, %v2511, %v2254
  %v2530 = vsel %vm2520, %v2513, %v2256
  %v2532 = vsel %vm2520, %v2515, %v2258
  %v2534 = vsel %vm2520, %v2517, %v2260
  %v2536 = vsel %vm2520, %v2519, %v2262
  %vm2537 = vcmask 982016
  %v2539 = vsel %vm2537, %v2522, %v2286
  %v2542 = vsel %vm2537, %v2524, %v2288
  %v2545 = vsel %vm2537, %v2526, %v2290
  %v2548 = vsel %vm2537, %v2528, %v2292
  %v2551 = vsel %vm2537, %v2530, %v2294
  %v2554 = vsel %vm2537, %v2532, %v2296
  %v2557 = vsel %vm2537, %v2534, %v2298
  %v2560 = vsel %vm2537, %v2536, %v2300
  %v2562 = vld [vmem:[%s2] sm:$0xf]
  %v2563 = vld [vmem:[%s2 + $0x4] sm:$0xf]
  %v2564 = vld [vmem:[%s2 + $0x8] sm:$0xf]
  %v2565 = vld [vmem:[%s2 + $0xc] sm:$0xf]
  %v2566 = vld [vmem:[%s2 + $0x10] sm:$0xf]
  %v2567 = vld [vmem:[%s2 + $0x14] sm:$0xf]
  %v2568 = vld [vmem:[%s2 + $0x18] sm:$0xf]
  %v2569 = vld [vmem:[%s2 + $0x1c] sm:$0xf]
  %v2570 = vld [vmem:[%s2 + $0x20] sm:$0xf]
  %v2571 = vld [vmem:[%s2 + $0x24] sm:$0xf]
  %v2572 = vld [vmem:[%s2 + $0x28] sm:$0xf]
  %v2573 = vld [vmem:[%s2 + $0x2c] sm:$0xf]
  %v2574 = vld [vmem:[%s2 + $0x30] sm:$0xf]
  %v2575 = vld [vmem:[%s2 + $0x34] sm:$0xf]
  %v2576 = vld [vmem:[%s2 + $0x38] sm:$0xf]
  %v2577 = vld [vmem:[%s2 + $0x3c] sm:$0xf]
  %v2594 = vunpack.c.l.b16 %v2562
  %v2595 = vunpack.c.l.b16 %v2563
  %v2596 = vunpack.c.l.b16 %v2564
  %v2597 = vunpack.c.l.b16 %v2565
  %v2598 = vunpack.c.l.b16 %v2566
  %v2599 = vunpack.c.l.b16 %v2567
  %v2600 = vunpack.c.l.b16 %v2568
  %v2601 = vunpack.c.l.b16 %v2569
  %v2602 = vunpack.c.l.b16 %v2570
  %v2603 = vunpack.c.l.b16 %v2571
  %v2604 = vunpack.c.l.b16 %v2572
  %v2605 = vunpack.c.l.b16 %v2573
  %v2606 = vunpack.c.l.b16 %v2574
  %v2607 = vunpack.c.l.b16 %v2575
  %v2608 = vunpack.c.l.b16 %v2576
  %v2609 = vunpack.c.l.b16 %v2577
  %v2610 = vpack.c.b16 %v2595, %v2594
  %v2611 = vpack.c.b16 %v2597, %v2596
  %v2612 = vpack.c.b16 %v2599, %v2598
  %v2613 = vpack.c.b16 %v2601, %v2600
  %v2614 = vpack.c.b16 %v2603, %v2602
  %v2615 = vpack.c.b16 %v2605, %v2604
  %v2616 = vpack.c.b16 %v2607, %v2606
  %v2617 = vpack.c.b16 %v2609, %v2608
  %2626 = vmatprep.subr.bf16.mxu0 0
  %2627 = vmatpush1.bf16.msra.mxu0 %v2610
  %2628 = vmatprep.subr.bf16.mxu0 0
  %2629 = vmatpush1.bf16.msra.mxu0 %v2611
  %2630 = vmatprep.subr.bf16.mxu0 0
  %2631 = vmatpush1.bf16.msra.mxu0 %v2612
  %2632 = vmatprep.subr.bf16.mxu0 0
  %2633 = vmatpush1.bf16.msra.mxu0 %v2613
  %2634 = vmatprep.subr.bf16.mxu0 0
  %2635 = vmatpush1.bf16.msra.mxu0 %v2614
  %2636 = vmatprep.subr.bf16.mxu0 0
  %2637 = vmatpush1.bf16.msra.mxu0 %v2615
  %2638 = vmatprep.subr.bf16.mxu0 0
  %2639 = vmatpush1.bf16.msra.mxu0 %v2616
  %2640 = vmatprep.subr.bf16.mxu0 0
  %2641 = vmatpush1.bf16.msra.mxu0 %v2617
  %2642 = vmatprep.subr.bf16.mxu0 0
  %2643 = vmatpush1.bf16.msra.mxu0 0
  %2644 = vmatprep.subr.bf16.mxu0 0
  %2645 = vmatpush1.bf16.msra.mxu0 0
  %2646 = vmatprep.subr.bf16.mxu0 0
  %2647 = vmatpush1.bf16.msra.mxu0 0
  %2648 = vmatprep.subr.bf16.mxu0 0
  %2649 = vmatpush1.bf16.msra.mxu0 0
  %2650 = vmatprep.subr.bf16.mxu0 0
  %2651 = vmatpush1.bf16.msra.mxu0 0
  %2652 = vmatprep.subr.bf16.mxu0 0
  %2653 = vmatpush1.bf16.msra.mxu0 0
  %2654 = vmatprep.subr.bf16.mxu0 0
  %2655 = vmatpush1.bf16.msra.mxu0 0
  %2656 = vmatprep.subr.bf16.mxu0 0
  %2657 = vmatpush1.bf16.msra.mxu0 0
  %2658 = vmatprep.mubr.bf16.mxu0 0
  %2659 = vmatmul.mubr.bf16.gmra.mrb[0].mxu0 %v2539
  %v2660 = vpop.f32.mrb[0].mxu0
  %v2661 = vadd.f32 0.0, %v2660
  %v2662 = vpop.f32.mrb[0].mxu0
  %v2663 = vpop.f32.mrb[0].mxu0
  %v2664 = vadd.f32 0.0, %v2663
  %v2665 = vpop.f32.mrb[0].mxu0
  %2666 = vmatprep.mubr.bf16.mxu0 0
  %2667 = vmatmul.mubr.bf16.gmra.mrb[0].mxu0 %v2542
  %v2668 = vpop.f32.mrb[0].mxu0
  %v2669 = vadd.f32 0.0, %v2668
  %v2670 = vpop.f32.mrb[0].mxu0
  %v2671 = vpop.f32.mrb[0].mxu0
  %v2672 = vadd.f32 0.0, %v2671
  %v2673 = vpop.f32.mrb[0].mxu0
  %2674 = vmatprep.mubr.bf16.mxu0 0
  %2675 = vmatmul.mubr.bf16.gmra.mrb[0].mxu0 %v2545
  %v2676 = vpop.f32.mrb[0].mxu0
  %v2677 = vadd.f32 0.0, %v2676
  %v2678 = vpop.f32.mrb[0].mxu0
  %v2679 = vpop.f32.mrb[0].mxu0
  %v2680 = vadd.f32 0.0, %v2679
  %v2681 = vpop.f32.mrb[0].mxu0
  %2682 = vmatprep.mubr.bf16.mxu0 0
  %2683 = vmatmul.mubr.bf16.gmra.mrb[0].mxu0 %v2548
  %v2684 = vpop.f32.mrb[0].mxu0
  %v2685 = vadd.f32 0.0, %v2684
  %v2686 = vpop.f32.mrb[0].mxu0
  %v2687 = vpop.f32.mrb[0].mxu0
  %v2688 = vadd.f32 0.0, %v2687
  %v2689 = vpop.f32.mrb[0].mxu0
  %2690 = vmatprep.mubr.bf16.mxu0 0
  %2691 = vmatmul.mubr.bf16.gmra.mrb[0].mxu0 %v2551
  %v2692 = vpop.f32.mrb[0].mxu0
  %v2693 = vadd.f32 0.0, %v2692
  %v2694 = vpop.f32.mrb[0].mxu0
  %v2695 = vpop.f32.mrb[0].mxu0
  %v2696 = vadd.f32 0.0, %v2695
  %v2697 = vpop.f32.mrb[0].mxu0
  %2698 = vmatprep.mubr.bf16.mxu0 0
  %2699 = vmatmul.mubr.bf16.gmra.mrb[0].mxu0 %v2554
  %v2700 = vpop.f32.mrb[0].mxu0
  %v2701 = vadd.f32 0.0, %v2700
  %v2702 = vpop.f32.mrb[0].mxu0
  %v2703 = vpop.f32.mrb[0].mxu0
  %v2704 = vadd.f32 0.0, %v2703
  %v2705 = vpop.f32.mrb[0].mxu0
  %2706 = vmatprep.mubr.bf16.mxu0 0
  %2707 = vmatmul.mubr.bf16.gmra.mrb[0].mxu0 %v2557
  %v2708 = vpop.f32.mrb[0].mxu0
  %v2709 = vadd.f32 0.0, %v2708
  %v2710 = vpop.f32.mrb[0].mxu0
  %v2711 = vpop.f32.mrb[0].mxu0
  %v2712 = vadd.f32 0.0, %v2711
  %v2713 = vpop.f32.mrb[0].mxu0
  %2714 = vmatprep.mubr.bf16.mxu0 0
  %2715 = vmatmul.mubr.bf16.gmra.mrb[0].mxu0 %v2560
  %v2716 = vpop.f32.mrb[0].mxu0
  %v2717 = vadd.f32 0.0, %v2716
  %v2718 = vpop.f32.mrb[0].mxu0
  %v2719 = vpop.f32.mrb[0].mxu0
  %v2720 = vadd.f32 0.0, %v2719
  %v2721 = vpop.f32.mrb[0].mxu0
  %2722 = vdwg.mxu0
  %s2723 = smul.u32 0, 128
  %s2724 = scalar_lea.vmem [#allocation3], %s2723
  %2725 = vst.msk [vmem:[%s2724] sm:$0xff] %vm250, %v2661
  %2726 = vst.msk [vmem:[%s2724 + $0x8] sm:$0xff] %vm250, %v2664
  %2727 = vst.msk [vmem:[%s2724 + $0x10] sm:$0xff] %vm250, %v2669
  %2728 = vst.msk [vmem:[%s2724 + $0x18] sm:$0xff] %vm250, %v2672
  %2729 = vst.msk [vmem:[%s2724 + $0x20] sm:$0xff] %vm250, %v2677
  %2730 = vst.msk [vmem:[%s2724 + $0x28] sm:$0xff] %vm250, %v2680
  %2731 = vst.msk [vmem:[%s2724 + $0x30] sm:$0xff] %vm250, %v2685
  %2732 = vst.msk [vmem:[%s2724 + $0x38] sm:$0xff] %vm250, %v2688
  %2733 = vst.msk [vmem:[%s2724 + $0x40] sm:$0xff] %vm250, %v2693
  %2734 = vst.msk [vmem:[%s2724 + $0x48] sm:$0xff] %vm250, %v2696
  %2735 = vst.msk [vmem:[%s2724 + $0x50] sm:$0xff] %vm250, %v2701
  %2736 = vst.msk [vmem:[%s2724 + $0x58] sm:$0xff] %vm250, %v2704
  %2737 = vst.msk [vmem:[%s2724 + $0x60] sm:$0xff] %vm250, %v2709
  %2738 = vst.msk [vmem:[%s2724 + $0x68] sm:$0xff] %vm250, %v2712
  %2739 = vst.msk [vmem:[%s2724 + $0x70] sm:$0xff] %vm250, %v2717
  %2740 = vst.msk [vmem:[%s2724 + $0x78] sm:$0xff] %vm250, %v2720
  %p2741 = scmp.eq.s32.totalorder 0, 0
  // Predicated region
  $region26: #{discriminator_forward.1} parent=0 // pred_check
    %p2742 = pneg %p2741
  $region27: #{discriminator_forward.1} parent=0 // pred_check_branch
    %2744 = sbr.rel (%p2742) target = $region29
  $region28: #{discriminator_forward.1} parent=0 // pred_region
    %2745 = vst.msk [vmem:[#allocation4] sm:$0xff] %vm250, 0.0
    %2746 = vst.msk [vmem:[#allocation5] sm:$0xff] %vm250, 0.0
  $region29: #{discriminator_forward.1} parent=0 // pred_fallthru
    _
  %v2747 = vlaneseq
  %v2748 = vshrl.u32 %v2747, 7
  %v2749 = vadd.s32 %v2748, 8
  %v2750 = vadd.s32 %v2748, 16
  %v2751 = vadd.s32 %v2748, 24
  %v2752 = vadd.s32 %v2748, 32
  %v2753 = vadd.s32 %v2748, 40
  %v2754 = vadd.s32 %v2748, 48
  %v2755 = vadd.s32 %v2748, 56
  %v2756 = vadd.s32 %v2748, 64
  %v2757 = vadd.s32 %v2748, 72
  %v2758 = vadd.s32 %v2748, 80
  %v2759 = vadd.s32 %v2748, 88
  %v2760 = vadd.s32 %v2748, 96
  %v2761 = vadd.s32 %v2748, 104
  %v2762 = vadd.s32 %v2748, 112
  %v2763 = vadd.s32 %v2748, 120
  %v2764 = vand.u32 %v2748, 63
  %v2765 = vand.u32 %v2749, 63
  %v2766 = vand.u32 %v2750, 63
  %v2767 = vand.u32 %v2751, 63
  %v2768 = vand.u32 %v2752, 63
  %v2769 = vand.u32 %v2753, 63
  %v2770 = vand.u32 %v2754, 63
  %v2771 = vand.u32 %v2755, 63
  %v2772 = vand.u32 %v2756, 63
  %v2773 = vand.u32 %v2757, 63
  %v2774 = vand.u32 %v2758, 63
  %v2775 = vand.u32 %v2759, 63
  %v2776 = vand.u32 %v2760, 63
  %v2777 = vand.u32 %v2761, 63
  %v2778 = vand.u32 %v2762, 63
  %v2779 = vand.u32 %v2763, 63
  %vm2780 = vcmp.ge.s32.totalorder %v2764, 9
  %vm2781 = vcmp.ge.s32.totalorder %v2765, 9
  %vm2782 = vcmp.ge.s32.totalorder %v2766, 9
  %vm2783 = vcmp.ge.s32.totalorder %v2767, 9
  %vm2784 = vcmp.ge.s32.totalorder %v2768, 9
  %vm2785 = vcmp.ge.s32.totalorder %v2769, 9
  %vm2786 = vcmp.ge.s32.totalorder %v2770, 9
  %vm2787 = vcmp.ge.s32.totalorder %v2771, 9
  %vm2788 = vcmp.ge.s32.totalorder %v2772, 9
  %vm2789 = vcmp.ge.s32.totalorder %v2773, 9
  %vm2790 = vcmp.ge.s32.totalorder %v2774, 9
  %vm2791 = vcmp.ge.s32.totalorder %v2775, 9
  %vm2792 = vcmp.ge.s32.totalorder %v2776, 9
  %vm2793 = vcmp.ge.s32.totalorder %v2777, 9
  %vm2794 = vcmp.ge.s32.totalorder %v2778, 9
  %vm2795 = vcmp.ge.s32.totalorder %v2779, 9
  %v2796 = vsel %vm2780, 1, 0
  %v2797 = vsel %vm2781, 1, 0
  %v2798 = vsel %vm2782, 1, 0
  %v2799 = vsel %vm2783, 1, 0
  %v2800 = vsel %vm2784, 1, 0
  %v2801 = vsel %vm2785, 1, 0
  %v2802 = vsel %vm2786, 1, 0
  %v2803 = vsel %vm2787, 1, 0
  %v2804 = vsel %vm2788, 1, 0
  %v2805 = vsel %vm2789, 1, 0
  %v2806 = vsel %vm2790, 1, 0
  %v2807 = vsel %vm2791, 1, 0
  %v2808 = vsel %vm2792, 1, 0
  %v2809 = vsel %vm2793, 1, 0
  %v2810 = vsel %vm2794, 1, 0
  %v2811 = vsel %vm2795, 1, 0
  %vm2812 = vcmp.ge.s32.totalorder %v2764, 18
  %vm2813 = vcmp.ge.s32.totalorder %v2765, 18
  %vm2814 = vcmp.ge.s32.totalorder %v2766, 18
  %vm2815 = vcmp.ge.s32.totalorder %v2767, 18
  %vm2816 = vcmp.ge.s32.totalorder %v2768, 18
  %vm2817 = vcmp.ge.s32.totalorder %v2769, 18
  %vm2818 = vcmp.ge.s32.totalorder %v2770, 18
  %vm2819 = vcmp.ge.s32.totalorder %v2771, 18
  %vm2820 = vcmp.ge.s32.totalorder %v2772, 18
  %vm2821 = vcmp.ge.s32.totalorder %v2773, 18
  %vm2822 = vcmp.ge.s32.totalorder %v2774, 18
  %vm2823 = vcmp.ge.s32.totalorder %v2775, 18
  %vm2824 = vcmp.ge.s32.totalorder %v2776, 18
  %vm2825 = vcmp.ge.s32.totalorder %v2777, 18
  %vm2826 = vcmp.ge.s32.totalorder %v2778, 18
  %vm2827 = vcmp.ge.s32.totalorder %v2779, 18
  %v2828 = vsel %vm2812, 1, 0
  %v2829 = vsel %vm2813, 1, 0
  %v2830 = vsel %vm2814, 1, 0
  %v2831 = vsel %vm2815, 1, 0
  %v2832 = vsel %vm2816, 1, 0
  %v2833 = vsel %vm2817, 1, 0
  %v2834 = vsel %vm2818, 1, 0
  %v2835 = vsel %vm2819, 1, 0
  %v2836 = vsel %vm2820, 1, 0
  %v2837 = vsel %vm2821, 1, 0
  %v2838 = vsel %vm2822, 1, 0
  %v2839 = vsel %vm2823, 1, 0
  %v2840 = vsel %vm2824, 1, 0
  %v2841 = vsel %vm2825, 1, 0
  %v2842 = vsel %vm2826, 1, 0
  %v2843 = vsel %vm2827, 1, 0
  %v2844 = vadd.s32 %v2796, %v2828
  %v2845 = vadd.s32 %v2797, %v2829
  %v2846 = vadd.s32 %v2798, %v2830
  %v2847 = vadd.s32 %v2799, %v2831
  %v2848 = vadd.s32 %v2800, %v2832
  %v2849 = vadd.s32 %v2801, %v2833
  %v2850 = vadd.s32 %v2802, %v2834
  %v2851 = vadd.s32 %v2803, %v2835
  %v2852 = vadd.s32 %v2804, %v2836
  %v2853 = vadd.s32 %v2805, %v2837
  %v2854 = vadd.s32 %v2806, %v2838
  %v2855 = vadd.s32 %v2807, %v2839
  %v2856 = vadd.s32 %v2808, %v2840
  %v2857 = vadd.s32 %v2809, %v2841
  %v2858 = vadd.s32 %v2810, %v2842
  %v2859 = vadd.s32 %v2811, %v2843
  %vm2860 = vcmp.ge.s32.totalorder %v2764, 27
  %vm2861 = vcmp.ge.s32.totalorder %v2765, 27
  %vm2862 = vcmp.ge.s32.totalorder %v2766, 27
  %vm2863 = vcmp.ge.s32.totalorder %v2767, 27
  %vm2864 = vcmp.ge.s32.totalorder %v2768, 27
  %vm2865 = vcmp.ge.s32.totalorder %v2769, 27
  %vm2866 = vcmp.ge.s32.totalorder %v2770, 27
  %vm2867 = vcmp.ge.s32.totalorder %v2771, 27
  %vm2868 = vcmp.ge.s32.totalorder %v2772, 27
  %vm2869 = vcmp.ge.s32.totalorder %v2773, 27
  %vm2870 = vcmp.ge.s32.totalorder %v2774, 27
  %vm2871 = vcmp.ge.s32.totalorder %v2775, 27
  %vm2872 = vcmp.ge.s32.totalorder %v2776, 27
  %vm2873 = vcmp.ge.s32.totalorder %v2777, 27
  %vm2874 = vcmp.ge.s32.totalorder %v2778, 27
  %vm2875 = vcmp.ge.s32.totalorder %v2779, 27
  %v2876 = vsel %vm2860, 1, 0
  %v2877 = vsel %vm2861, 1, 0
  %v2878 = vsel %vm2862, 1, 0
  %v2879 = vsel %vm2863, 1, 0
  %v2880 = vsel %vm2864, 1, 0
  %v2881 = vsel %vm2865, 1, 0
  %v2882 = vsel %vm2866, 1, 0
  %v2883 = vsel %vm2867, 1, 0
  %v2884 = vsel %vm2868, 1, 0
  %v2885 = vsel %vm2869, 1, 0
  %v2886 = vsel %vm2870, 1, 0
  %v2887 = vsel %vm2871, 1, 0
  %v2888 = vsel %vm2872, 1, 0
  %v2889 = vsel %vm2873, 1, 0
  %v2890 = vsel %vm2874, 1, 0
  %v2891 = vsel %vm2875, 1, 0
  %v2892 = vadd.s32 %v2844, %v2876
  %v2893 = vadd.s32 %v2845, %v2877
  %v2894 = vadd.s32 %v2846, %v2878
  %v2895 = vadd.s32 %v2847, %v2879
  %v2896 = vadd.s32 %v2848, %v2880
  %v2897 = vadd.s32 %v2849, %v2881
  %v2898 = vadd.s32 %v2850, %v2882
  %v2899 = vadd.s32 %v2851, %v2883
  %v2900 = vadd.s32 %v2852, %v2884
  %v2901 = vadd.s32 %v2853, %v2885
  %v2902 = vadd.s32 %v2854, %v2886
  %v2903 = vadd.s32 %v2855, %v2887
  %v2904 = vadd.s32 %v2856, %v2888
  %v2905 = vadd.s32 %v2857, %v2889
  %v2906 = vadd.s32 %v2858, %v2890
  %v2907 = vadd.s32 %v2859, %v2891
  %vm2908 = vcmp.ge.s32.totalorder %v2764, 36
  %vm2909 = vcmp.ge.s32.totalorder %v2765, 36
  %vm2910 = vcmp.ge.s32.totalorder %v2766, 36
  %vm2911 = vcmp.ge.s32.totalorder %v2767, 36
  %vm2912 = vcmp.ge.s32.totalorder %v2768, 36
  %vm2913 = vcmp.ge.s32.totalorder %v2769, 36
  %vm2914 = vcmp.ge.s32.totalorder %v2770, 36
  %vm2915 = vcmp.ge.s32.totalorder %v2771, 36
  %vm2916 = vcmp.ge.s32.totalorder %v2772, 36
  %vm2917 = vcmp.ge.s32.totalorder %v2773, 36
  %vm2918 = vcmp.ge.s32.totalorder %v2774, 36
  %vm2919 = vcmp.ge.s32.totalorder %v2775, 36
  %vm2920 = vcmp.ge.s32.totalorder %v2776, 36
  %vm2921 = vcmp.ge.s32.totalorder %v2777, 36
  %vm2922 = vcmp.ge.s32.totalorder %v2778, 36
  %vm2923 = vcmp.ge.s32.totalorder %v2779, 36
  %v2924 = vsel %vm2908, 1, 0
  %v2925 = vsel %vm2909, 1, 0
  %v2926 = vsel %vm2910, 1, 0
  %v2927 = vsel %vm2911, 1, 0
  %v2928 = vsel %vm2912, 1, 0
  %v2929 = vsel %vm2913, 1, 0
  %v2930 = vsel %vm2914, 1, 0
  %v2931 = vsel %vm2915, 1, 0
  %v2932 = vsel %vm2916, 1, 0
  %v2933 = vsel %vm2917, 1, 0
  %v2934 = vsel %vm2918, 1, 0
  %v2935 = vsel %vm2919, 1, 0
  %v2936 = vsel %vm2920, 1, 0
  %v2937 = vsel %vm2921, 1, 0
  %v2938 = vsel %vm2922, 1, 0
  %v2939 = vsel %vm2923, 1, 0
  %v2940 = vadd.s32 %v2892, %v2924
  %v2941 = vadd.s32 %v2893, %v2925
  %v2942 = vadd.s32 %v2894, %v2926
  %v2943 = vadd.s32 %v2895, %v2927
  %v2944 = vadd.s32 %v2896, %v2928
  %v2945 = vadd.s32 %v2897, %v2929
  %v2946 = vadd.s32 %v2898, %v2930
  %v2947 = vadd.s32 %v2899, %v2931
  %v2948 = vadd.s32 %v2900, %v2932
  %v2949 = vadd.s32 %v2901, %v2933
  %v2950 = vadd.s32 %v2902, %v2934
  %v2951 = vadd.s32 %v2903, %v2935
  %v2952 = vadd.s32 %v2904, %v2936
  %v2953 = vadd.s32 %v2905, %v2937
  %v2954 = vadd.s32 %v2906, %v2938
  %v2955 = vadd.s32 %v2907, %v2939
  %vm2956 = vcmp.ge.s32.totalorder %v2764, 45
  %vm2957 = vcmp.ge.s32.totalorder %v2765, 45
  %vm2958 = vcmp.ge.s32.totalorder %v2766, 45
  %vm2959 = vcmp.ge.s32.totalorder %v2767, 45
  %vm2960 = vcmp.ge.s32.totalorder %v2768, 45
  %vm2961 = vcmp.ge.s32.totalorder %v2769, 45
  %vm2962 = vcmp.ge.s32.totalorder %v2770, 45
  %vm2963 = vcmp.ge.s32.totalorder %v2771, 45
  %vm2964 = vcmp.ge.s32.totalorder %v2772, 45
  %vm2965 = vcmp.ge.s32.totalorder %v2773, 45
  %vm2966 = vcmp.ge.s32.totalorder %v2774, 45
  %vm2967 = vcmp.ge.s32.totalorder %v2775, 45
  %vm2968 = vcmp.ge.s32.totalorder %v2776, 45
  %vm2969 = vcmp.ge.s32.totalorder %v2777, 45
  %vm2970 = vcmp.ge.s32.totalorder %v2778, 45
  %vm2971 = vcmp.ge.s32.totalorder %v2779, 45
  %v2972 = vsel %vm2956, 1, 0
  %v2973 = vsel %vm2957, 1, 0
  %v2974 = vsel %vm2958, 1, 0
  %v2975 = vsel %vm2959, 1, 0
  %v2976 = vsel %vm2960, 1, 0
  %v2977 = vsel %vm2961, 1, 0
  %v2978 = vsel %vm2962, 1, 0
  %v2979 = vsel %vm2963, 1, 0
  %v2980 = vsel %vm2964, 1, 0
  %v2981 = vsel %vm2965, 1, 0
  %v2982 = vsel %vm2966, 1, 0
  %v2983 = vsel %vm2967, 1, 0
  %v2984 = vsel %vm2968, 1, 0
  %v2985 = vsel %vm2969, 1, 0
  %v2986 = vsel %vm2970, 1, 0
  %v2987 = vsel %vm2971, 1, 0
  %v2988 = vadd.s32 %v2940, %v2972
  %v2989 = vadd.s32 %v2941, %v2973
  %v2990 = vadd.s32 %v2942, %v2974
  %v2991 = vadd.s32 %v2943, %v2975
  %v2992 = vadd.s32 %v2944, %v2976
  %v2993 = vadd.s32 %v2945, %v2977
  %v2994 = vadd.s32 %v2946, %v2978
  %v2995 = vadd.s32 %v2947, %v2979
  %v2996 = vadd.s32 %v2948, %v2980
  %v2997 = vadd.s32 %v2949, %v2981
  %v2998 = vadd.s32 %v2950, %v2982
  %v2999 = vadd.s32 %v2951, %v2983
  %v3000 = vadd.s32 %v2952, %v2984
  %v3001 = vadd.s32 %v2953, %v2985
  %v3002 = vadd.s32 %v2954, %v2986
  %v3003 = vadd.s32 %v2955, %v2987
  %vm3004 = vcmp.ge.s32.totalorder %v2764, 54
  %vm3005 = vcmp.ge.s32.totalorder %v2765, 54
  %vm3006 = vcmp.ge.s32.totalorder %v2766, 54
  %vm3007 = vcmp.ge.s32.totalorder %v2767, 54
  %vm3008 = vcmp.ge.s32.totalorder %v2768, 54
  %vm3009 = vcmp.ge.s32.totalorder %v2769, 54
  %vm3010 = vcmp.ge.s32.totalorder %v2770, 54
  %vm3011 = vcmp.ge.s32.totalorder %v2771, 54
  %vm3012 = vcmp.ge.s32.totalorder %v2772, 54
  %vm3013 = vcmp.ge.s32.totalorder %v2773, 54
  %vm3014 = vcmp.ge.s32.totalorder %v2774, 54
  %vm3015 = vcmp.ge.s32.totalorder %v2775, 54
  %vm3016 = vcmp.ge.s32.totalorder %v2776, 54
  %vm3017 = vcmp.ge.s32.totalorder %v2777, 54
  %vm3018 = vcmp.ge.s32.totalorder %v2778, 54
  %vm3019 = vcmp.ge.s32.totalorder %v2779, 54
  %v3020 = vsel %vm3004, 1, 0
  %v3021 = vsel %vm3005, 1, 0
  %v3022 = vsel %vm3006, 1, 0
  %v3023 = vsel %vm3007, 1, 0
  %v3024 = vsel %vm3008, 1, 0
  %v3025 = vsel %vm3009, 1, 0
  %v3026 = vsel %vm3010, 1, 0
  %v3027 = vsel %vm3011, 1, 0
  %v3028 = vsel %vm3012, 1, 0
  %v3029 = vsel %vm3013, 1, 0
  %v3030 = vsel %vm3014, 1, 0
  %v3031 = vsel %vm3015, 1, 0
  %v3032 = vsel %vm3016, 1, 0
  %v3033 = vsel %vm3017, 1, 0
  %v3034 = vsel %vm3018, 1, 0
  %v3035 = vsel %vm3019, 1, 0
  %v3036 = vadd.s32 %v2988, %v3020
  %v3037 = vadd.s32 %v2989, %v3021
  %v3038 = vadd.s32 %v2990, %v3022
  %v3039 = vadd.s32 %v2991, %v3023
  %v3040 = vadd.s32 %v2992, %v3024
  %v3041 = vadd.s32 %v2993, %v3025
  %v3042 = vadd.s32 %v2994, %v3026
  %v3043 = vadd.s32 %v2995, %v3027
  %v3044 = vadd.s32 %v2996, %v3028
  %v3045 = vadd.s32 %v2997, %v3029
  %v3046 = vadd.s32 %v2998, %v3030
  %v3047 = vadd.s32 %v2999, %v3031
  %v3048 = vadd.s32 %v3000, %v3032
  %v3049 = vadd.s32 %v3001, %v3033
  %v3050 = vadd.s32 %v3002, %v3034
  %v3051 = vadd.s32 %v3003, %v3035
  %vm3052 = vcmp.ge.s32.totalorder %v2764, 63
  %vm3053 = vcmp.ge.s32.totalorder %v2765, 63
  %vm3054 = vcmp.ge.s32.totalorder %v2766, 63
  %vm3055 = vcmp.ge.s32.totalorder %v2767, 63
  %vm3056 = vcmp.ge.s32.totalorder %v2768, 63
  %vm3057 = vcmp.ge.s32.totalorder %v2769, 63
  %vm3058 = vcmp.ge.s32.totalorder %v2770, 63
  %vm3059 = vcmp.ge.s32.totalorder %v2771, 63
  %vm3060 = vcmp.ge.s32.totalorder %v2772, 63
  %vm3061 = vcmp.ge.s32.totalorder %v2773, 63
  %vm3062 = vcmp.ge.s32.totalorder %v2774, 63
  %vm3063 = vcmp.ge.s32.totalorder %v2775, 63
  %vm3064 = vcmp.ge.s32.totalorder %v2776, 63
  %vm3065 = vcmp.ge.s32.totalorder %v2777, 63
  %vm3066 = vcmp.ge.s32.totalorder %v2778, 63
  %vm3067 = vcmp.ge.s32.totalorder %v2779, 63
  %v3068 = vsel %vm3052, 1, 0
  %v3069 = vsel %vm3053, 1, 0
  %v3070 = vsel %vm3054, 1, 0
  %v3071 = vsel %vm3055, 1, 0
  %v3072 = vsel %vm3056, 1, 0
  %v3073 = vsel %vm3057, 1, 0
  %v3074 = vsel %vm3058, 1, 0
  %v3075 = vsel %vm3059, 1, 0
  %v3076 = vsel %vm3060, 1, 0
  %v3077 = vsel %vm3061, 1, 0
  %v3078 = vsel %vm3062, 1, 0
  %v3079 = vsel %vm3063, 1, 0
  %v3080 = vsel %vm3064, 1, 0
  %v3081 = vsel %vm3065, 1, 0
  %v3082 = vsel %vm3066, 1, 0
  %v3083 = vsel %vm3067, 1, 0
  %v3084 = vadd.s32 %v3036, %v3068
  %v3085 = vadd.s32 %v3037, %v3069
  %v3086 = vadd.s32 %v3038, %v3070
  %v3087 = vadd.s32 %v3039, %v3071
  %v3088 = vadd.s32 %v3040, %v3072
  %v3089 = vadd.s32 %v3041, %v3073
  %v3090 = vadd.s32 %v3042, %v3074
  %v3091 = vadd.s32 %v3043, %v3075
  %v3092 = vadd.s32 %v3044, %v3076
  %v3093 = vadd.s32 %v3045, %v3077
  %v3094 = vadd.s32 %v3046, %v3078
  %v3095 = vadd.s32 %v3047, %v3079
  %v3096 = vadd.s32 %v3048, %v3080
  %v3097 = vadd.s32 %v3049, %v3081
  %v3098 = vadd.s32 %v3050, %v3082
  %v3099 = vadd.s32 %v3051, %v3083
  %v3100 = vmul.u32 %v3084, 9
  %v3101 = vmul.u32 %v3085, 9
  %v3102 = vmul.u32 %v3086, 9
  %v3103 = vmul.u32 %v3087, 9
  %v3104 = vmul.u32 %v3088, 9
  %v3105 = vmul.u32 %v3089, 9
  %v3106 = vmul.u32 %v3090, 9
  %v3107 = vmul.u32 %v3091, 9
  %v3108 = vmul.u32 %v3092, 9
  %v3109 = vmul.u32 %v3093, 9
  %v3110 = vmul.u32 %v3094, 9
  %v3111 = vmul.u32 %v3095, 9
  %v3112 = vmul.u32 %v3096, 9
  %v3113 = vmul.u32 %v3097, 9
  %v3114 = vmul.u32 %v3098, 9
  %v3115 = vmul.u32 %v3099, 9
  %v3116 = vsub.s32 %v2764, %v3100
  %v3117 = vsub.s32 %v2765, %v3101
  %v3118 = vsub.s32 %v2766, %v3102
  %v3119 = vsub.s32 %v2767, %v3103
  %v3120 = vsub.s32 %v2768, %v3104
  %v3121 = vsub.s32 %v2769, %v3105
  %v3122 = vsub.s32 %v2770, %v3106
  %v3123 = vsub.s32 %v2771, %v3107
  %v3124 = vsub.s32 %v2772, %v3108
  %v3125 = vsub.s32 %v2773, %v3109
  %v3126 = vsub.s32 %v2774, %v3110
  %v3127 = vsub.s32 %v2775, %v3111
  %v3128 = vsub.s32 %v2776, %v3112
  %v3129 = vsub.s32 %v2777, %v3113
  %v3130 = vsub.s32 %v2778, %v3114
  %v3131 = vsub.s32 %v2779, %v3115
  %vm3132 = vcmp.lt.s32.totalorder %v3084, 7
  %vm3133 = vcmp.lt.s32.totalorder %v3085, 7
  %vm3134 = vcmp.lt.s32.totalorder %v3086, 7
  %vm3135 = vcmp.lt.s32.totalorder %v3087, 7
  %vm3136 = vcmp.lt.s32.totalorder %v3088, 7
  %vm3137 = vcmp.lt.s32.totalorder %v3089, 7
  %vm3138 = vcmp.lt.s32.totalorder %v3090, 7
  %vm3139 = vcmp.lt.s32.totalorder %v3091, 7
  %vm3140 = vcmp.lt.s32.totalorder %v3092, 7
  %vm3141 = vcmp.lt.s32.totalorder %v3093, 7
  %vm3142 = vcmp.lt.s32.totalorder %v3094, 7
  %vm3143 = vcmp.lt.s32.totalorder %v3095, 7
  %vm3144 = vcmp.lt.s32.totalorder %v3096, 7
  %vm3145 = vcmp.lt.s32.totalorder %v3097, 7
  %vm3146 = vcmp.lt.s32.totalorder %v3098, 7
  %vm3147 = vcmp.lt.s32.totalorder %v3099, 7
  %vm3148 = vcmp.lt.s32.totalorder %v3116, 7
  %vm3149 = vcmp.lt.s32.totalorder %v3117, 7
  %vm3150 = vcmp.lt.s32.totalorder %v3118, 7
  %vm3151 = vcmp.lt.s32.totalorder %v3119, 7
  %vm3152 = vcmp.lt.s32.totalorder %v3120, 7
  %vm3153 = vcmp.lt.s32.totalorder %v3121, 7
  %vm3154 = vcmp.lt.s32.totalorder %v3122, 7
  %vm3155 = vcmp.lt.s32.totalorder %v3123, 7
  %vm3156 = vcmp.lt.s32.totalorder %v3124, 7
  %vm3157 = vcmp.lt.s32.totalorder %v3125, 7
  %vm3158 = vcmp.lt.s32.totalorder %v3126, 7
  %vm3159 = vcmp.lt.s32.totalorder %v3127, 7
  %vm3160 = vcmp.lt.s32.totalorder %v3128, 7
  %vm3161 = vcmp.lt.s32.totalorder %v3129, 7
  %vm3162 = vcmp.lt.s32.totalorder %v3130, 7
  %vm3163 = vcmp.lt.s32.totalorder %v3131, 7
  %vm3164 = vmand %vm3132, %vm3148
  %vm3165 = vmand %vm3133, %vm3149
  %vm3166 = vmand %vm3134, %vm3150
  %vm3167 = vmand %vm3135, %vm3151
  %vm3168 = vmand %vm3136, %vm3152
  %vm3169 = vmand %vm3137, %vm3153
  %vm3170 = vmand %vm3138, %vm3154
  %vm3171 = vmand %vm3139, %vm3155
  %vm3172 = vmand %vm3140, %vm3156
  %vm3173 = vmand %vm3141, %vm3157
  %vm3174 = vmand %vm3142, %vm3158
  %vm3175 = vmand %vm3143, %vm3159
  %vm3176 = vmand %vm3144, %vm3160
  %vm3177 = vmand %vm3145, %vm3161
  %vm3178 = vmand %vm3146, %vm3162
  %vm3179 = vmand %vm3147, %vm3163
  %v3180 = vsel %vm3164, 1, 0
  %v3181 = vsel %vm3165, 1, 0
  %v3182 = vsel %vm3166, 1, 0
  %v3183 = vsel %vm3167, 1, 0
  %v3184 = vsel %vm3168, 1, 0
  %v3185 = vsel %vm3169, 1, 0
  %v3186 = vsel %vm3170, 1, 0
  %v3187 = vsel %vm3171, 1, 0
  %v3188 = vsel %vm3172, 1, 0
  %v3189 = vsel %vm3173, 1, 0
  %v3190 = vsel %vm3174, 1, 0
  %v3191 = vsel %vm3175, 1, 0
  %v3192 = vsel %vm3176, 1, 0
  %v3193 = vsel %vm3177, 1, 0
  %v3194 = vsel %vm3178, 1, 0
  %v3195 = vsel %vm3179, 1, 0
  %v3196 = vcvt.s32.f32 %v3180
  %v3197 = vcvt.s32.f32 %v3181
  %v3198 = vcvt.s32.f32 %v3182
  %v3199 = vcvt.s32.f32 %v3183
  %v3200 = vcvt.s32.f32 %v3184
  %v3201 = vcvt.s32.f32 %v3185
  %v3202 = vcvt.s32.f32 %v3186
  %v3203 = vcvt.s32.f32 %v3187
  %v3204 = vcvt.s32.f32 %v3188
  %v3205 = vcvt.s32.f32 %v3189
  %v3206 = vcvt.s32.f32 %v3190
  %v3207 = vcvt.s32.f32 %v3191
  %v3208 = vcvt.s32.f32 %v3192
  %v3209 = vcvt.s32.f32 %v3193
  %v3210 = vcvt.s32.f32 %v3194
  %v3211 = vcvt.s32.f32 %v3195
  %v3212 = vmul.f32 %v2661, %v3196
  %v3213 = vmul.f32 %v2664, %v3197
  %v3214 = vmul.f32 %v2669, %v3198
  %v3215 = vmul.f32 %v2672, %v3199
  %v3216 = vmul.f32 %v2677, %v3200
  %v3217 = vmul.f32 %v2680, %v3201
  %v3218 = vmul.f32 %v2685, %v3202
  %v3219 = vmul.f32 %v2688, %v3203
  %v3220 = vmul.f32 %v2693, %v3204
  %v3221 = vmul.f32 %v2696, %v3205
  %v3222 = vmul.f32 %v2701, %v3206
  %v3223 = vmul.f32 %v2704, %v3207
  %v3224 = vmul.f32 %v2709, %v3208
  %v3225 = vmul.f32 %v2712, %v3209
  %v3226 = vmul.f32 %v2717, %v3210
  %v3227 = vmul.f32 %v2720, %v3211
  %v3228 = vld [vmem:[#allocation4] sm:$0xff]
  %v3229 = vsel %vm250, %v3212, 0.0
  %v3230 = vsel %vm250, %v3213, 0.0
  %v3231 = vadd.f32 %v3229, %v3230
  %v3232 = vsel %vm250, %v3214, 0.0
  %v3233 = vadd.f32 %v3231, %v3232
  %v3234 = vsel %vm250, %v3215, 0.0
  %v3235 = vadd.f32 %v3233, %v3234
  %v3236 = vsel %vm250, %v3216, 0.0
  %v3237 = vadd.f32 %v3235, %v3236
  %v3238 = vsel %vm250, %v3217, 0.0
  %v3239 = vadd.f32 %v3237, %v3238
  %v3240 = vsel %vm250, %v3218, 0.0
  %v3241 = vadd.f32 %v3239, %v3240
  %v3242 = vsel %vm250, %v3219, 0.0
  %v3243 = vadd.f32 %v3241, %v3242
  %v3244 = vsel %vm250, %v3220, 0.0
  %v3245 = vadd.f32 %v3243, %v3244
  %v3246 = vsel %vm250, %v3221, 0.0
  %v3247 = vadd.f32 %v3245, %v3246
  %v3248 = vsel %vm250, %v3222, 0.0
  %v3249 = vadd.f32 %v3247, %v3248
  %v3250 = vsel %vm250, %v3223, 0.0
  %v3251 = vadd.f32 %v3249, %v3250
  %v3252 = vsel %vm250, %v3224, 0.0
  %v3253 = vadd.f32 %v3251, %v3252
  %v3254 = vsel %vm250, %v3225, 0.0
  %v3255 = vadd.f32 %v3253, %v3254
  %v3256 = vsel %vm250, %v3226, 0.0
  %v3257 = vadd.f32 %v3255, %v3256
  %v3258 = vsel %vm250, %v3227, 0.0
  %v3259 = vadd.f32 %v3257, %v3258
  %v3260 = vadd.f32 %v3228, %v3259
  %3261 = vst.msk [vmem:[#allocation4] sm:$0xff] %vm250, %v3260
  %v3262 = vld [vmem:[#allocation5] sm:$0xff]
  %v3263 = vmul.f32 %v3212, %v2661
  %v3264 = vmul.f32 %v3213, %v2664
  %v3265 = vmul.f32 %v3214, %v2669
  %v3266 = vmul.f32 %v3215, %v2672
  %v3267 = vmul.f32 %v3216, %v2677
  %v3268 = vmul.f32 %v3217, %v2680
  %v3269 = vmul.f32 %v3218, %v2685
  %v3270 = vmul.f32 %v3219, %v2688
  %v3271 = vmul.f32 %v3220, %v2693
  %v3272 = vmul.f32 %v3221, %v2696
  %v3273 = vmul.f32 %v3222, %v2701
  %v3274 = vmul.f32 %v3223, %v2704
  %v3275 = vmul.f32 %v3224, %v2709
  %v3276 = vmul.f32 %v3225, %v2712
  %v3277 = vmul.f32 %v3226, %v2717
  %v3278 = vmul.f32 %v3227, %v2720
  %v3279 = vsel %vm250, %v3263, 0.0
  %v3280 = vsel %vm250, %v3264, 0.0
  %v3281 = vadd.f32 %v3279, %v3280
  %v3282 = vsel %vm250, %v3265, 0.0
  %v3283 = vadd.f32 %v3281, %v3282
  %v3284 = vsel %vm250, %v3266, 0.0
  %v3285 = vadd.f32 %v3283, %v3284
  %v3286 = vsel %vm250, %v3267, 0.0
  %v3287 = vadd.f32 %v3285, %v3286
  %v3288 = vsel %vm250, %v3268, 0.0
  %v3289 = vadd.f32 %v3287, %v3288
  %v3290 = vsel %vm250, %v3269, 0.0
  %v3291 = vadd.f32 %v3289, %v3290
  %v3292 = vsel %vm250, %v3270, 0.0
  %v3293 = vadd.f32 %v3291, %v3292
  %v3294 = vsel %vm250, %v3271, 0.0
  %v3295 = vadd.f32 %v3293, %v3294
  %v3296 = vsel %vm250, %v3272, 0.0
  %v3297 = vadd.f32 %v3295, %v3296
  %v3298 = vsel %vm250, %v3273, 0.0
  %v3299 = vadd.f32 %v3297, %v3298
  %v3300 = vsel %vm250, %v3274, 0.0
  %v3301 = vadd.f32 %v3299, %v3300
  %v3302 = vsel %vm250, %v3275, 0.0
  %v3303 = vadd.f32 %v3301, %v3302
  %v3304 = vsel %vm250, %v3276, 0.0
  %v3305 = vadd.f32 %v3303, %v3304
  %v3306 = vsel %vm250, %v3277, 0.0
  %v3307 = vadd.f32 %v3305, %v3306
  %v3308 = vsel %vm250, %v3278, 0.0
  %v3309 = vadd.f32 %v3307, %v3308
  %v3310 = vadd.f32 %v3262, %v3309
  %3311 = vst.msk [vmem:[#allocation5] sm:$0xff] %vm250, %v3310
  // Predicated region
  $region30: #{discriminator_forward.1} parent=0 // pred_check
    %p3312 = pneg %p2741
  $region31: #{discriminator_forward.1} parent=0 // pred_check_branch
    %3314 = sbr.rel (%p3312) target = $region33
  $region32: #{discriminator_forward.1} parent=0 // pred_region
    %v3315 = vld [vmem:[#allocation4] sm:$0xff]
    %v3316 = vsel %vm250, %v3315, 0.0
    %v3317 = vrot.slane %v3316, 4
    %v3318 = vadd.f32 %v3316, %v3317
    %v3319 = vrot.slane %v3318, 2
    %v3320 = vadd.f32 %v3318, %v3319
    %v3321 = vrot.slane %v3320, 1
    %v3322 = vadd.f32 %v3320, %v3321
    %v3323 = vld [vmem:[#allocation5] sm:$0xff]
    %v3324 = vsel %vm250, %v3323, 0.0
    %v3325 = vrot.slane %v3324, 4
    %v3326 = vadd.f32 %v3324, %v3325
    %v3327 = vrot.slane %v3326, 2
    %v3328 = vadd.f32 %v3326, %v3327
    %v3329 = vrot.slane %v3328, 1
    %v3330 = vadd.f32 %v3328, %v3329
    %v3331 = vrcp.pop 98.0
    %v3332 = vmul.f32 %v3322, %v3331
    %v3333 = vmul.f32 %v3330, %v3331
    %v3334 = vmul.f32 %v3332, %v3332
    %v3335 = vsub.f32 %v3333, %v3334
    %v3336 = vadd.f32 %v3335, 1e-05
    %v3337 = vrsqrt.pop %v3336
    %v3338 = vld [vmem:[%s4] sm:$0x1]
    %v3339 = vmul.f32 %v3337, %v3338
    %v3340 = vld [vmem:[%s5] sm:$0x1]
    %v3341 = vmul.f32 %v3332, %v3339
    %v3342 = vsub.f32 %v3340, %v3341
    %v3343 = vld [vmem:[#allocation3] sm:$0xff]
    %v3344 = vld [vmem:[#allocation3 + $0x8] sm:$0xff]
    %v3345 = vld [vmem:[#allocation3 + $0x10] sm:$0xff]
    %v3346 = vld [vmem:[#allocation3 + $0x18] sm:$0xff]
    %v3347 = vld [vmem:[#allocation3 + $0x20] sm:$0xff]
    %v3348 = vld [vmem:[#allocation3 + $0x28] sm:$0xff]
    %v3349 = vld [vmem:[#allocation3 + $0x30] sm:$0xff]
    %v3350 = vld [vmem:[#allocation3 + $0x38] sm:$0xff]
    %v3351 = vld [vmem:[#allocation3 + $0x40] sm:$0xff]
    %v3352 = vld [vmem:[#allocation3 + $0x48] sm:$0xff]
    %v3353 = vld [vmem:[#allocation3 + $0x50] sm:$0xff]
    %v3354 = vld [vmem:[#allocation3 + $0x58] sm:$0xff]
    %v3355 = vld [vmem:[#allocation3 + $0x60] sm:$0xff]
    %v3356 = vld [vmem:[#allocation3 + $0x68] sm:$0xff]
    %v3357 = vld [vmem:[#allocation3 + $0x70] sm:$0xff]
    %v3358 = vld [vmem:[#allocation3 + $0x78] sm:$0xff]
    %v3359 = vlaneseq
    %v3360 = vshrl.u32 %v3359, 7
    %v3361 = vsub.s32 0, %v3360
    %v3362 = vrot.slane %v3339, %v3361
    %v3363 = vmul.f32 %v3343, %v3362
    %v3364 = vmul.f32 %v3344, %v3362
    %v3365 = vmul.f32 %v3345, %v3362
    %v3366 = vmul.f32 %v3346, %v3362
    %v3367 = vmul.f32 %v3347, %v3362
    %v3368 = vmul.f32 %v3348, %v3362
    %v3369 = vmul.f32 %v3349, %v3362
    %v3370 = vmul.f32 %v3350, %v3362
    %v3371 = vmul.f32 %v3351, %v3362
    %v3372 = vmul.f32 %v3352, %v3362
    %v3373 = vmul.f32 %v3353, %v3362
    %v3374 = vmul.f32 %v3354, %v3362
    %v3375 = vmul.f32 %v3355, %v3362
    %v3376 = vmul.f32 %v3356, %v3362
    %v3377 = vmul.f32 %v3357, %v3362
    %v3378 = vmul.f32 %v3358, %v3362
    %v3380 = vlaneseq
    %v3381 = vshrl.u32 %v3380, 7
    %v3382 = vsub.s32 0, %v3381
    %v3383 = vrot.slane %v3342, %v3382
    %v3385 = vadd.f32 %v3363, %v3383
    %v3386 = vadd.f32 %v3364, %v3383
    %v3387 = vadd.f32 %v3365, %v3383
    %v3388 = vadd.f32 %v3366, %v3383
    %v3389 = vadd.f32 %v3367, %v3383
    %v3390 = vadd.f32 %v3368, %v3383
    %v3391 = vadd.f32 %v3369, %v3383
    %v3392 = vadd.f32 %v3370, %v3383
    %v3393 = vadd.f32 %v3371, %v3383
    %v3394 = vadd.f32 %v3372, %v3383
    %v3395 = vadd.f32 %v3373, %v3383
    %v3396 = vadd.f32 %v3374, %v3383
    %v3397 = vadd.f32 %v3375, %v3383
    %v3398 = vadd.f32 %v3376, %v3383
    %v3399 = vadd.f32 %v3377, %v3383
    %v3400 = vadd.f32 %v3378, %v3383
    %vm3401 = vcmp.ge.f32.partialorder %v3385, 0.0
    %vm3402 = vcmp.ge.f32.partialorder %v3386, 0.0
    %vm3403 = vcmp.ge.f32.partialorder %v3387, 0.0
    %vm3404 = vcmp.ge.f32.partialorder %v3388, 0.0
    %vm3405 = vcmp.ge.f32.partialorder %v3389, 0.0
    %vm3406 = vcmp.ge.f32.partialorder %v3390, 0.0
    %vm3407 = vcmp.ge.f32.partialorder %v3391, 0.0
    %vm3408 = vcmp.ge.f32.partialorder %v3392, 0.0
    %vm3409 = vcmp.ge.f32.partialorder %v3393, 0.0
    %vm3410 = vcmp.ge.f32.partialorder %v3394, 0.0
    %vm3411 = vcmp.ge.f32.partialorder %v3395, 0.0
    %vm3412 = vcmp.ge.f32.partialorder %v3396, 0.0
    %vm3413 = vcmp.ge.f32.partialorder %v3397, 0.0
    %vm3414 = vcmp.ge.f32.partialorder %v3398, 0.0
    %vm3415 = vcmp.ge.f32.partialorder %v3399, 0.0
    %vm3416 = vcmp.ge.f32.partialorder %v3400, 0.0
    %v3417 = vmul.f32 %v3385, 0.2
    %v3418 = vmul.f32 %v3386, 0.2
    %v3419 = vmul.f32 %v3387, 0.2
    %v3420 = vmul.f32 %v3388, 0.2
    %v3421 = vmul.f32 %v3389, 0.2
    %v3422 = vmul.f32 %v3390, 0.2
    %v3423 = vmul.f32 %v3391, 0.2
    %v3424 = vmul.f32 %v3392, 0.2
    %v3425 = vmul.f32 %v3393, 0.2
    %v3426 = vmul.f32 %v3394, 0.2
    %v3427 = vmul.f32 %v3395, 0.2
    %v3428 = vmul.f32 %v3396, 0.2
    %v3429 = vmul.f32 %v3397, 0.2
    %v3430 = vmul.f32 %v3398, 0.2
    %v3431 = vmul.f32 %v3399, 0.2
    %v3432 = vmul.f32 %v3400, 0.2
    %v3433 = vsel %vm3401, %v3385, %v3417
    %v3434 = vsel %vm3402, %v3386, %v3418
    %v3435 = vsel %vm3403, %v3387, %v3419
    %v3436 = vsel %vm3404, %v3388, %v3420
    %v3437 = vsel %vm3405, %v3389, %v3421
    %v3438 = vsel %vm3406, %v3390, %v3422
    %v3439 = vsel %vm3407, %v3391, %v3423
    %v3440 = vsel %vm3408, %v3392, %v3424
    %v3441 = vsel %vm3409, %v3393, %v3425
    %v3442 = vsel %vm3410, %v3394, %v3426
    %v3443 = vsel %vm3411, %v3395, %v3427
    %v3444 = vsel %vm3412, %v3396, %v3428
    %v3445 = vsel %vm3413, %v3397, %v3429
    %v3446 = vsel %vm3414, %v3398, %v3430
    %v3447 = vsel %vm3415, %v3399, %v3431
    %v3448 = vsel %vm3416, %v3400, %v3432
    %v3449 = vld [vmem:[%s3] sm:$0xff]
    %v3450 = vld [vmem:[%s3 + $0x8] sm:$0xff]
    %v3451 = vld [vmem:[%s3 + $0x10] sm:$0xff]
    %v3452 = vld [vmem:[%s3 + $0x18] sm:$0xff]
    %v3453 = vld [vmem:[%s3 + $0x20] sm:$0xff]
    %v3454 = vld [vmem:[%s3 + $0x28] sm:$0xff]
    %v3455 = vld [vmem:[%s3 + $0x30] sm:$0xff]
    %v3456 = vld [vmem:[%s3 + $0x38] sm:$0xff]
    %v3457 = vmul.f32 %v3433, %v3449
    %v3458 = vmul.f32 %v3434, %v3450
    %v3459 = vmul.f32 %v3435, %v3451
    %v3460 = vmul.f32 %v3436, %v3452
    %v3461 = vmul.f32 %v3437, %v3453
    %v3462 = vmul.f32 %v3438, %v3454
    %v3463 = vmul.f32 %v3439, %v3455
    %v3464 = vmul.f32 %v3440, %v3456
    %v3465 = vmul.f32 %v3441, %v3449
    %v3466 = vmul.f32 %v3442, %v3450
    %v3467 = vmul.f32 %v3443, %v3451
    %v3468 = vmul.f32 %v3444, %v3452
    %v3469 = vmul.f32 %v3445, %v3453
    %v3470 = vmul.f32 %v3446, %v3454
    %v3471 = vmul.f32 %v3447, %v3455
    %v3472 = vmul.f32 %v3448, %v3456
    %v3473 = vsel %vm250, %v3457, 0.0
    %v3474 = vsel %vm250, %v3458, 0.0
    %v3475 = vadd.f32 %v3473, %v3474
    %v3476 = vsel %vm250, %v3459, 0.0
    %v3477 = vadd.f32 %v3475, %v3476
    %v3478 = vsel %vm250, %v3460, 0.0
    %v3479 = vadd.f32 %v3477, %v3478
    %v3480 = vsel %vm250, %v3461, 0.0
    %v3481 = vadd.f32 %v3479, %v3480
    %v3482 = vsel %vm250, %v3462, 0.0
    %v3483 = vadd.f32 %v3481, %v3482
    %v3484 = vsel %vm250, %v3463, 0.0
    %v3485 = vadd.f32 %v3483, %v3484
    %v3486 = vsel %vm250, %v3464, 0.0
    %v3487 = vadd.f32 %v3485, %v3486
    %v3488 = vrot.slane %v3487, 4
    %v3489 = vadd.f32 %v3487, %v3488
    %v3490 = vrot.slane %v3489, 2
    %v3491 = vadd.f32 %v3489, %v3490
    %v3492 = vrot.slane %v3491, 1
    %v3493 = vadd.f32 %v3491, %v3492
    %v3494 = vsel %vm250, %v3465, 0.0
    %v3495 = vsel %vm250, %v3466, 0.0
    %v3496 = vadd.f32 %v3494, %v3495
    %v3497 = vsel %vm250, %v3467, 0.0
    %v3498 = vadd.f32 %v3496, %v3497
    %v3499 = vsel %vm250, %v3468, 0.0
    %v3500 = vadd.f32 %v3498, %v3499
    %v3501 = vsel %vm250, %v3469, 0.0
    %v3502 = vadd.f32 %v3500, %v3501
    %v3503 = vsel %vm250, %v3470, 0.0
    %v3504 = vadd.f32 %v3502, %v3503
    %v3505 = vsel %vm250, %v3471, 0.0
    %v3506 = vadd.f32 %v3504, %v3505
    %v3507 = vsel %vm250, %v3472, 0.0
    %v3508 = vadd.f32 %v3506, %v3507
    %v3509 = vrot.slane %v3508, 4
    %v3510 = vadd.f32 %v3508, %v3509
    %v3511 = vrot.slane %v3510, 2
    %v3512 = vadd.f32 %v3510, %v3511
    %v3513 = vrot.slane %v3512, 1
    %v3514 = vadd.f32 %v3512, %v3513
    %vm3517 = vcmask 1041409
    %v3518 = vsel %vm3517, %v3514, %v3493
    %vm3520 = vcmask 123904
    %v3521 = vsel %vm3520, %v3518, 0.0
    %3522 = vadd.xlane.f32.xlu0 %v3521
    %v3523 = vpop.xlane.xlu0 %3522
    %v3524 = vsub.f32 0.0, %v3523
    %v3525 = vmul.f32 %v3524, 1.442695
    %v3526 = vpow.pop %v3525
    %v3527 = vadd.f32 %v3526, 1.0
    %v3528 = vrcp.pop %v3527
    %v3529 = vmul.f32 1.0, %v3528
    %3530 = vst [vmem:[%s6] sm:$0x3] %v3529
  $region33: #{discriminator_forward.1} parent=0 // pred_fallthru
    _
  // Predicated region
  $region34: #{discriminator_forward.1} parent=0 // pred_check
    _
  $region35: #{discriminator_forward.1} parent=0 // pred_check_branch
    %3532 = sbr.rel (0) target = $region37
  $region36: #{discriminator_forward.1} parent=0 // pred_region
    _
  $region37: #{discriminator_forward.1} parent=0 // pred_fallthru
    _
  // Predicated region
  $region38: #{discriminator_forward.1} parent=0 // pred_check
    _
  $region39: #{discriminator_forward.1} parent=0 // pred_check_branch
    %3534 = sbr.rel (0) target = $region41
  $region40: #{discriminator_forward.1} parent=0 // pred_region
    _
  $region41: #{discriminator_forward.1} parent=0 // pred_fallthru
    _

</llo_original>
